<compile_context>
chip_gen: v5e
topology: v5e:2x2
jax: 0.10.0
libtpu: 0.0.40
codegen_flags: <defaults>
</compile_context>

<pallas_src>
import jax
import jax.numpy as jnp
from jax import lax
from jax.experimental import pallas as pl
from jax.experimental.pallas import tpu as pltpu

VMEM_LIMIT = 32 * 1024 * 1024


def _pick_tile(n, preferred=128):
    """Largest convenient pixel tile (multiple of 8) that divides n."""
    cands = [preferred] + [t for t in (512, 256, 128, 64, 32, 16, 8) if t != preferred]
    for t in cands:
        if t <= n and n % t == 0 and t % 8 == 0:
            return t
    return n


# ----------------------------------------------------------------------------
# Kernel 1: pointwise (1x1) conv as a tiled matmul + bias (backbone stand-in)
# ----------------------------------------------------------------------------
def _conv1x1_kernel(x_ref, w_ref, b_ref, o_ref):
    o_ref[0] = (
        jnp.dot(x_ref[0], w_ref[...], preferred_element_type=jnp.float32)
        + b_ref[...]
    )


def conv1x1(x_npc, w, b, *, tile_p=128):
    """x: (N, P, Cin), w: (Cin, Cout), b: (Cout,) -> (N, P, Cout)."""
    N, P, Cin = x_npc.shape
    Cout = w.shape[1]
    # Pad tiny contraction dims up to a full sublane (>=8) for clean MXU layout.
    Kp = max(8, ((Cin + 7) // 8) * 8)
    if Kp != Cin:
        x_npc = jnp.concatenate(
            [x_npc, jnp.zeros((N, P, Kp - Cin), x_npc.dtype)], axis=-1)
        w = jnp.concatenate([w, jnp.zeros((Kp - Cin, Cout), w.dtype)], axis=0)
    TP = _pick_tile(P, tile_p)
    return pl.pallas_call(
        _conv1x1_kernel,
        out_shape=jax.ShapeDtypeStruct((N, P, Cout), jnp.float32),
        grid=(N, P // TP),
        in_specs=[
            pl.BlockSpec((1, TP, Kp), lambda n, t: (n, t, 0)),
            pl.BlockSpec((Kp, Cout), lambda n, t: (0, 0)),
            pl.BlockSpec((1, Cout), lambda n, t: (0, 0)),
        ],
        out_specs=pl.BlockSpec((1, TP, Cout), lambda n, t: (n, t, 0)),
        compiler_params=pltpu.CompilerParams(
            dimension_semantics=("parallel", "parallel"),
            vmem_limit_bytes=VMEM_LIMIT),
        cost_estimate=pl.CostEstimate(
            flops=2 * N * P * Kp * Cout, transcendentals=0,
            bytes_accessed=4 * (N * P * Kp + Kp * Cout + N * P * Cout)),
    )(x_npc, w, b.reshape(1, Cout))


# ----------------------------------------------------------------------------
# Kernel 2: fused flownet (1x1 conv, 1/255 folded into weights) + flow-guided
#           bilinear warp (get_grid + grid_sample(mode='bilinear', 'border'))
# ----------------------------------------------------------------------------
def _make_warp_kernel(H, W):
    Hf, Wf = float(H), float(W)

    def kernel(cur_ref, rim_ref, feat_ref, fwc_ref, fwr_ref, fb_ref, o_ref):
        # cur_ref  : (1, TILE, Kp)   current-frame image pixels for this tile
        # rim_ref  : (1, TILE, Kp)   reference-frame image pixels for this tile
        # feat_ref : (1, P, C)       full reference feature map (flattened pixels)
        # fwc_ref  : (Kp, 128)       flownet weight / 255 for the current image
        # fwr_ref  : (Kp, 128)       flownet weight / 255 for the reference image
        # fb_ref   : (1, 128)        flownet bias (cols 0,1 = flow x,y)
        # o_ref    : (1, TILE, C)    warped features for this tile
        P = feat_ref.shape[1]
        TILE = o_ref.shape[1]
        t = pl.program_id(1)

        # --- flownet stand-in, fused: per-pixel flow for this output tile ------
        flow = (jnp.dot(cur_ref[0], fwc_ref[...], preferred_element_type=jnp.float32)
                + jnp.dot(rim_ref[0], fwr_ref[...], preferred_element_type=jnp.float32)
                + fb_ref[...])
        fx = flow[:, 0:1]                                   # (TILE, 1) x-disp
        fy = flow[:, 1:2]                                   # (TILE, 1) y-disp

        # --- output-pixel coordinates (lane math on column vectors) -----------
        p_i = lax.broadcasted_iota(jnp.int32, (TILE, 1), 0) + t * TILE
        p_f = p_i.astype(jnp.float32)
        yy = jnp.floor(p_f / Wf)                            # exact for P < 2^24
        xx = p_f - yy * Wf

        # get_grid(): normalize with ((W-1)/2, (H-1)/2) as in the reference.
        gx = (fx + xx) / ((Wf - 1.0) / 2.0) - 1.0
        gy = (fy + yy) / ((Hf - 1.0) / 2.0) - 1.0
        # grid_sample default (align_corners=False) unnormalization + border clamp.
        # NOTE: the normalize/unnormalize conventions intentionally differ — this
        # reproduces the exact composition of the PyTorch module.
        ix = jnp.clip(((gx + 1.0) * Wf - 1.0) * 0.5, 0.0, Wf - 1.0)
        iy = jnp.clip(((gy + 1.0) * Hf - 1.0) * 0.5, 0.0, Hf - 1.0)

        x0 = jnp.floor(ix)
        y0 = jnp.floor(iy)
        wx1 = ix - x0
        wx0 = 1.0 - wx1
        wy1 = iy - y0
        wy0 = 1.0 - wy1

        # --- one-hot bilinear rows, built once from d = col - base ------------
        # Corners at offsets {0, 1, W, W+1}; out-of-range / clamped corners have
        # exactly-zero weights (wx1 or wy1 == 0), so no extra masking is needed.
        src00 = y0.astype(jnp.int32) * W + x0.astype(jnp.int32)   # (TILE, 1)
        col = lax.broadcasted_iota(jnp.int32, (TILE, P), 1)
        d = col - src00
        interp = jnp.where(
            d == 0, wy0 * wx0,
            jnp.where(d == 1, wy0 * wx1,
                      jnp.where(d == W, wy1 * wx0,
                                jnp.where(d == W + 1, wy1 * wx1, 0.0))))

        # bf16 MXU matmul with f32 accumulation.
        warped = jnp.dot(interp.astype(jnp.bfloat16),
                         feat_ref[0].astype(jnp.bfloat16),
                         preferred_element_type=jnp.float32)
        o_ref[0] = warped

    return kernel


def warp_fused(x_pad, feats_refs, fwc_pad, fwr_pad, fb_pad, H, W, *, tile_p=128):
    """x_pad: (1+R, P, Kp) padded images (cur at batch 0), feats_refs: (R, P, C)."""
    R, P, C = feats_refs.shape
    Kp = x_pad.shape[-1]
    TP = _pick_tile(P, tile_p)
    nT = P // TP
    return pl.pallas_call(
        _make_warp_kernel(H, W),
        out_shape=jax.ShapeDtypeStruct((R, P, C), jnp.float32),
        grid=(R, nT),
        in_specs=[
            pl.BlockSpec((1, TP, Kp), lambda r, t: (0, t, 0)),       # cur image
            pl.BlockSpec((1, TP, Kp), lambda r, t: (r + 1, t, 0)),   # ref image r
            pl.BlockSpec((1, P, C), lambda r, t: (r, 0, 0)),         # ref feats r
            pl.BlockSpec((Kp, 128), lambda r, t: (0, 0)),
            pl.BlockSpec((Kp, 128), lambda r, t: (0, 0)),
            pl.BlockSpec((1, 128), lambda r, t: (0, 0)),
        ],
        out_specs=pl.BlockSpec((1, TP, C), lambda r, t: (r, t, 0)),
        compiler_params=pltpu.CompilerParams(
            dimension_semantics=("parallel", "parallel"),
            vmem_limit_bytes=VMEM_LIMIT),
        cost_estimate=pl.CostEstimate(
            flops=2 * R * (P * P * C + 2 * P * Kp * 128), transcendentals=0,
            bytes_accessed=4 * (2 * R * P * Kp + 2 * feats_refs.size)),
    )(x_pad, x_pad, feats_refs, fwc_pad, fwr_pad, fb_pad)


# ----------------------------------------------------------------------------
# Kernel 3: embednet (1x1 conv) fused with cosine weights + softmax over refs
#           + weighted aggregation, tiled over pixels
# ----------------------------------------------------------------------------
def _embed_aggregate_kernel(fc_ref, wr_ref, ew_ref, eb_ref, o_ref):
    eps = 1e-10
    R, TP, Cf = wr_ref.shape
    fc = fc_ref[0]                                            # (TP, Cf)
    wr = wr_ref[...]                                          # (R, TP, Cf)

    # embednet stand-in (shared 1x1 conv on cur feats and warped ref feats)
    ec = jnp.dot(fc, ew_ref[...], preferred_element_type=jnp.float32) + eb_ref[...]
    er = (jnp.dot(wr.reshape(R * TP, Cf), ew_ref[...],
                  preferred_element_type=jnp.float32) + eb_ref[...]
          ).reshape(R, TP, -1)                                # (R, TP, E)

    # cosine weight = dot / ((||er||+eps)(||ec||+eps)) — reciprocals on the EUP
    dot = jnp.sum(er * ec[None], axis=-1, keepdims=True)      # (R, TP, 1)
    nr = jnp.sqrt(jnp.sum(er * er, axis=-1, keepdims=True))
    nc = jnp.sqrt(jnp.sum(ec * ec, axis=-1, keepdims=True))   # (TP, 1)
    w = (dot * pl.reciprocal(nr + eps, approx=True)
             * pl.reciprocal(nc[None] + eps, approx=True))

    # softmax over the reference axis, then weighted sum of the warped features
    m = jnp.max(w, axis=0, keepdims=True)
    e = jnp.exp(w - m)
    sm = e * pl.reciprocal(jnp.sum(e, axis=0, keepdims=True), approx=True)
    o_ref[0] = jnp.sum(sm * wr, axis=0)                       # (TP, Cf)


def embed_aggregate(feats_cur, warped, embed_w, embed_b, *, tile_p=128):
    """feats_cur: (1, P, Cf), warped: (R, P, Cf), embed_w: (Cf, E)."""
    R, P, Cf = warped.shape
    E = embed_w.shape[1]
    TP = _pick_tile(P, tile_p)
    return pl.pallas_call(
        _embed_aggregate_kernel,
        out_shape=jax.ShapeDtypeStruct((1, P, Cf), jnp.float32),
        grid=(P // TP,),
        in_specs=[
            pl.BlockSpec((1, TP, Cf), lambda t: (0, t, 0)),
            pl.BlockSpec((R, TP, Cf), lambda t: (0, t, 0)),
            pl.BlockSpec((Cf, E), lambda t: (0, 0)),
            pl.BlockSpec((1, E), lambda t: (0, 0)),
        ],
        out_specs=pl.BlockSpec((1, TP, Cf), lambda t: (0, t, 0)),
        compiler_params=pltpu.CompilerParams(
            dimension_semantics=("parallel",),
            vmem_limit_bytes=VMEM_LIMIT),
        cost_estimate=pl.CostEstimate(
            flops=2 * (R + 1) * P * Cf * E + 8 * R * P * E,
            transcendentals=3 * R * P,
            bytes_accessed=4 * (feats_cur.size + 2 * warped.size + Cf * E)),
    )(feats_cur, warped, embed_w, embed_b.reshape(1, E))


# ----------------------------------------------------------------------------
# Parameter init (deterministic) and the FGFA forward (train-path semantics)
# ----------------------------------------------------------------------------
def init_params(key, c_in=3, c_feat=32, c_embed=16):
    k1, k2, k3, k4, k5, k6 = jax.random.split(key, 6)
    return {
        "backbone_w": 0.1 * jax.random.normal(k1, (c_in, c_feat), jnp.float32),
        "backbone_b": 0.01 * jax.random.normal(k2, (c_feat,), jnp.float32),
        "flownet_w": 0.05 * jax.random.normal(k3, (2 * c_in, 2), jnp.float32),
        "flownet_b": 0.01 * jax.random.normal(k4, (2,), jnp.float32),
        "embed_w": 0.1 * jax.random.normal(k5, (c_feat, c_embed), jnp.float32),
        "embed_b": 0.01 * jax.random.normal(k6, (c_embed,), jnp.float32),
    }


@jax.jit
def fgfa_forward(img_cur_nchw, imgs_ref_nchw, params):
    """Mirrors GeneralizedRCNNFGFA._forward_train up to the aggregated feature."""
    R = imgs_ref_nchw.shape[0]
    _, Cimg, H, W = img_cur_nchw.shape
    P = H * W

    concat_imgs = jnp.concatenate([img_cur_nchw, imgs_ref_nchw], axis=0)
    x = jnp.transpose(concat_imgs, (0, 2, 3, 1)).reshape(1 + R, P, Cimg)

    # Pad image channels once to a full sublane (>=8); reused by the backbone
    # conv and the fused warp kernel.
    Kp = max(8, ((Cimg + 7) // 8) * 8)
    x_pad = jnp.concatenate(
        [x, jnp.zeros((1 + R, P, Kp - Cimg), jnp.float32)], axis=-1)
    bw_pad = jnp.concatenate(
        [params["backbone_w"],
         jnp.zeros((Kp - Cimg, params["backbone_w"].shape[1]), jnp.float32)], axis=0)

    # backbone stand-in (shared on concatenated cur+ref batch, like the module)
    feats = conv1x1(x_pad, bw_pad, params["backbone_b"])               # (1+R,P,Cf)
    feats_cur, feats_refs = feats[:1], feats[1:]
    Cf = feats.shape[-1]

    # flownet weights: 1/255 input scaling folded into the weights, split into
    # the cur-image half and the ref-image half, padded to a lane-dense (Kp,128).
    fwc_pad = jnp.zeros((Kp, 128), jnp.float32).at[:Cimg, :2].set(
        params["flownet_w"][:Cimg] / 255.0)
    fwr_pad = jnp.zeros((Kp, 128), jnp.float32).at[:Cimg, :2].set(
        params["flownet_w"][Cimg:] / 255.0)
    fb_pad = jnp.zeros((1, 128), jnp.float32).at[0, :2].set(params["flownet_b"])

    # fused flownet + resample(): flow-guided bilinear warp of the ref features
    warped_refs = warp_fused(x_pad, feats_refs, fwc_pad, fwr_pad, fb_pad, H, W)

    # fused embednet + cosine weights + softmax over refs + weighted sum
    agg = embed_aggregate(feats_cur, warped_refs,
                          params["embed_w"], params["embed_b"])        # (1, P, Cf)

    # TODO(synk): rpn / roi_heads are external cfg-built modules with no defined
    # architecture; the FGFA-aggregated feature map is returned instead.
    return jnp.transpose(agg.reshape(1, H, W, Cf), (0, 3, 1, 2))       # NCHW


if __name__ == "__main__":
    key = jax.random.PRNGKey(0)
    k_img, k_ref, k_par = jax.random.split(key, 3)
    H = W = 16
    num_refs = 2

    img_cur = jax.random.uniform(k_img, (1, 3, H, W), jnp.float32, 0.0, 255.0)
    imgs_ref = jax.random.uniform(k_ref, (num_refs, 3, H, W), jnp.float32, 0.0, 255.0)
    params = init_params(k_par)

    out = fgfa_forward(img_cur, imgs_ref, params)
    out = jax.block_until_ready(out)

    assert out.shape == (1, 32, H, W), out.shape
    assert bool(jnp.all(jnp.isfinite(out)))
    print("KERNEL_OK")
</pallas_src>

<mosaic_0001>
module attributes {stable_mosaic.version = 11 : i64} {
  func.func @_conv1x1_kernel(%arg0: i32, %arg1: i32, %arg2: memref<1x128x8xf32, #tpu.memory_space<vmem>>, %arg3: memref<8x32xf32, #tpu.memory_space<vmem>>, %arg4: memref<1x32xf32, #tpu.memory_space<vmem>>, %arg5: memref<1x128x32xf32, #tpu.memory_space<vmem>>) attributes {dimension_semantics = [#tpu.dimension_semantics<parallel>, #tpu.dimension_semantics<parallel>], iteration_bounds = array<i64: 3, 2>, scalar_prefetch = 0 : i64, scratch_operands = 0 : i64, tpu.core_type = #tpu.core_type<tc>, window_params = [{transform_indices = @transform_0, window_bounds = array<i64: 1, 128, 8>}, {pipeline_mode = #tpu.pipeline_mode<synchronous>, transform_indices = @transform_1, window_bounds = array<i64: 8, 32>}, {pipeline_mode = #tpu.pipeline_mode<synchronous>, transform_indices = @transform_2, window_bounds = array<i64: 1, 32>}, {transform_indices = @transform_3, window_bounds = array<i64: 1, 128, 32>}]} {
    %c0 = arith.constant 0 : index
    %c0_0 = arith.constant 0 : index
    %c0_1 = arith.constant 0 : index
    %0 = vector.load %arg2[%c0, %c0_0, %c0_1] : memref<1x128x8xf32, #tpu.memory_space<vmem>>, vector<1x128x8xf32>
    %1 = vector.shape_cast %0 : vector<1x128x8xf32> to vector<128x8xf32>
    %c0_2 = arith.constant 0 : index
    %c0_3 = arith.constant 0 : index
    %2 = vector.load %arg3[%c0_2, %c0_3] : memref<8x32xf32, #tpu.memory_space<vmem>>, vector<8x32xf32>
    %cst = arith.constant dense<0.000000e+00> : vector<128x32xf32>
    %3 = tpu.matmul %1, %2, %cst {dimension_numbers = #tpu.dot_dimension_numbers<[1], [0], [0], [1], [0, 0, 1, 1], [], []>} : vector<128x8xf32>, vector<8x32xf32>, vector<128x32xf32> -> vector<128x32xf32>
    %c0_4 = arith.constant 0 : index
    %c0_5 = arith.constant 0 : index
    %4 = vector.load %arg4[%c0_4, %c0_5] : memref<1x32xf32, #tpu.memory_space<vmem>>, vector<1x32xf32>
    %5 = vector.broadcast %4 : vector<1x32xf32> to vector<128x32xf32>
    %6 = arith.addf %3, %5 : vector<128x32xf32>
    %c0_6 = arith.constant 0 : index
    %c0_7 = arith.constant 0 : index
    %c0_8 = arith.constant 0 : index
    %7 = vector.load %arg5[%c0_6, %c0_7, %c0_8] : memref<1x128x32xf32, #tpu.memory_space<vmem>>, vector<1x128x32xf32>
    %8 = vector.shape_cast %7 : vector<1x128x32xf32> to vector<128x32xf32>
    %9 = vector.shape_cast %6 : vector<128x32xf32> to vector<1x128x32xf32>
    tpu.vector_store %arg5[%c0_6, %c0_7, %c0_8], %9 {strides = array<i32>} : memref<1x128x32xf32, #tpu.memory_space<vmem>>, vector<1x128x32xf32>,
    return
  }
  func.func @transform_0(%arg0: i32, %arg1: i32) -> (i32, i32, i32) {
    %c0_i32 = arith.constant 0 : i32
    %c0_i32_0 = arith.constant 0 : i32
    return %arg0, %arg1, %c0_i32 : i32, i32, i32
  }
  func.func @transform_1(%arg0: i32, %arg1: i32) -> (i32, i32) {
    %c0_i32 = arith.constant 0 : i32
    %c0_i32_0 = arith.constant 0 : i32
    %c0_i32_1 = arith.constant 0 : i32
    return %c0_i32, %c0_i32_0 : i32, i32
  }
  func.func @transform_2(%arg0: i32, %arg1: i32) -> (i32, i32) {
    %c0_i32 = arith.constant 0 : i32
    %c0_i32_0 = arith.constant 0 : i32
    %c0_i32_1 = arith.constant 0 : i32
    return %c0_i32, %c0_i32_0 : i32, i32
  }
  func.func @transform_3(%arg0: i32, %arg1: i32) -> (i32, i32, i32) {
    %c0_i32 = arith.constant 0 : i32
    %c0_i32_0 = arith.constant 0 : i32
    return %arg0, %arg1, %c0_i32 : i32, i32, i32
  }
}

module attributes {stable_mosaic.version = 11 : i64} {
  func.func @_embed_aggregate_kernel(%arg0: i32, %arg1: memref<1x128x32xf32, #tpu.memory_space<vmem>>, %arg2: memref<2x128x32xf32, #tpu.memory_space<vmem>>, %arg3: memref<32x16xf32, #tpu.memory_space<vmem>>, %arg4: memref<1x16xf32, #tpu.memory_space<vmem>>, %arg5: memref<1x128x32xf32, #tpu.memory_space<vmem>>) attributes {dimension_semantics = [#tpu.dimension_semantics<parallel>], iteration_bounds = array<i64: 2>, scalar_prefetch = 0 : i64, scratch_operands = 0 : i64, tpu.core_type = #tpu.core_type<tc>, window_params = [{transform_indices = @transform_0, window_bounds = array<i64: 1, 128, 32>}, {transform_indices = @transform_1, window_bounds = array<i64: 2, 128, 32>}, {pipeline_mode = #tpu.pipeline_mode<synchronous>, transform_indices = @transform_2, window_bounds = array<i64: 32, 16>}, {pipeline_mode = #tpu.pipeline_mode<synchronous>, transform_indices = @transform_3, window_bounds = array<i64: 1, 16>}, {transform_indices = @transform_4, window_bounds = array<i64: 1, 128, 32>}]} {
    %c0 = arith.constant 0 : index
    %c0_0 = arith.constant 0 : index
    %c0_1 = arith.constant 0 : index
    %0 = vector.load %arg1[%c0, %c0_0, %c0_1] : memref<1x128x32xf32, #tpu.memory_space<vmem>>, vector<1x128x32xf32>
    %1 = vector.shape_cast %0 : vector<1x128x32xf32> to vector<128x32xf32>
    %c0_2 = arith.constant 0 : index
    %c0_3 = arith.constant 0 : index
    %c0_4 = arith.constant 0 : index
    %2 = vector.load %arg2[%c0_2, %c0_3, %c0_4] : memref<2x128x32xf32, #tpu.memory_space<vmem>>, vector<2x128x32xf32>
    %c0_5 = arith.constant 0 : index
    %c0_6 = arith.constant 0 : index
    %3 = vector.load %arg3[%c0_5, %c0_6] : memref<32x16xf32, #tpu.memory_space<vmem>>, vector<32x16xf32>
    %cst = arith.constant dense<0.000000e+00> : vector<128x16xf32>
    %4 = tpu.matmul %1, %3, %cst {dimension_numbers = #tpu.dot_dimension_numbers<[1], [0], [0], [1], [0, 0, 1, 1], [], []>} : vector<128x32xf32>, vector<32x16xf32>, vector<128x16xf32> -> vector<128x16xf32>
    %c0_7 = arith.constant 0 : index
    %c0_8 = arith.constant 0 : index
    %5 = vector.load %arg4[%c0_7, %c0_8] : memref<1x16xf32, #tpu.memory_space<vmem>>, vector<1x16xf32>
    %6 = vector.broadcast %5 : vector<1x16xf32> to vector<128x16xf32>
    %7 = arith.addf %4, %6 : vector<128x16xf32>
    %8 = vector.shape_cast %2 : vector<2x128x32xf32> to vector<256x32xf32>
    %c0_9 = arith.constant 0 : index
    %c0_10 = arith.constant 0 : index
    %9 = vector.load %arg3[%c0_9, %c0_10] : memref<32x16xf32, #tpu.memory_space<vmem>>, vector<32x16xf32>
    %cst_11 = arith.constant dense<0.000000e+00> : vector<256x16xf32>
    %10 = tpu.matmul %8, %9, %cst_11 {dimension_numbers = #tpu.dot_dimension_numbers<[1], [0], [0], [1], [0, 0, 1, 1], [], []>} : vector<256x32xf32>, vector<32x16xf32>, vector<256x16xf32> -> vector<256x16xf32>
    %c0_12 = arith.constant 0 : index
    %c0_13 = arith.constant 0 : index
    %11 = vector.load %arg4[%c0_12, %c0_13] : memref<1x16xf32, #tpu.memory_space<vmem>>, vector<1x16xf32>
    %12 = vector.broadcast %11 : vector<1x16xf32> to vector<256x16xf32>
    %13 = arith.addf %10, %12 : vector<256x16xf32>
    %14 = vector.shape_cast %13 : vector<256x16xf32> to vector<2x128x16xf32>
    %15 = vector.shape_cast %7 : vector<128x16xf32> to vector<1x128x16xf32>
    %16 = vector.broadcast %15 : vector<1x128x16xf32> to vector<2x128x16xf32>
    %17 = arith.mulf %14, %16 : vector<2x128x16xf32>
    %cst_14 = arith.constant dense<0.000000e+00> : vector<2x128xf32>
    %18 = vector.multi_reduction <add>, %17, %cst_14 [2] : vector<2x128x16xf32> to vector<2x128xf32>
    %19 = vector.shape_cast %18 : vector<2x128xf32> to vector<2x128x1xf32>
    %20 = arith.mulf %14, %14 : vector<2x128x16xf32>
    %cst_15 = arith.constant dense<0.000000e+00> : vector<2x128xf32>
    %21 = vector.multi_reduction <add>, %20, %cst_15 [2] : vector<2x128x16xf32> to vector<2x128xf32>
    %22 = vector.shape_cast %21 : vector<2x128xf32> to vector<2x128x1xf32>
    %23 = math.sqrt %22 : vector<2x128x1xf32>
    %24 = arith.mulf %7, %7 : vector<128x16xf32>
    %cst_16 = arith.constant dense<0.000000e+00> : vector<128xf32>
    %25 = vector.multi_reduction <add>, %24, %cst_16 [1] : vector<128x16xf32> to vector<128xf32>
    %26 = vector.shape_cast %25 : vector<128xf32> to vector<128x1xf32>
    %27 = math.sqrt %26 : vector<128x1xf32>
    %cst_17 = arith.constant 1.000000e-10 : f32
    %28 = vector.broadcast %cst_17 : f32 to vector<2x128x1xf32>
    %29 = arith.addf %23, %28 : vector<2x128x1xf32>
    %30 = tpu.reciprocal %29 {approx = true} : vector<2x128x1xf32> -> vector<2x128x1xf32>
    %31 = arith.mulf %19, %30 : vector<2x128x1xf32>
    %32 = vector.shape_cast %27 : vector<128x1xf32> to vector<1x128x1xf32>
    %cst_18 = arith.constant 1.000000e-10 : f32
    %33 = vector.broadcast %cst_18 : f32 to vector<1x128x1xf32>
    %34 = arith.addf %32, %33 : vector<1x128x1xf32>
    %35 = tpu.reciprocal %34 {approx = true} : vector<1x128x1xf32> -> vector<1x128x1xf32>
    %36 = vector.broadcast %35 : vector<1x128x1xf32> to vector<2x128x1xf32>
    %37 = arith.mulf %31, %36 : vector<2x128x1xf32>
    %cst_19 = arith.constant dense<0xFF800000> : vector<128x1xf32>
    %38 = vector.multi_reduction <maximumf>, %37, %cst_19 [0] : vector<2x128x1xf32> to vector<128x1xf32>
    %39 = vector.shape_cast %38 : vector<128x1xf32> to vector<1x128x1xf32>
    %40 = vector.broadcast %39 : vector<1x128x1xf32> to vector<2x128x1xf32>
    %41 = arith.subf %37, %40 : vector<2x128x1xf32>
    %42 = math.exp %41 : vector<2x128x1xf32>
    %cst_20 = arith.constant dense<0.000000e+00> : vector<128x1xf32>
    %43 = vector.multi_reduction <add>, %42, %cst_20 [0] : vector<2x128x1xf32> to vector<128x1xf32>
    %44 = vector.shape_cast %43 : vector<128x1xf32> to vector<1x128x1xf32>
    %45 = tpu.reciprocal %44 {approx = true} : vector<1x128x1xf32> -> vector<1x128x1xf32>
    %46 = vector.broadcast %45 : vector<1x128x1xf32> to vector<2x128x1xf32>
    %47 = arith.mulf %42, %46 : vector<2x128x1xf32>
    %48 = vector.broadcast %47 : vector<2x128x1xf32> to vector<2x128x32xf32>
    %49 = arith.mulf %48, %2 : vector<2x128x32xf32>
    %cst_21 = arith.constant dense<0.000000e+00> : vector<128x32xf32>
    %50 = vector.multi_reduction <add>, %49, %cst_21 [0] : vector<2x128x32xf32> to vector<128x32xf32>
    %c0_22 = arith.constant 0 : index
    %c0_23 = arith.constant 0 : index
    %c0_24 = arith.constant 0 : index
    %51 = vector.load %arg5[%c0_22, %c0_23, %c0_24] : memref<1x128x32xf32, #tpu.memory_space<vmem>>, vector<1x128x32xf32>
    %52 = vector.shape_cast %51 : vector<1x128x32xf32> to vector<128x32xf32>
    %53 = vector.shape_cast %50 : vector<128x32xf32> to vector<1x128x32xf32>
    tpu.vector_store %arg5[%c0_22, %c0_23, %c0_24], %53 {strides = array<i32>} : memref<1x128x32xf32, #tpu.memory_space<vmem>>, vector<1x128x32xf32>,
    return
  }
  func.func @transform_0(%arg0: i32) -> (i32, i32, i32) {
    %c0_i32 = arith.constant 0 : i32
    %c0_i32_0 = arith.constant 0 : i32
    %c0_i32_1 = arith.constant 0 : i32
    return %c0_i32, %arg0, %c0_i32_0 : i32, i32, i32
  }
  func.func @transform_1(%arg0: i32) -> (i32, i32, i32) {
    %c0_i32 = arith.constant 0 : i32
    %c0_i32_0 = arith.constant 0 : i32
    %c0_i32_1 = arith.constant 0 : i32
    return %c0_i32, %arg0, %c0_i32_0 : i32, i32, i32
  }
  func.func @transform_2(%arg0: i32) -> (i32, i32) {
    %c0_i32 = arith.constant 0 : i32
    %c0_i32_0 = arith.constant 0 : i32
    %c0_i32_1 = arith.constant 0 : i32
    return %c0_i32, %c0_i32_0 : i32, i32
  }
  func.func @transform_3(%arg0: i32) -> (i32, i32) {
    %c0_i32 = arith.constant 0 : i32
    %c0_i32_0 = arith.constant 0 : i32
    %c0_i32_1 = arith.constant 0 : i32
    return %c0_i32, %c0_i32_0 : i32, i32
  }
  func.func @transform_4(%arg0: i32) -> (i32, i32, i32) {
    %c0_i32 = arith.constant 0 : i32
    %c0_i32_0 = arith.constant 0 : i32
    %c0_i32_1 = arith.constant 0 : i32
    return %c0_i32, %arg0, %c0_i32_0 : i32, i32, i32
  }
}

module attributes {stable_mosaic.version = 11 : i64} {
  func.func @kernel(%arg0: i32, %arg1: i32, %arg2: memref<1x128x8xf32, #tpu.memory_space<vmem>>, %arg3: memref<1x128x8xf32, #tpu.memory_space<vmem>>, %arg4: memref<1x256x32xf32, #tpu.memory_space<vmem>>, %arg5: memref<8x128xf32, #tpu.memory_space<vmem>>, %arg6: memref<8x128xf32, #tpu.memory_space<vmem>>, %arg7: memref<1x128xf32, #tpu.memory_space<vmem>>, %arg8: memref<1x128x32xf32, #tpu.memory_space<vmem>>) attributes {dimension_semantics = [#tpu.dimension_semantics<parallel>, #tpu.dimension_semantics<parallel>], iteration_bounds = array<i64: 2, 2>, scalar_prefetch = 0 : i64, scratch_operands = 0 : i64, tpu.core_type = #tpu.core_type<tc>, window_params = [{transform_indices = @transform_0, window_bounds = array<i64: 1, 128, 8>}, {transform_indices = @transform_1, window_bounds = array<i64: 1, 128, 8>}, {transform_indices = @transform_2, window_bounds = array<i64: 1, 256, 32>}, {pipeline_mode = #tpu.pipeline_mode<synchronous>, transform_indices = @transform_3, window_bounds = array<i64: 8, 128>}, {pipeline_mode = #tpu.pipeline_mode<synchronous>, transform_indices = @transform_4, window_bounds = array<i64: 8, 128>}, {pipeline_mode = #tpu.pipeline_mode<synchronous>, transform_indices = @transform_5, window_bounds = array<i64: 1, 128>}, {transform_indices = @transform_6, window_bounds = array<i64: 1, 128, 32>}]} {
    %c0 = arith.constant 0 : index
    %c0_0 = arith.constant 0 : index
    %c0_1 = arith.constant 0 : index
    %0 = vector.load %arg2[%c0, %c0_0, %c0_1] : memref<1x128x8xf32, #tpu.memory_space<vmem>>, vector<1x128x8xf32>
    %1 = vector.shape_cast %0 : vector<1x128x8xf32> to vector<128x8xf32>
    %c0_2 = arith.constant 0 : index
    %c0_3 = arith.constant 0 : index
    %2 = vector.load %arg5[%c0_2, %c0_3] : memref<8x128xf32, #tpu.memory_space<vmem>>, vector<8x128xf32>
    %cst = arith.constant dense<0.000000e+00> : vector<128x128xf32>
    %3 = tpu.matmul %1, %2, %cst {dimension_numbers = #tpu.dot_dimension_numbers<[1], [0], [0], [1], [0, 0, 1, 1], [], []>} : vector<128x8xf32>, vector<8x128xf32>, vector<128x128xf32> -> vector<128x128xf32>
    %c0_4 = arith.constant 0 : index
    %c0_5 = arith.constant 0 : index
    %c0_6 = arith.constant 0 : index
    %4 = vector.load %arg3[%c0_4, %c0_5, %c0_6] : memref<1x128x8xf32, #tpu.memory_space<vmem>>, vector<1x128x8xf32>
    %5 = vector.shape_cast %4 : vector<1x128x8xf32> to vector<128x8xf32>
    %c0_7 = arith.constant 0 : index
    %c0_8 = arith.constant 0 : index
    %6 = vector.load %arg6[%c0_7, %c0_8] : memref<8x128xf32, #tpu.memory_space<vmem>>, vector<8x128xf32>
    %cst_9 = arith.constant dense<0.000000e+00> : vector<128x128xf32>
    %7 = tpu.matmul %5, %6, %cst_9 {dimension_numbers = #tpu.dot_dimension_numbers<[1], [0], [0], [1], [0, 0, 1, 1], [], []>} : vector<128x8xf32>, vector<8x128xf32>, vector<128x128xf32> -> vector<128x128xf32>
    %8 = arith.addf %3, %7 : vector<128x128xf32>
    %c0_10 = arith.constant 0 : index
    %c0_11 = arith.constant 0 : index
    %9 = vector.load %arg7[%c0_10, %c0_11] : memref<1x128xf32, #tpu.memory_space<vmem>>, vector<1x128xf32>
    %10 = vector.broadcast %9 : vector<1x128xf32> to vector<128x128xf32>
    %11 = arith.addf %8, %10 : vector<128x128xf32>
    %12 = vector.extract_strided_slice %11 {offsets = [0, 0], sizes = [128, 1], strides = [1, 1]} : vector<128x128xf32> to vector<128x1xf32>
    %13 = vector.extract_strided_slice %11 {offsets = [0, 1], sizes = [128, 1], strides = [1, 1]} : vector<128x128xf32> to vector<128x1xf32>
    %14 = tpu.iota {dimensions = array<i32: 0>} : vector<128x1xi32>
    %c128_i32 = arith.constant 128 : i32
    %15 = arith.muli %arg1, %c128_i32 : i32
    %16 = vector.broadcast %15 : i32 to vector<128x1xi32>
    %17 = arith.addi %14, %16 : vector<128x1xi32>
    %18 = arith.sitofp %17 : vector<128x1xi32> to vector<128x1xf32>
    %cst_12 = arith.constant 1.600000e+01 : f32
    %19 = vector.broadcast %cst_12 : f32 to vector<128x1xf32>
    %20 = arith.divf %18, %19 : vector<128x1xf32>
    %21 = math.floor %20 : vector<128x1xf32>
    %cst_13 = arith.constant 1.600000e+01 : f32
    %22 = vector.broadcast %cst_13 : f32 to vector<128x1xf32>
    %23 = arith.mulf %21, %22 : vector<128x1xf32>
    %24 = arith.subf %18, %23 : vector<128x1xf32>
    %25 = arith.addf %12, %24 : vector<128x1xf32>
    %cst_14 = arith.constant 7.500000e+00 : f32
    %26 = vector.broadcast %cst_14 : f32 to vector<128x1xf32>
    %27 = arith.divf %25, %26 : vector<128x1xf32>
    %cst_15 = arith.constant 1.000000e+00 : f32
    %28 = vector.broadcast %cst_15 : f32 to vector<128x1xf32>
    %29 = arith.subf %27, %28 : vector<128x1xf32>
    %30 = arith.addf %13, %21 : vector<128x1xf32>
    %cst_16 = arith.constant 7.500000e+00 : f32
    %31 = vector.broadcast %cst_16 : f32 to vector<128x1xf32>
    %32 = arith.divf %30, %31 : vector<128x1xf32>
    %cst_17 = arith.constant 1.000000e+00 : f32
    %33 = vector.broadcast %cst_17 : f32 to vector<128x1xf32>
    %34 = arith.subf %32, %33 : vector<128x1xf32>
    %cst_18 = arith.constant 1.000000e+00 : f32
    %35 = vector.broadcast %cst_18 : f32 to vector<128x1xf32>
    %36 = arith.addf %29, %35 : vector<128x1xf32>
    %cst_19 = arith.constant 1.600000e+01 : f32
    %37 = vector.broadcast %cst_19 : f32 to vector<128x1xf32>
    %38 = arith.mulf %36, %37 : vector<128x1xf32>
    %cst_20 = arith.constant 1.000000e+00 : f32
    %39 = vector.broadcast %cst_20 : f32 to vector<128x1xf32>
    %40 = arith.subf %38, %39 : vector<128x1xf32>
    %cst_21 = arith.constant 5.000000e-01 : f32
    %41 = vector.broadcast %cst_21 : f32 to vector<128x1xf32>
    %42 = arith.mulf %40, %41 : vector<128x1xf32>
    %cst_22 = arith.constant 0.000000e+00 : f32
    %cst_23 = arith.constant 1.500000e+01 : f32
    %43 = vector.broadcast %cst_22 : f32 to vector<128x1xf32>
    %44 = arith.maximumf %43, %42 : vector<128x1xf32>
    %45 = vector.broadcast %cst_23 : f32 to vector<128x1xf32>
    %46 = arith.minimumf %45, %44 : vector<128x1xf32>
    %cst_24 = arith.constant 1.000000e+00 : f32
    %47 = vector.broadcast %cst_24 : f32 to vector<128x1xf32>
    %48 = arith.addf %34, %47 : vector<128x1xf32>
    %cst_25 = arith.constant 1.600000e+01 : f32
    %49 = vector.broadcast %cst_25 : f32 to vector<128x1xf32>
    %50 = arith.mulf %48, %49 : vector<128x1xf32>
    %cst_26 = arith.constant 1.000000e+00 : f32
    %51 = vector.broadcast %cst_26 : f32 to vector<128x1xf32>
    %52 = arith.subf %50, %51 : vector<128x1xf32>
    %cst_27 = arith.constant 5.000000e-01 : f32
    %53 = vector.broadcast %cst_27 : f32 to vector<128x1xf32>
    %54 = arith.mulf %52, %53 : vector<128x1xf32>
    %cst_28 = arith.constant 0.000000e+00 : f32
    %cst_29 = arith.constant 1.500000e+01 : f32
    %55 = vector.broadcast %cst_28 : f32 to vector<128x1xf32>
    %56 = arith.maximumf %55, %54 : vector<128x1xf32>
    %57 = vector.broadcast %cst_29 : f32 to vector<128x1xf32>
    %58 = arith.minimumf %57, %56 : vector<128x1xf32>
    %59 = math.floor %46 : vector<128x1xf32>
    %60 = math.floor %58 : vector<128x1xf32>
    %61 = arith.subf %46, %59 : vector<128x1xf32>
    %cst_30 = arith.constant 1.000000e+00 : f32
    %62 = vector.broadcast %cst_30 : f32 to vector<128x1xf32>
    %63 = arith.subf %62, %61 : vector<128x1xf32>
    %64 = arith.subf %58, %60 : vector<128x1xf32>
    %cst_31 = arith.constant 1.000000e+00 : f32
    %65 = vector.broadcast %cst_31 : f32 to vector<128x1xf32>
    %66 = arith.subf %65, %64 : vector<128x1xf32>
    %67 = arith.fptosi %60 : vector<128x1xf32> to vector<128x1xi32>
    %c16_i32 = arith.constant 16 : i32
    %68 = vector.broadcast %c16_i32 : i32 to vector<128x1xi32>
    %69 = arith.muli %67, %68 : vector<128x1xi32>
    %70 = arith.fptosi %59 : vector<128x1xf32> to vector<128x1xi32>
    %71 = arith.addi %69, %70 : vector<128x1xi32>
    %72 = tpu.iota {dimensions = array<i32: 1>} : vector<128x256xi32>
    %73 = vector.broadcast %71 : vector<128x1xi32> to vector<128x256xi32>
    %74 = arith.subi %72, %73 : vector<128x256xi32>
    %c0_i32 = arith.constant 0 : i32
    %75 = vector.broadcast %c0_i32 : i32 to vector<128x256xi32>
    %76 = arith.cmpi eq, %74, %75 : vector<128x256xi32>
    %77 = arith.mulf %66, %63 : vector<128x1xf32>
    %c1_i32 = arith.constant 1 : i32
    %78 = vector.broadcast %c1_i32 : i32 to vector<128x256xi32>
    %79 = arith.cmpi eq, %74, %78 : vector<128x256xi32>
    %80 = arith.mulf %66, %61 : vector<128x1xf32>
    %c16_i32_32 = arith.constant 16 : i32
    %81 = vector.broadcast %c16_i32_32 : i32 to vector<128x256xi32>
    %82 = arith.cmpi eq, %74, %81 : vector<128x256xi32>
    %83 = arith.mulf %64, %63 : vector<128x1xf32>
    %c17_i32 = arith.constant 17 : i32
    %84 = vector.broadcast %c17_i32 : i32 to vector<128x256xi32>
    %85 = arith.cmpi eq, %74, %84 : vector<128x256xi32>
    %86 = arith.mulf %64, %61 : vector<128x1xf32>
    %cst_33 = arith.constant 0.000000e+00 : f32
    %87 = vector.shape_cast %86 : vector<128x1xf32> to vector<128x1xf32>
    %88 = vector.broadcast %87 : vector<128x1xf32> to vector<128x256xf32>
    %89 = vector.broadcast %cst_33 : f32 to vector<128x256xf32>
    %90 = arith.select %85, %88, %89 : vector<128x256xi1>, vector<128x256xf32>
    %91 = vector.shape_cast %83 : vector<128x1xf32> to vector<128x1xf32>
    %92 = vector.broadcast %91 : vector<128x1xf32> to vector<128x256xf32>
    %93 = arith.select %82, %92, %90 : vector<128x256xi1>, vector<128x256xf32>
    %94 = vector.shape_cast %80 : vector<128x1xf32> to vector<128x1xf32>
    %95 = vector.broadcast %94 : vector<128x1xf32> to vector<128x256xf32>
    %96 = arith.select %79, %95, %93 : vector<128x256xi1>, vector<128x256xf32>
    %97 = vector.shape_cast %77 : vector<128x1xf32> to vector<128x1xf32>
    %98 = vector.broadcast %97 : vector<128x1xf32> to vector<128x256xf32>
    %99 = arith.select %76, %98, %96 : vector<128x256xi1>, vector<128x256xf32>
    %100 = arith.truncf %99 : vector<128x256xf32> to vector<128x256xbf16>
    %c0_34 = arith.constant 0 : index
    %c0_35 = arith.constant 0 : index
    %c0_36 = arith.constant 0 : index
    %101 = vector.load %arg4[%c0_34, %c0_35, %c0_36] : memref<1x256x32xf32, #tpu.memory_space<vmem>>, vector<1x256x32xf32>
    %102 = vector.shape_cast %101 : vector<1x256x32xf32> to vector<256x32xf32>
    %103 = arith.truncf %102 : vector<256x32xf32> to vector<256x32xbf16>
    %cst_37 = arith.constant dense<0.000000e+00> : vector<128x32xf32>
    %104 = tpu.matmul %100, %103, %cst_37 {dimension_numbers = #tpu.dot_dimension_numbers<[1], [0], [0], [1], [0, 0, 1, 1], [], []>} : vector<128x256xbf16>, vector<256x32xbf16>, vector<128x32xf32> -> vector<128x32xf32>
    %c0_38 = arith.constant 0 : index
    %c0_39 = arith.constant 0 : index
    %c0_40 = arith.constant 0 : index
    %105 = vector.load %arg8[%c0_38, %c0_39, %c0_40] : memref<1x128x32xf32, #tpu.memory_space<vmem>>, vector<1x128x32xf32>
    %106 = vector.shape_cast %105 : vector<1x128x32xf32> to vector<128x32xf32>
    %107 = vector.shape_cast %104 : vector<128x32xf32> to vector<1x128x32xf32>
    tpu.vector_store %arg8[%c0_38, %c0_39, %c0_40], %107 {strides = array<i32>} : memref<1x128x32xf32, #tpu.memory_space<vmem>>, vector<1x128x32xf32>,
    return
  }
  func.func @transform_0(%arg0: i32, %arg1: i32) -> (i32, i32, i32) {
    %c0_i32 = arith.constant 0 : i32
    %c0_i32_0 = arith.constant 0 : i32
    %c0_i32_1 = arith.constant 0 : i32
    return %c0_i32, %arg1, %c0_i32_0 : i32, i32, i32
  }
  func.func @transform_1(%arg0: i32, %arg1: i32) -> (i32, i32, i32) {
    %c1_i32 = arith.constant 1 : i32
    %0 = arith.addi %arg0, %c1_i32 : i32
    %c0_i32 = arith.constant 0 : i32
    %c0_i32_0 = arith.constant 0 : i32
    return %0, %arg1, %c0_i32 : i32, i32, i32
  }
  func.func @transform_2(%arg0: i32, %arg1: i32) -> (i32, i32, i32) {
    %c0_i32 = arith.constant 0 : i32
    %c0_i32_0 = arith.constant 0 : i32
    %c0_i32_1 = arith.constant 0 : i32
    return %arg0, %c0_i32, %c0_i32_0 : i32, i32, i32
  }
  func.func @transform_3(%arg0: i32, %arg1: i32) -> (i32, i32) {
    %c0_i32 = arith.constant 0 : i32
    %c0_i32_0 = arith.constant 0 : i32
    %c0_i32_1 = arith.constant 0 : i32
    return %c0_i32, %c0_i32_0 : i32, i32
  }
  func.func @transform_4(%arg0: i32, %arg1: i32) -> (i32, i32) {
    %c0_i32 = arith.constant 0 : i32
    %c0_i32_0 = arith.constant 0 : i32
    %c0_i32_1 = arith.constant 0 : i32
    return %c0_i32, %c0_i32_0 : i32, i32
  }
  func.func @transform_5(%arg0: i32, %arg1: i32) -> (i32, i32) {
    %c0_i32 = arith.constant 0 : i32
    %c0_i32_0 = arith.constant 0 : i32
    %c0_i32_1 = arith.constant 0 : i32
    return %c0_i32, %c0_i32_0 : i32, i32
  }
  func.func @transform_6(%arg0: i32, %arg1: i32) -> (i32, i32, i32) {
    %c0_i32 = arith.constant 0 : i32
    %c0_i32_0 = arith.constant 0 : i32
    return %arg0, %arg1, %c0_i32 : i32, i32, i32
  }
}

</mosaic_0001>

<llo_original>
// kernel: fgfa_forward.3
$region0: #{fgfa_forward.3}
  #allocation0 [shape = 'u32[]', space=smem, size = 0x4, offset = 0x4, fixed_abs, tag = 'smem constant byte address 0x4 - core index']
  #allocation1 [shape = 'u32[72,128]{1,0:T(1,128)}', space=vmem, size = 0x9000, scoped, tag = 'internal scratch']
  %s0 = inlined_call_operand.vmem [shape: f32[3,256,8], index: 0, kind: input, shape index: {}]
  %s1 = inlined_call_operand.vmem [shape: f32[8,32], index: 1, kind: input, shape index: {}]
  %s2 = inlined_call_operand.vmem [shape: f32[1,32], index: 2, kind: input, shape index: {}]
  %s3 = inlined_call_operand.vmem [shape: f32[3,256,32], index: 3, kind: output, shape index: {}]
  %s4 = sld [smem:[#allocation0]]
  $region45: #{fgfa_forward.3} parent=0
    _
  %s6 = ssub.s32 1, %s4
  %s7 = scalar_select 0, %s6, %s4
  loop: start=0, step=1, limit=8
  $region2: #{fgfa_forward.3} parent=0 // loop_pre_header
    _
  $region3: #{fgfa_forward.3} parent=0 // loop_header
    %s9 = sphi 0, %s13
    %p10 = scmp.ge.s32.totalorder %s9, 8
    %s16 = sphi 0, %s28
    %s17 = sphi 0, %s24
    %s18 = sphi 0, %s16
    %s19 = sphi 0, %s17
    %s20 = sphi 0, %s18
    %s21 = sphi 0, %s19
    %s33 = sphi 0, %s35
    %s36 = sphi 0, %s33
    %s37 = sphi 0, %s36
    %s53 = sphi 0, %s37
    %s57 = sphi 0, %s57
    %s59 = sphi 0, %s57
    %s60 = sphi 0, %s59
    %s74 = sphi 0, %s60
    %s78 = sphi 0, %s78
    %s80 = sphi 0, %s78
    %s81 = sphi 0, %s80
    %s95 = sphi 0, %s81
    %s103 = sphi 0, %s105
    %s106 = sphi 0, %s103
    %s107 = sphi 0, %s106
    %s123 = sphi 0, %s107
  $region4: #{fgfa_forward.3} parent=0 // loop_header_branch
    %12 = sbr.rel (%p10) target = $region8
  $region5: #{fgfa_forward.3} parent=0 // loop_body
    %s14 = ssub.s32 %s9, 1
    %s15 = ssub.s32 %s9, 2
    %s22 = sadd.s32 1, %s17
    %p23 = scmp.ge.s32.totalorder %s22, 2
    %s24 = scalar_select %p23, 0, %s22
    %s25 = sadd.s32 1, %s16
    %s26 = scalar_select %p23, %s25, %s16
    %p27 = scmp.ge.s32.totalorder %s26, 3
    %s28 = scalar_select %p27, 0, %s26
    %s29 = ssub.s32 %s16, %s28
    %s30 = ssub.s32 %s17, %s24
    %s31 = sor.u32 %s29, %s30
    %p32 = scmp.eq.s32.totalorder %s31, 0
    %s34 = sadd.s32 %s33, 1
    %s35 = scalar_select %p32, %s33, %s34
    %p38 = pneg %p32
    %p39 = scmp.eq.s32.totalorder %s9, 5
    %p40 = por %p38, %p39
    %p41 = scmp.ne.s32.totalorder %s33, %s36
    %p42 = scmp.eq.s32.totalorder %s9, 0
    %p43 = por %p41, %p42
    %p44 = scmp.ne.s32.totalorder %s33, %s36
    %p45 = scmp.eq.s32.totalorder %s14, 5
    %p46 = por %p44, %p45
    %p47 = scmp.ne.s32.totalorder %s36, %s37
    %p48 = scmp.eq.s32.totalorder %s14, 0
    %p49 = por %p47, %p48
    %p50 = scmp.ne.s32.totalorder %s36, %s37
    %p51 = scmp.eq.s32.totalorder %s15, 5
    %p52 = por %p50, %p51
    %p54 = scmp.ne.s32.totalorder %s37, %s53
    %p55 = scmp.eq.s32.totalorder %s15, 0
    %p56 = por %p54, %p55
    %s58 = sadd.s32 %s57, 1
    %p61 = scmp.eq.s32.totalorder %s9, 5
    %p62 = scmp.ne.s32.totalorder %s57, %s59
    %p63 = scmp.eq.s32.totalorder %s9, 0
    %p64 = por %p62, %p63
    %p65 = scmp.ne.s32.totalorder %s57, %s59
    %p66 = scmp.eq.s32.totalorder %s14, 5
    %p67 = por %p65, %p66
    %p68 = scmp.ne.s32.totalorder %s59, %s60
    %p69 = scmp.eq.s32.totalorder %s14, 0
    %p70 = por %p68, %p69
    %p71 = scmp.ne.s32.totalorder %s59, %s60
    %p72 = scmp.eq.s32.totalorder %s15, 5
    %p73 = por %p71, %p72
    %p75 = scmp.ne.s32.totalorder %s60, %s74
    %p76 = scmp.eq.s32.totalorder %s15, 0
    %p77 = por %p75, %p76
    %s79 = sadd.s32 %s78, 1
    %p82 = scmp.eq.s32.totalorder %s9, 5
    %p83 = scmp.ne.s32.totalorder %s78, %s80
    %p84 = scmp.eq.s32.totalorder %s9, 0
    %p85 = por %p83, %p84
    %p86 = scmp.ne.s32.totalorder %s78, %s80
    %p87 = scmp.eq.s32.totalorder %s14, 5
    %p88 = por %p86, %p87
    %p89 = scmp.ne.s32.totalorder %s80, %s81
    %p90 = scmp.eq.s32.totalorder %s14, 0
    %p91 = por %p89, %p90
    %p92 = scmp.ne.s32.totalorder %s80, %s81
    %p93 = scmp.eq.s32.totalorder %s15, 5
    %p94 = por %p92, %p93
    %p96 = scmp.ne.s32.totalorder %s81, %s95
    %p97 = scmp.eq.s32.totalorder %s15, 0
    %p98 = por %p96, %p97
    %s99 = ssub.s32 %s16, %s28
    %s100 = ssub.s32 %s17, %s24
    %s101 = sor.u32 %s99, %s100
    %p102 = scmp.eq.s32.totalorder %s101, 0
    %s104 = sadd.s32 %s103, 1
    %s105 = scalar_select %p102, %s103, %s104
    %p108 = pneg %p102
    %p109 = scmp.eq.s32.totalorder %s9, 5
    %p110 = por %p108, %p109
    %p111 = scmp.ne.s32.totalorder %s103, %s106
    %p112 = scmp.eq.s32.totalorder %s9, 0
    %p113 = por %p111, %p112
    %p114 = scmp.ne.s32.totalorder %s103, %s106
    %p115 = scmp.eq.s32.totalorder %s14, 5
    %p116 = por %p114, %p115
    %p117 = scmp.ne.s32.totalorder %s106, %s107
    %p118 = scmp.eq.s32.totalorder %s14, 0
    %p119 = por %p117, %p118
    %p120 = scmp.ne.s32.totalorder %s106, %s107
    %p121 = scmp.eq.s32.totalorder %s15, 5
    %p122 = por %p120, %p121
    %p124 = scmp.ne.s32.totalorder %s107, %s123
    %p125 = scmp.eq.s32.totalorder %s15, 0
    %p126 = por %p124, %p125
    %p127 = scmp.le.s32.totalorder 1, %s9
    %p128 = scmp.lt.s32.totalorder %s9, 7
    %p129 = pnand %p127, %p128
    %p130 = pneg %p129
    // Predicated region
    $region9: #{fgfa_forward.3} parent=5 // pred_check
      _
    $region10: #{fgfa_forward.3} parent=5 // pred_check_branch
      %132 = sbr.rel (%p129) target = $region12
    $region11: #{fgfa_forward.3} parent=5 // pred_region
      %s133 = ssub.s32 %s9, 1
      // Predicated region
      $region13: #{fgfa_forward.3} parent=11 // pred_check
        %p134 = pneg %p70
      $region14: #{fgfa_forward.3} parent=11 // pred_check_branch
        %136 = sbr.rel (%p134) target = $region16
      $region15: #{fgfa_forward.3} parent=11 // pred_region
        _
      $region16: #{fgfa_forward.3} parent=11 // pred_fallthru
        _
      // Predicated region
      $region17: #{fgfa_forward.3} parent=11 // pred_check
        %p137 = pneg %p91
      $region18: #{fgfa_forward.3} parent=11 // pred_check_branch
        %139 = sbr.rel (%p137) target = $region20
      $region19: #{fgfa_forward.3} parent=11 // pred_region
        _
      $region20: #{fgfa_forward.3} parent=11 // pred_fallthru
        _
    $region12: #{fgfa_forward.3} parent=5 // pred_fallthru
      _
    %p140 = scmp.lt.s32.totalorder %s9, 6
    // Predicated region
    $region21: #{fgfa_forward.3} parent=5 // pred_check
      %p141 = pneg %p140
    $region22: #{fgfa_forward.3} parent=5 // pred_check_branch
      %143 = sbr.rel (%p141) target = $region24
    $region23: #{fgfa_forward.3} parent=5 // pred_region
      // Predicated region
      $region25: #{fgfa_forward.3} parent=23 // pred_check
        %p144 = pneg %p43
      $region26: #{fgfa_forward.3} parent=23 // pred_check_branch
        %146 = sbr.rel (%p144) target = $region28
      $region27: #{fgfa_forward.3} parent=23 // pred_region
        %s147 = smul.u32 16, %s17
        %p148 = scmp.lt.s32.totalorder %s16, 2
        %s149 = scalar_select %p148, %s16, 2
        %p150 = scmp.lt.s32.totalorder %s147, 31
        %s151 = scalar_select %p150, %s147, 31
        %s152 = smul.addr %s149, 32
        %s153 = sadd.s32 %s151, %s152
        %s154 = smul.addr %s153, 8
        %s155 = scalar_lea.vmem %s0, %s154
        %s156 = smul.u32 16, %s17
      $region28: #{fgfa_forward.3} parent=23 // pred_fallthru
        _
    $region24: #{fgfa_forward.3} parent=5 // pred_fallthru
      _
    %p157 = scmp.le.s32.totalorder 1, %s9
    %p158 = scmp.lt.s32.totalorder %s9, 7
    %p159 = pnand %p157, %p158
    %p160 = pneg %p159
    // Predicated region
    $region29: #{fgfa_forward.3} parent=5 // pred_check
      _
    $region30: #{fgfa_forward.3} parent=5 // pred_check_branch
      %162 = sbr.rel (%p159) target = $region32
    $region31: #{fgfa_forward.3} parent=5 // pred_region
      %s163 = ssub.s32 %s9, 1
      %s164 = smul.u32 16, %s19
      %p165 = scmp.lt.s32.totalorder %s18, 2
      %s166 = scalar_select %p165, %s18, 2
      %p167 = scmp.lt.s32.totalorder %s164, 31
      %s168 = scalar_select %p167, %s164, 31
      %s169 = smul.addr %s166, 32
      %s170 = sadd.s32 %s168, %s169
      %s171 = smul.addr %s170, 8
      %s172 = scalar_lea.vmem %s0, %s171
      %p173 = pneg %p49
      %p174 = pneg %p46
      %p175 = pneg %p70
      %p176 = pneg %p67
      %p177 = pneg %p91
      %p178 = pneg %p88
      %p179 = pneg %p119
      %p180 = pneg %p116
      %s181 = smul.u32 16, %s19
      %p182 = scmp.lt.s32.totalorder %s18, 2
      %s183 = scalar_select %p182, %s18, 2
      %p184 = scmp.lt.s32.totalorder %s181, 31
      %s185 = scalar_select %p184, %s181, 31
      %s186 = smul.addr %s183, 32
      %s187 = sadd.s32 %s185, %s186
      %s188 = smul.addr %s187, 8
      %s189 = scalar_lea.vmem %s3, %s188
      %s190 = smul.u32 16, %s19
      %p191 = scmp.lt.s32.totalorder %s18, 2
      %s192 = scalar_select %p191, %s18, 2
      %p193 = scmp.lt.s32.totalorder %s190, 31
      %s194 = scalar_select %p193, %s190, 31
      %s195 = smul.addr %s192, 32
      %s196 = sadd.s32 %s194, %s195
      %s197 = smul.addr %s196, 8
      %s198 = scalar_lea.vmem %s0, %s197
      %s199 = smul.u32 16, %s19
      %s200 = smul.u32 16, %s19
      %p201 = scmp.lt.s32.totalorder %s18, 2
      %s202 = scalar_select %p201, %s18, 2
      %p203 = scmp.lt.s32.totalorder %s200, 31
      %s204 = scalar_select %p203, %s200, 31
      %s205 = smul.addr %s202, 32
      %s206 = sadd.s32 %s204, %s205
      %s207 = smul.addr %s206, 8
      %s208 = scalar_lea.vmem %s3, %s207
      %s209 = smul.u32 16, %s19
      %v210 = vld [vmem:[%s198] sm:$0xff]
      %v211 = vld [vmem:[%s198 + $0x8] sm:$0xff]
      %v212 = vld [vmem:[%s198 + $0x10] sm:$0xff]
      %v213 = vld [vmem:[%s198 + $0x18] sm:$0xff]
      %v214 = vld [vmem:[%s198 + $0x20] sm:$0xff]
      %v215 = vld [vmem:[%s198 + $0x28] sm:$0xff]
      %v216 = vld [vmem:[%s198 + $0x30] sm:$0xff]
      %v217 = vld [vmem:[%s198 + $0x38] sm:$0xff]
      %v218 = vld [vmem:[%s198 + $0x40] sm:$0xff]
      %v219 = vld [vmem:[%s198 + $0x48] sm:$0xff]
      %v220 = vld [vmem:[%s198 + $0x50] sm:$0xff]
      %v221 = vld [vmem:[%s198 + $0x58] sm:$0xff]
      %v222 = vld [vmem:[%s198 + $0x60] sm:$0xff]
      %v223 = vld [vmem:[%s198 + $0x68] sm:$0xff]
      %v224 = vld [vmem:[%s198 + $0x70] sm:$0xff]
      %v225 = vld [vmem:[%s198 + $0x78] sm:$0xff]
      %v226 = vld [vmem:[%s1] sm:$0xff]
      %v227 = vld [vmem:[%s2] sm:$0x1]
      %v229 = vperm.slane %v227, 0
      %vm231 = vcmask 64512
      %v233 = vsel %vm231, %v210, 0
      %v236 = vsel %vm231, %v211, 0
      %v239 = vsel %vm231, %v212, 0
      %v242 = vsel %vm231, %v213, 0
      %v245 = vsel %vm231, %v214, 0
      %v248 = vsel %vm231, %v215, 0
      %v251 = vsel %vm231, %v216, 0
      %v254 = vsel %vm231, %v217, 0
      %v257 = vsel %vm231, %v218, 0
      %v260 = vsel %vm231, %v219, 0
      %v263 = vsel %vm231, %v220, 0
      %v266 = vsel %vm231, %v221, 0
      %v269 = vsel %vm231, %v222, 0
      %v272 = vsel %vm231, %v223, 0
      %v275 = vsel %vm231, %v224, 0
      %v278 = vsel %vm231, %v225, 0
      %280 = vmatpush.msra.mxu0 0.0
      %281 = vmatpush.msra.mxu0 0.0
      %282 = vmatpush.msra.mxu0 0.0
      %283 = vmatpush.msra.mxu0 0.0
      %284 = vmatpush.msra.mxu0 0.0
      %285 = vmatpush.msra.mxu0 0.0
      %286 = vmatpush.msra.mxu0 0.0
      %287 = vmatpush.msra.mxu0 0.0
      %288 = vmatpush.msra.mxu0 0.0
      %289 = vmatpush.msra.mxu0 0.0
      %290 = vmatpush.msra.mxu0 0.0
      %291 = vmatpush.msra.mxu0 0.0
      %292 = vmatpush.msra.mxu0 0.0
      %293 = vmatpush.msra.mxu0 0.0
      %294 = vmatpush.msra.mxu0 0.0
      %295 = vmatpush.msra.mxu0 %v226
      %296 = vmatmul.f32.gmra.mxu0 %v233
      %v297 = vpop.f32.mrf.mxu0
      %v298 = vadd.f32 %v229, %v297
      %299 = vmatmul.f32.gmra.mxu0 %v236
      %v300 = vpop.f32.mrf.mxu0
      %v301 = vadd.f32 %v229, %v300
      %302 = vmatmul.f32.gmra.mxu0 %v239
      %v303 = vpop.f32.mrf.mxu0
      %v304 = vadd.f32 %v229, %v303
      %305 = vmatmul.f32.gmra.mxu0 %v242
      %v306 = vpop.f32.mrf.mxu0
      %v307 = vadd.f32 %v229, %v306
      %308 = vmatmul.f32.gmra.mxu0 %v245
      %v309 = vpop.f32.mrf.mxu0
      %v310 = vadd.f32 %v229, %v309
      %311 = vmatmul.f32.gmra.mxu0 %v248
      %v312 = vpop.f32.mrf.mxu0
      %v313 = vadd.f32 %v229, %v312
      %314 = vmatmul.f32.gmra.mxu0 %v251
      %v315 = vpop.f32.mrf.mxu0
      %v316 = vadd.f32 %v229, %v315
      %317 = vmatmul.f32.gmra.mxu0 %v254
      %v318 = vpop.f32.mrf.mxu0
      %v319 = vadd.f32 %v229, %v318
      %320 = vmatmul.f32.gmra.mxu0 %v257
      %v321 = vpop.f32.mrf.mxu0
      %v322 = vadd.f32 %v229, %v321
      %323 = vmatmul.f32.gmra.mxu0 %v260
      %v324 = vpop.f32.mrf.mxu0
      %v325 = vadd.f32 %v229, %v324
      %326 = vmatmul.f32.gmra.mxu0 %v263
      %v327 = vpop.f32.mrf.mxu0
      %v328 = vadd.f32 %v229, %v327
      %329 = vmatmul.f32.gmra.mxu0 %v266
      %v330 = vpop.f32.mrf.mxu0
      %v331 = vadd.f32 %v229, %v330
      %332 = vmatmul.f32.gmra.mxu0 %v269
      %v333 = vpop.f32.mrf.mxu0
      %v334 = vadd.f32 %v229, %v333
      %335 = vmatmul.f32.gmra.mxu0 %v272
      %v336 = vpop.f32.mrf.mxu0
      %v337 = vadd.f32 %v229, %v336
      %338 = vmatmul.f32.gmra.mxu0 %v275
      %v339 = vpop.f32.mrf.mxu0
      %v340 = vadd.f32 %v229, %v339
      %341 = vmatmul.f32.gmra.mxu0 %v278
      %v342 = vpop.f32.mrf.mxu0
      %v343 = vadd.f32 %v229, %v342
      %344 = vdwg.mxu0
      %vm345 = vcmask 261120
      %346 = vst.msk [vmem:[%s208] sm:$0xff] %vm345, %v298
      %347 = vst.msk [vmem:[%s208 + $0x8] sm:$0xff] %vm345, %v301
      %348 = vst.msk [vmem:[%s208 + $0x10] sm:$0xff] %vm345, %v304
      %349 = vst.msk [vmem:[%s208 + $0x18] sm:$0xff] %vm345, %v307
      %350 = vst.msk [vmem:[%s208 + $0x20] sm:$0xff] %vm345, %v310
      %351 = vst.msk [vmem:[%s208 + $0x28] sm:$0xff] %vm345, %v313
      %352 = vst.msk [vmem:[%s208 + $0x30] sm:$0xff] %vm345, %v316
      %353 = vst.msk [vmem:[%s208 + $0x38] sm:$0xff] %vm345, %v319
      %354 = vst.msk [vmem:[%s208 + $0x40] sm:$0xff] %vm345, %v322
      %355 = vst.msk [vmem:[%s208 + $0x48] sm:$0xff] %vm345, %v325
      %356 = vst.msk [vmem:[%s208 + $0x50] sm:$0xff] %vm345, %v328
      %357 = vst.msk [vmem:[%s208 + $0x58] sm:$0xff] %vm345, %v331
      %358 = vst.msk [vmem:[%s208 + $0x60] sm:$0xff] %vm345, %v334
      %359 = vst.msk [vmem:[%s208 + $0x68] sm:$0xff] %vm345, %v337
      %360 = vst.msk [vmem:[%s208 + $0x70] sm:$0xff] %vm345, %v340
      %361 = vst.msk [vmem:[%s208 + $0x78] sm:$0xff] %vm345, %v343
      %s362 = smul.u32 16, %s19
      %p363 = scmp.lt.s32.totalorder %s18, 2
      %s364 = scalar_select %p363, %s18, 2
      %p365 = scmp.lt.s32.totalorder %s362, 31
      %s366 = scalar_select %p365, %s362, 31
      %s367 = smul.addr %s364, 32
      %s368 = sadd.s32 %s366, %s367
      %s369 = smul.addr %s368, 8
      %s370 = scalar_lea.vmem %s3, %s369
      // Predicated region
      $region33: #{fgfa_forward.3} parent=31 // pred_check
        %p371 = pneg %p116
      $region34: #{fgfa_forward.3} parent=31 // pred_check_branch
        %373 = sbr.rel (%p371) target = $region36
      $region35: #{fgfa_forward.3} parent=31 // pred_region
        %s374 = smul.u32 16, %s19
      $region36: #{fgfa_forward.3} parent=31 // pred_fallthru
        _
    $region32: #{fgfa_forward.3} parent=5 // pred_fallthru
      _
    %p375 = scmp.le.s32.totalorder 2, %s9
    // Predicated region
    $region37: #{fgfa_forward.3} parent=5 // pred_check
      %p376 = pneg %p375
    $region38: #{fgfa_forward.3} parent=5 // pred_check_branch
      %378 = sbr.rel (%p376) target = $region40
    $region39: #{fgfa_forward.3} parent=5 // pred_region
      %s379 = ssub.s32 %s9, 2
      // Predicated region
      $region41: #{fgfa_forward.3} parent=39 // pred_check
        %p380 = pneg %p122
      $region42: #{fgfa_forward.3} parent=39 // pred_check_branch
        %382 = sbr.rel (%p380) target = $region44
      $region43: #{fgfa_forward.3} parent=39 // pred_region
        %s383 = smul.u32 16, %s21
        %p384 = scmp.lt.s32.totalorder %s20, 2
        %s385 = scalar_select %p384, %s20, 2
        %p386 = scmp.lt.s32.totalorder %s383, 31
        %s387 = scalar_select %p386, %s383, 31
        %s388 = smul.addr %s385, 32
        %s389 = sadd.s32 %s387, %s388
        %s390 = smul.addr %s389, 8
        %s391 = scalar_lea.vmem %s3, %s390
      $region44: #{fgfa_forward.3} parent=39 // pred_fallthru
        _
    $region40: #{fgfa_forward.3} parent=5 // pred_fallthru
      _
  $region6: #{fgfa_forward.3} parent=0 // loop_footer
    %s13 = sadd.s32 1, %s9
  $region7: #{fgfa_forward.3} parent=0 // loop_footer_branch
    %8 = sbr.rel target = $region3
  $region8: #{fgfa_forward.3} parent=0 // loop_exit
    _

// kernel: fgfa_forward.5
$region0: #{fgfa_forward.5}
  #allocation0 [shape = 'u32[]', space=smem, size = 0x4, offset = 0x4, fixed_abs, tag = 'smem constant byte address 0x4 - core index']
  #allocation1 [shape = 'u32[72,128]{1,0:T(1,128)}', space=vmem, size = 0x9000, scoped, tag = 'internal scratch']
  %s0 = inlined_call_operand.vmem [shape: f32[1,256,32], index: 0, kind: input, shape index: {}]
  %s1 = inlined_call_operand.vmem [shape: f32[2,256,32], index: 1, kind: input, shape index: {}]
  %s2 = inlined_call_operand.vmem [shape: f32[32,16], index: 2, kind: input, shape index: {}]
  %s3 = inlined_call_operand.vmem [shape: f32[1,16], index: 3, kind: input, shape index: {}]
  %s4 = inlined_call_operand.hbm [shape: f32[1,256,32], index: 4, kind: output, shape index: {}]
  %s5 = sld [smem:[#allocation0]]
  $region87: #{fgfa_forward.5} parent=0
    _
  %s7 = ssub.s32 1, %s5
  %s8 = scalar_select 0, %s7, %s5
  $region1: #{fgfa_forward.5} parent=0
    #allocation2 [shape = 'u8[262144]{0}', space=vmem, size = 0x40000, scoped, tag = 'input window, operand 1']
    #allocation3 [shape = 'u8[131072]{0}', space=vmem, size = 0x20000, scoped, tag = 'output window, operand 0']
    #allocation4 [shape = 's32[2]{0}', space=sflag, size = 0x8, scoped, tag = 'scoped memory for fgfa_forward.5']
    %9 = vsyncpa [#allocation4], 0
    %s10 = scalar_lea.sflag [#allocation4], 1
    %11 = vsyncpa %s10, 0
    loop: start=0, step=1, limit=4
    $region2: #{fgfa_forward.5} parent=1 // loop_pre_header
      _
    $region3: #{fgfa_forward.5} parent=1 // loop_header
      %s13 = sphi 0, %s17
      %p14 = scmp.ge.s32.totalorder %s13, 4
      %s23 = sphi 0, %s25
      %s26 = sphi 0, %s23
      %s27 = sphi 0, %s26
      %s43 = sphi 0, %s27
      %s49 = sphi 0, %s51
      %s52 = sphi 0, %s49
      %s53 = sphi 0, %s52
      %s69 = sphi 0, %s53
      %s73 = sphi 0, %s73
      %s75 = sphi 0, %s73
      %s76 = sphi 0, %s75
      %s90 = sphi 0, %s76
      %s94 = sphi 0, %s94
      %s96 = sphi 0, %s94
      %s97 = sphi 0, %s96
      %s111 = sphi 0, %s97
      %s117 = sphi 0, %s119
      %s120 = sphi 0, %s117
      %s121 = sphi 0, %s120
      %s137 = sphi 0, %s121
    $region4: #{fgfa_forward.5} parent=1 // loop_header_branch
      %16 = sbr.rel (%p14) target = $region8
    $region5: #{fgfa_forward.5} parent=1 // loop_body
      %s18 = ssub.s32 %s13, 1
      %s19 = ssub.s32 %s13, 2
      %s20 = sadd.s32 %s13, 1
      %s21 = ssub.s32 %s13, %s20
      %p22 = scmp.eq.s32.totalorder %s21, 0
      %s24 = sadd.s32 %s23, 1
      %s25 = scalar_select %p22, %s23, %s24
      %p28 = pneg %p22
      %p29 = scmp.eq.s32.totalorder %s13, 1
      %p30 = por %p28, %p29
      %p31 = scmp.ne.s32.totalorder %s23, %s26
      %p32 = scmp.eq.s32.totalorder %s13, 0
      %p33 = por %p31, %p32
      %p34 = scmp.ne.s32.totalorder %s23, %s26
      %p35 = scmp.eq.s32.totalorder %s18, 1
      %p36 = por %p34, %p35
      %p37 = scmp.ne.s32.totalorder %s26, %s27
      %p38 = scmp.eq.s32.totalorder %s18, 0
      %p39 = por %p37, %p38
      %p40 = scmp.ne.s32.totalorder %s26, %s27
      %p41 = scmp.eq.s32.totalorder %s19, 1
      %p42 = por %p40, %p41
      %p44 = scmp.ne.s32.totalorder %s27, %s43
      %p45 = scmp.eq.s32.totalorder %s19, 0
      %p46 = por %p44, %p45
      %s47 = ssub.s32 %s13, %s20
      %p48 = scmp.eq.s32.totalorder %s47, 0
      %s50 = sadd.s32 %s49, 1
      %s51 = scalar_select %p48, %s49, %s50
      %p54 = pneg %p48
      %p55 = scmp.eq.s32.totalorder %s13, 1
      %p56 = por %p54, %p55
      %p57 = scmp.ne.s32.totalorder %s49, %s52
      %p58 = scmp.eq.s32.totalorder %s13, 0
      %p59 = por %p57, %p58
      %p60 = scmp.ne.s32.totalorder %s49, %s52
      %p61 = scmp.eq.s32.totalorder %s18, 1
      %p62 = por %p60, %p61
      %p63 = scmp.ne.s32.totalorder %s52, %s53
      %p64 = scmp.eq.s32.totalorder %s18, 0
      %p65 = por %p63, %p64
      %p66 = scmp.ne.s32.totalorder %s52, %s53
      %p67 = scmp.eq.s32.totalorder %s19, 1
      %p68 = por %p66, %p67
      %p70 = scmp.ne.s32.totalorder %s53, %s69
      %p71 = scmp.eq.s32.totalorder %s19, 0
      %p72 = por %p70, %p71
      %s74 = sadd.s32 %s73, 1
      %p77 = scmp.eq.s32.totalorder %s13, 1
      %p78 = scmp.ne.s32.totalorder %s73, %s75
      %p79 = scmp.eq.s32.totalorder %s13, 0
      %p80 = por %p78, %p79
      %p81 = scmp.ne.s32.totalorder %s73, %s75
      %p82 = scmp.eq.s32.totalorder %s18, 1
      %p83 = por %p81, %p82
      %p84 = scmp.ne.s32.totalorder %s75, %s76
      %p85 = scmp.eq.s32.totalorder %s18, 0
      %p86 = por %p84, %p85
      %p87 = scmp.ne.s32.totalorder %s75, %s76
      %p88 = scmp.eq.s32.totalorder %s19, 1
      %p89 = por %p87, %p88
      %p91 = scmp.ne.s32.totalorder %s76, %s90
      %p92 = scmp.eq.s32.totalorder %s19, 0
      %p93 = por %p91, %p92
      %s95 = sadd.s32 %s94, 1
      %p98 = scmp.eq.s32.totalorder %s13, 1
      %p99 = scmp.ne.s32.totalorder %s94, %s96
      %p100 = scmp.eq.s32.totalorder %s13, 0
      %p101 = por %p99, %p100
      %p102 = scmp.ne.s32.totalorder %s94, %s96
      %p103 = scmp.eq.s32.totalorder %s18, 1
      %p104 = por %p102, %p103
      %p105 = scmp.ne.s32.totalorder %s96, %s97
      %p106 = scmp.eq.s32.totalorder %s18, 0
      %p107 = por %p105, %p106
      %p108 = scmp.ne.s32.totalorder %s96, %s97
      %p109 = scmp.eq.s32.totalorder %s19, 1
      %p110 = por %p108, %p109
      %p112 = scmp.ne.s32.totalorder %s97, %s111
      %p113 = scmp.eq.s32.totalorder %s19, 0
      %p114 = por %p112, %p113
      %s115 = ssub.s32 %s13, %s20
      %p116 = scmp.eq.s32.totalorder %s115, 0
      %s118 = sadd.s32 %s117, 1
      %s119 = scalar_select %p116, %s117, %s118
      %p122 = pneg %p116
      %p123 = scmp.eq.s32.totalorder %s13, 1
      %p124 = por %p122, %p123
      %p125 = scmp.ne.s32.totalorder %s117, %s120
      %p126 = scmp.eq.s32.totalorder %s13, 0
      %p127 = por %p125, %p126
      %p128 = scmp.ne.s32.totalorder %s117, %s120
      %p129 = scmp.eq.s32.totalorder %s18, 1
      %p130 = por %p128, %p129
      %p131 = scmp.ne.s32.totalorder %s120, %s121
      %p132 = scmp.eq.s32.totalorder %s18, 0
      %p133 = por %p131, %p132
      %p134 = scmp.ne.s32.totalorder %s120, %s121
      %p135 = scmp.eq.s32.totalorder %s19, 1
      %p136 = por %p134, %p135
      %p138 = scmp.ne.s32.totalorder %s121, %s137
      %p139 = scmp.eq.s32.totalorder %s19, 0
      %p140 = por %p138, %p139
      %p141 = scmp.le.s32.totalorder 1, %s13
      %p142 = scmp.lt.s32.totalorder %s13, 3
      %p143 = pnand %p141, %p142
      %p144 = pneg %p143
      // Predicated region
      $region9: #{fgfa_forward.5} parent=5 // pred_check
        _
      $region10: #{fgfa_forward.5} parent=5 // pred_check_branch
        %146 = sbr.rel (%p143) target = $region12
      $region11: #{fgfa_forward.5} parent=5 // pred_region
        %s147 = ssub.s32 %s13, 1
        // Predicated region
        $region13: #{fgfa_forward.5} parent=11 // pred_check
          %p148 = pneg %p86
        $region14: #{fgfa_forward.5} parent=11 // pred_check_branch
          %150 = sbr.rel (%p148) target = $region16
        $region15: #{fgfa_forward.5} parent=11 // pred_region
          _
        $region16: #{fgfa_forward.5} parent=11 // pred_fallthru
          _
        // Predicated region
        $region17: #{fgfa_forward.5} parent=11 // pred_check
          %p151 = pneg %p107
        $region18: #{fgfa_forward.5} parent=11 // pred_check_branch
          %153 = sbr.rel (%p151) target = $region20
        $region19: #{fgfa_forward.5} parent=11 // pred_region
          _
        $region20: #{fgfa_forward.5} parent=11 // pred_fallthru
          _
      $region12: #{fgfa_forward.5} parent=5 // pred_fallthru
        _
      %p154 = scmp.lt.s32.totalorder %s13, 2
      // Predicated region
      $region21: #{fgfa_forward.5} parent=5 // pred_check
        %p155 = pneg %p154
      $region22: #{fgfa_forward.5} parent=5 // pred_check_branch
        %157 = sbr.rel (%p155) target = $region24
      $region23: #{fgfa_forward.5} parent=5 // pred_region
        // Predicated region
        $region25: #{fgfa_forward.5} parent=23 // pred_check
          %p158 = pneg %p33
        $region26: #{fgfa_forward.5} parent=23 // pred_check_branch
          %160 = sbr.rel (%p158) target = $region28
        $region27: #{fgfa_forward.5} parent=23 // pred_region
          %s161 = smul.u32 16, %s13
          %p162 = scmp.lt.s32.totalorder %s161, 31
          %s163 = scalar_select %p162, %s161, 31
          %s164 = smul.addr %s163, 8
          %s165 = scalar_lea.vmem %s0, %s164
          %s166 = smul.u32 16, %s13
        $region28: #{fgfa_forward.5} parent=23 // pred_fallthru
          _
        // Predicated region
        $region29: #{fgfa_forward.5} parent=23 // pred_check
          %p167 = pneg %p59
        $region30: #{fgfa_forward.5} parent=23 // pred_check_branch
          %169 = sbr.rel (%p167) target = $region32
        $region31: #{fgfa_forward.5} parent=23 // pred_region
          %s170 = sand.u32 %s49, 1
          %s171 = sand.u32 %s49, 1
          %s172 = smul.addr %s171, 256
          %s173 = scalar_lea.vmem [#allocation2], %s172
          %s174 = smul.u32 16, %s13
          %s175 = smul.addr %s174, 8
          %s176 = scalar_lea.vmem %s1, %s175
          // Predicated region
          $region33: #{fgfa_forward.5} parent=31 // pred_check
            _
          $region34: #{fgfa_forward.5} parent=31 // pred_check_branch
            %178 = sbr.rel (0) target = $region36
          $region35: #{fgfa_forward.5} parent=31 // pred_region
            // Predicated region
            $region37: #{fgfa_forward.5} parent=35 // pred_check
              _
            $region38: #{fgfa_forward.5} parent=35 // pred_check_branch
              %180 = sbr.rel (0) target = $region40
            $region39: #{fgfa_forward.5} parent=35 // pred_region
              // Predicated region
              $region52: #{fgfa_forward.5} parent=39 // pred_check
                _
              $region53: #{fgfa_forward.5} parent=39 // pred_check_branch
                %258 = sbr.rel (0) target = $region55
              $region54: #{fgfa_forward.5} parent=39 // pred_region
                loop: start=0, step=1, limit=1
                $region56: #{fgfa_forward.5} parent=54 // loop_pre_header
                  _
                $region57: #{fgfa_forward.5} parent=54 // loop_header
                  %s260 = sphi 0, %s264
                  %p261 = scmp.ge.s32.totalorder %s260, 1
                  %s265 = sphi %s176, %s176
                  %s266 = sphi %s173, %s173
                $region58: #{fgfa_forward.5} parent=54 // loop_header_branch
                  %263 = sbr.rel (%p261) target = $region62
                $region59: #{fgfa_forward.5} parent=54 // loop_body
                  %v267 = vld [vmem:[%s265] sm:$0xff]
                  %268 = vst [vmem:[%s266] sm:$0xff] %v267
                  %v269 = vld [vmem:[%s265 + $0x8] sm:$0xff]
                  %270 = vst [vmem:[%s266 + $0x8] sm:$0xff] %v269
                  %v271 = vld [vmem:[%s265 + $0x10] sm:$0xff]
                  %272 = vst [vmem:[%s266 + $0x10] sm:$0xff] %v271
                  %v273 = vld [vmem:[%s265 + $0x18] sm:$0xff]
                  %274 = vst [vmem:[%s266 + $0x18] sm:$0xff] %v273
                  %v275 = vld [vmem:[%s265 + $0x20] sm:$0xff]
                  %276 = vst [vmem:[%s266 + $0x20] sm:$0xff] %v275
                  %v277 = vld [vmem:[%s265 + $0x28] sm:$0xff]
                  %278 = vst [vmem:[%s266 + $0x28] sm:$0xff] %v277
                  %v279 = vld [vmem:[%s265 + $0x30] sm:$0xff]
                  %280 = vst [vmem:[%s266 + $0x30] sm:$0xff] %v279
                  %v281 = vld [vmem:[%s265 + $0x38] sm:$0xff]
                  %282 = vst [vmem:[%s266 + $0x38] sm:$0xff] %v281
                  %v283 = vld [vmem:[%s265 + $0x40] sm:$0xff]
                  %284 = vst [vmem:[%s266 + $0x40] sm:$0xff] %v283
                  %v285 = vld [vmem:[%s265 + $0x48] sm:$0xff]
                  %286 = vst [vmem:[%s266 + $0x48] sm:$0xff] %v285
                  %v287 = vld [vmem:[%s265 + $0x50] sm:$0xff]
                  %288 = vst [vmem:[%s266 + $0x50] sm:$0xff] %v287
                  %v289 = vld [vmem:[%s265 + $0x58] sm:$0xff]
                  %290 = vst [vmem:[%s266 + $0x58] sm:$0xff] %v289
                  %v291 = vld [vmem:[%s265 + $0x60] sm:$0xff]
                  %292 = vst [vmem:[%s266 + $0x60] sm:$0xff] %v291
                  %v293 = vld [vmem:[%s265 + $0x68] sm:$0xff]
                  %294 = vst [vmem:[%s266 + $0x68] sm:$0xff] %v293
                  %v295 = vld [vmem:[%s265 + $0x70] sm:$0xff]
                  %296 = vst [vmem:[%s266 + $0x70] sm:$0xff] %v295
                  %v297 = vld [vmem:[%s265 + $0x78] sm:$0xff]
                  %298 = vst [vmem:[%s266 + $0x78] sm:$0xff] %v297
                  %v299 = vld [vmem:[%s265 + $0x100] sm:$0xff]
                  %300 = vst [vmem:[%s266 + $0x80] sm:$0xff] %v299
                  %v301 = vld [vmem:[%s265 + $0x108] sm:$0xff]
                  %302 = vst [vmem:[%s266 + $0x88] sm:$0xff] %v301
                  %v303 = vld [vmem:[%s265 + $0x110] sm:$0xff]
                  %304 = vst [vmem:[%s266 + $0x90] sm:$0xff] %v303
                  %v305 = vld [vmem:[%s265 + $0x118] sm:$0xff]
                  %306 = vst [vmem:[%s266 + $0x98] sm:$0xff] %v305
                  %v307 = vld [vmem:[%s265 + $0x120] sm:$0xff]
                  %308 = vst [vmem:[%s266 + $0xa0] sm:$0xff] %v307
                  %v309 = vld [vmem:[%s265 + $0x128] sm:$0xff]
                  %310 = vst [vmem:[%s266 + $0xa8] sm:$0xff] %v309
                  %v311 = vld [vmem:[%s265 + $0x130] sm:$0xff]
                  %312 = vst [vmem:[%s266 + $0xb0] sm:$0xff] %v311
                  %v313 = vld [vmem:[%s265 + $0x138] sm:$0xff]
                  %314 = vst [vmem:[%s266 + $0xb8] sm:$0xff] %v313
                  %v315 = vld [vmem:[%s265 + $0x140] sm:$0xff]
                  %316 = vst [vmem:[%s266 + $0xc0] sm:$0xff] %v315
                  %v317 = vld [vmem:[%s265 + $0x148] sm:$0xff]
                  %318 = vst [vmem:[%s266 + $0xc8] sm:$0xff] %v317
                  %v319 = vld [vmem:[%s265 + $0x150] sm:$0xff]
                  %320 = vst [vmem:[%s266 + $0xd0] sm:$0xff] %v319
                  %v321 = vld [vmem:[%s265 + $0x158] sm:$0xff]
                  %322 = vst [vmem:[%s266 + $0xd8] sm:$0xff] %v321
                  %v323 = vld [vmem:[%s265 + $0x160] sm:$0xff]
                  %324 = vst [vmem:[%s266 + $0xe0] sm:$0xff] %v323
                  %v325 = vld [vmem:[%s265 + $0x168] sm:$0xff]
                  %326 = vst [vmem:[%s266 + $0xe8] sm:$0xff] %v325
                  %v327 = vld [vmem:[%s265 + $0x170] sm:$0xff]
                  %328 = vst [vmem:[%s266 + $0xf0] sm:$0xff] %v327
                  %v329 = vld [vmem:[%s265 + $0x178] sm:$0xff]
                  %330 = vst [vmem:[%s266 + $0xf8] sm:$0xff] %v329
                $region60: #{fgfa_forward.5} parent=54 // loop_footer
                  %s264 = sadd.s32 1, %s260
                $region61: #{fgfa_forward.5} parent=54 // loop_footer_branch
                  %259 = sbr.rel target = $region57
                $region62: #{fgfa_forward.5} parent=54 // loop_exit
                  _
              $region55: #{fgfa_forward.5} parent=39 // pred_fallthru
                _
              // Predicated region
              $region63: #{fgfa_forward.5} parent=39 // pred_check
                _
              $region64: #{fgfa_forward.5} parent=39 // pred_check_branch
                %332 = sbr.rel target = $region66
              $region65: #{fgfa_forward.5} parent=39 // pred_region
                _
              $region66: #{fgfa_forward.5} parent=39 // pred_fallthru
                _
            $region40: #{fgfa_forward.5} parent=35 // pred_fallthru
              _
            // Predicated region
            $region41: #{fgfa_forward.5} parent=35 // pred_check
              _
            $region42: #{fgfa_forward.5} parent=35 // pred_check_branch
              %182 = sbr.rel target = $region44
            $region43: #{fgfa_forward.5} parent=35 // pred_region
              %s184 = ssub.s32 256, 1
              loop: start=0, step=1, limit=1
              $region45: #{fgfa_forward.5} parent=43 // loop_pre_header
                _
              $region46: #{fgfa_forward.5} parent=43 // loop_header
                %s186 = sphi 0, %s190
                %p187 = scmp.ge.s32.totalorder %s186, 1
                %s191 = sphi %s176, %s176
                %s192 = sphi %s173, %s173
              $region47: #{fgfa_forward.5} parent=43 // loop_header_branch
                %189 = sbr.rel (%p187) target = $region51
              $region48: #{fgfa_forward.5} parent=43 // loop_body
                %v193 = vld [vmem:[%s191] sm:%s184]
                %194 = vst [vmem:[%s192] sm:%s184] %v193
                %v195 = vld [vmem:[%s191 + $0x8] sm:%s184]
                %196 = vst [vmem:[%s192 + $0x8] sm:%s184] %v195
                %v197 = vld [vmem:[%s191 + $0x10] sm:%s184]
                %198 = vst [vmem:[%s192 + $0x10] sm:%s184] %v197
                %v199 = vld [vmem:[%s191 + $0x18] sm:%s184]
                %200 = vst [vmem:[%s192 + $0x18] sm:%s184] %v199
                %v201 = vld [vmem:[%s191 + $0x20] sm:%s184]
                %202 = vst [vmem:[%s192 + $0x20] sm:%s184] %v201
                %v203 = vld [vmem:[%s191 + $0x28] sm:%s184]
                %204 = vst [vmem:[%s192 + $0x28] sm:%s184] %v203
                %v205 = vld [vmem:[%s191 + $0x30] sm:%s184]
                %206 = vst [vmem:[%s192 + $0x30] sm:%s184] %v205
                %v207 = vld [vmem:[%s191 + $0x38] sm:%s184]
                %208 = vst [vmem:[%s192 + $0x38] sm:%s184] %v207
                %v209 = vld [vmem:[%s191 + $0x40] sm:%s184]
                %210 = vst [vmem:[%s192 + $0x40] sm:%s184] %v209
                %v211 = vld [vmem:[%s191 + $0x48] sm:%s184]
                %212 = vst [vmem:[%s192 + $0x48] sm:%s184] %v211
                %v213 = vld [vmem:[%s191 + $0x50] sm:%s184]
                %214 = vst [vmem:[%s192 + $0x50] sm:%s184] %v213
                %v215 = vld [vmem:[%s191 + $0x58] sm:%s184]
                %216 = vst [vmem:[%s192 + $0x58] sm:%s184] %v215
                %v217 = vld [vmem:[%s191 + $0x60] sm:%s184]
                %218 = vst [vmem:[%s192 + $0x60] sm:%s184] %v217
                %v219 = vld [vmem:[%s191 + $0x68] sm:%s184]
                %220 = vst [vmem:[%s192 + $0x68] sm:%s184] %v219
                %v221 = vld [vmem:[%s191 + $0x70] sm:%s184]
                %222 = vst [vmem:[%s192 + $0x70] sm:%s184] %v221
                %v223 = vld [vmem:[%s191 + $0x78] sm:%s184]
                %224 = vst [vmem:[%s192 + $0x78] sm:%s184] %v223
                %v225 = vld [vmem:[%s191 + $0x100] sm:%s184]
                %226 = vst [vmem:[%s192 + $0x80] sm:%s184] %v225
                %v227 = vld [vmem:[%s191 + $0x108] sm:%s184]
                %228 = vst [vmem:[%s192 + $0x88] sm:%s184] %v227
                %v229 = vld [vmem:[%s191 + $0x110] sm:%s184]
                %230 = vst [vmem:[%s192 + $0x90] sm:%s184] %v229
                %v231 = vld [vmem:[%s191 + $0x118] sm:%s184]
                %232 = vst [vmem:[%s192 + $0x98] sm:%s184] %v231
                %v233 = vld [vmem:[%s191 + $0x120] sm:%s184]
                %234 = vst [vmem:[%s192 + $0xa0] sm:%s184] %v233
                %v235 = vld [vmem:[%s191 + $0x128] sm:%s184]
                %236 = vst [vmem:[%s192 + $0xa8] sm:%s184] %v235
                %v237 = vld [vmem:[%s191 + $0x130] sm:%s184]
                %238 = vst [vmem:[%s192 + $0xb0] sm:%s184] %v237
                %v239 = vld [vmem:[%s191 + $0x138] sm:%s184]
                %240 = vst [vmem:[%s192 + $0xb8] sm:%s184] %v239
                %v241 = vld [vmem:[%s191 + $0x140] sm:%s184]
                %242 = vst [vmem:[%s192 + $0xc0] sm:%s184] %v241
                %v243 = vld [vmem:[%s191 + $0x148] sm:%s184]
                %244 = vst [vmem:[%s192 + $0xc8] sm:%s184] %v243
                %v245 = vld [vmem:[%s191 + $0x150] sm:%s184]
                %246 = vst [vmem:[%s192 + $0xd0] sm:%s184] %v245
                %v247 = vld [vmem:[%s191 + $0x158] sm:%s184]
                %248 = vst [vmem:[%s192 + $0xd8] sm:%s184] %v247
                %v249 = vld [vmem:[%s191 + $0x160] sm:%s184]
                %250 = vst [vmem:[%s192 + $0xe0] sm:%s184] %v249
                %v251 = vld [vmem:[%s191 + $0x168] sm:%s184]
                %252 = vst [vmem:[%s192 + $0xe8] sm:%s184] %v251
                %v253 = vld [vmem:[%s191 + $0x170] sm:%s184]
                %254 = vst [vmem:[%s192 + $0xf0] sm:%s184] %v253
                %v255 = vld [vmem:[%s191 + $0x178] sm:%s184]
                %256 = vst [vmem:[%s192 + $0xf8] sm:%s184] %v255
              $region49: #{fgfa_forward.5} parent=43 // loop_footer
                %s190 = sadd.s32 1, %s186
              $region50: #{fgfa_forward.5} parent=43 // loop_footer_branch
                %185 = sbr.rel target = $region46
              $region51: #{fgfa_forward.5} parent=43 // loop_exit
                _
            $region44: #{fgfa_forward.5} parent=35 // pred_fallthru
              _
          $region36: #{fgfa_forward.5} parent=31 // pred_fallthru
            _
          %333 = vnop
        $region32: #{fgfa_forward.5} parent=23 // pred_fallthru
          _
      $region24: #{fgfa_forward.5} parent=5 // pred_fallthru
        _
      %p334 = scmp.le.s32.totalorder 1, %s13
      %p335 = scmp.lt.s32.totalorder %s13, 3
      %p336 = pnand %p334, %p335
      %p337 = pneg %p336
      // Predicated region
      $region67: #{fgfa_forward.5} parent=5 // pred_check
        _
      $region68: #{fgfa_forward.5} parent=5 // pred_check_branch
        %339 = sbr.rel (%p336) target = $region70
      $region69: #{fgfa_forward.5} parent=5 // pred_region
        %s340 = ssub.s32 %s13, 1
        %s341 = sand.u32 %s52, 1
        %s342 = sand.u32 %s52, 1
        %s343 = smul.addr %s342, 256
        %s344 = scalar_lea.vmem [#allocation2], %s343
        // Predicated region
        $region71: #{fgfa_forward.5} parent=69 // pred_check
          %p345 = pneg %p65
        $region72: #{fgfa_forward.5} parent=69 // pred_check_branch
          %347 = sbr.rel (%p345) target = $region74
        $region73: #{fgfa_forward.5} parent=69 // pred_region
          _
        $region74: #{fgfa_forward.5} parent=69 // pred_fallthru
          _
        %s348 = smul.u32 16, %s18
        %p349 = scmp.lt.s32.totalorder %s348, 31
        %s350 = scalar_select %p349, %s348, 31
        %s351 = smul.addr %s350, 8
        %s352 = scalar_lea.vmem %s0, %s351
        %p353 = pneg %p39
        %p354 = pneg %p36
        %s355 = sand.u32 %s52, 1
        %s356 = sand.u32 %s52, 1
        %s357 = smul.addr %s356, 256
        %s358 = scalar_lea.vmem [#allocation2], %s357
        %p359 = pneg %p65
        %p360 = pneg %p62
        %p361 = pneg %p86
        %p362 = pneg %p83
        %p363 = pneg %p107
        %p364 = pneg %p104
        %p365 = pneg %p133
        %p366 = pneg %p130
        %s367 = sand.u32 %s120, 1
        %s368 = scalar_lea.sflag [#allocation4], %s367
        %s369 = sand.u32 %s120, 1
        %s370 = smul.addr %s369, 128
        %s371 = scalar_lea.vmem [#allocation3], %s370
        %s372 = smul.u32 16, %s18
        %p373 = scmp.lt.s32.totalorder %s372, 31
        %s374 = scalar_select %p373, %s372, 31
        %s375 = smul.addr %s374, 8
        %s376 = scalar_lea.vmem %s0, %s375
        %s377 = smul.u32 16, %s18
        %s378 = smul.u32 16, %s18
        %s379 = smul.u32 16, %s18
        %v380 = vld [vmem:[%s376] sm:$0xff]
        %v381 = vld [vmem:[%s376 + $0x8] sm:$0xff]
        %v382 = vld [vmem:[%s376 + $0x10] sm:$0xff]
        %v383 = vld [vmem:[%s376 + $0x18] sm:$0xff]
        %v384 = vld [vmem:[%s376 + $0x20] sm:$0xff]
        %v385 = vld [vmem:[%s376 + $0x28] sm:$0xff]
        %v386 = vld [vmem:[%s376 + $0x30] sm:$0xff]
        %v387 = vld [vmem:[%s376 + $0x38] sm:$0xff]
        %v388 = vld [vmem:[%s376 + $0x40] sm:$0xff]
        %v389 = vld [vmem:[%s376 + $0x48] sm:$0xff]
        %v390 = vld [vmem:[%s376 + $0x50] sm:$0xff]
        %v391 = vld [vmem:[%s376 + $0x58] sm:$0xff]
        %v392 = vld [vmem:[%s376 + $0x60] sm:$0xff]
        %v393 = vld [vmem:[%s376 + $0x68] sm:$0xff]
        %v394 = vld [vmem:[%s376 + $0x70] sm:$0xff]
        %v395 = vld [vmem:[%s376 + $0x78] sm:$0xff]
        %v396 = vld [vmem:[%s344] sm:$0xff]
        %v397 = vld [vmem:[%s344 + $0x8] sm:$0xff]
        %v398 = vld [vmem:[%s344 + $0x10] sm:$0xff]
        %v399 = vld [vmem:[%s344 + $0x18] sm:$0xff]
        %v400 = vld [vmem:[%s344 + $0x20] sm:$0xff]
        %v401 = vld [vmem:[%s344 + $0x28] sm:$0xff]
        %v402 = vld [vmem:[%s344 + $0x30] sm:$0xff]
        %v403 = vld [vmem:[%s344 + $0x38] sm:$0xff]
        %v404 = vld [vmem:[%s344 + $0x40] sm:$0xff]
        %v405 = vld [vmem:[%s344 + $0x48] sm:$0xff]
        %v406 = vld [vmem:[%s344 + $0x50] sm:$0xff]
        %v407 = vld [vmem:[%s344 + $0x58] sm:$0xff]
        %v408 = vld [vmem:[%s344 + $0x60] sm:$0xff]
        %v409 = vld [vmem:[%s344 + $0x68] sm:$0xff]
        %v410 = vld [vmem:[%s344 + $0x70] sm:$0xff]
        %v411 = vld [vmem:[%s344 + $0x78] sm:$0xff]
        %v412 = vld [vmem:[%s344 + $0x80] sm:$0xff]
        %v413 = vld [vmem:[%s344 + $0x88] sm:$0xff]
        %v414 = vld [vmem:[%s344 + $0x90] sm:$0xff]
        %v415 = vld [vmem:[%s344 + $0x98] sm:$0xff]
        %v416 = vld [vmem:[%s344 + $0xa0] sm:$0xff]
        %v417 = vld [vmem:[%s344 + $0xa8] sm:$0xff]
        %v418 = vld [vmem:[%s344 + $0xb0] sm:$0xff]
        %v419 = vld [vmem:[%s344 + $0xb8] sm:$0xff]
        %v420 = vld [vmem:[%s344 + $0xc0] sm:$0xff]
        %v421 = vld [vmem:[%s344 + $0xc8] sm:$0xff]
        %v422 = vld [vmem:[%s344 + $0xd0] sm:$0xff]
        %v423 = vld [vmem:[%s344 + $0xd8] sm:$0xff]
        %v424 = vld [vmem:[%s344 + $0xe0] sm:$0xff]
        %v425 = vld [vmem:[%s344 + $0xe8] sm:$0xff]
        %v426 = vld [vmem:[%s344 + $0xf0] sm:$0xff]
        %v427 = vld [vmem:[%s344 + $0xf8] sm:$0xff]
        %v428 = vld [vmem:[%s2] sm:$0xff]
        %v429 = vld [vmem:[%s2 + $0x8] sm:$0xff]
        %v430 = vld [vmem:[%s2 + $0x10] sm:$0xff]
        %v431 = vld [vmem:[%s2 + $0x18] sm:$0xff]
        %v432 = vld [vmem:[%s3] sm:$0x1]
        %v434 = vperm.slane %v432, 0
        %vm436 = vcmask 261120
        %v438 = vsel %vm436, %v380, 0
        %v441 = vsel %vm436, %v381, 0
        %v444 = vsel %vm436, %v382, 0
        %v447 = vsel %vm436, %v383, 0
        %v450 = vsel %vm436, %v384, 0
        %v453 = vsel %vm436, %v385, 0
        %v456 = vsel %vm436, %v386, 0
        %v459 = vsel %vm436, %v387, 0
        %v462 = vsel %vm436, %v388, 0
        %v465 = vsel %vm436, %v389, 0
        %v468 = vsel %vm436, %v390, 0
        %v471 = vsel %vm436, %v391, 0
        %v474 = vsel %vm436, %v392, 0
        %v477 = vsel %vm436, %v393, 0
        %v480 = vsel %vm436, %v394, 0
        %v483 = vsel %vm436, %v395, 0
        %485 = vmatpush.msra.mxu0 0.0
        %486 = vmatpush.msra.mxu0 0.0
        %487 = vmatpush.msra.mxu0 0.0
        %488 = vmatpush.msra.mxu0 0.0
        %489 = vmatpush.msra.mxu0 0.0
        %490 = vmatpush.msra.mxu0 0.0
        %491 = vmatpush.msra.mxu0 0.0
        %492 = vmatpush.msra.mxu0 0.0
        %493 = vmatpush.msra.mxu0 0.0
        %494 = vmatpush.msra.mxu0 0.0
        %495 = vmatpush.msra.mxu0 0.0
        %496 = vmatpush.msra.mxu0 0.0
        %497 = vmatpush.msra.mxu0 %v431
        %498 = vmatpush.msra.mxu0 %v430
        %499 = vmatpush.msra.mxu0 %v429
        %500 = vmatpush.msra.mxu0 %v428
        %501 = vmatmul.f32.gmra.mxu0 %v438
        %v502 = vpop.f32.mrf.mxu0
        %v503 = vadd.f32 %v434, %v502
        %504 = vmatmul.f32.gmra.mxu0 %v441
        %v505 = vpop.f32.mrf.mxu0
        %v506 = vadd.f32 %v434, %v505
        %507 = vmatmul.f32.gmra.mxu0 %v444
        %v508 = vpop.f32.mrf.mxu0
        %v509 = vadd.f32 %v434, %v508
        %510 = vmatmul.f32.gmra.mxu0 %v447
        %v511 = vpop.f32.mrf.mxu0
        %v512 = vadd.f32 %v434, %v511
        %513 = vmatmul.f32.gmra.mxu0 %v450
        %v514 = vpop.f32.mrf.mxu0
        %v515 = vadd.f32 %v434, %v514
        %516 = vmatmul.f32.gmra.mxu0 %v453
        %v517 = vpop.f32.mrf.mxu0
        %v518 = vadd.f32 %v434, %v517
        %519 = vmatmul.f32.gmra.mxu0 %v456
        %v520 = vpop.f32.mrf.mxu0
        %v521 = vadd.f32 %v434, %v520
        %522 = vmatmul.f32.gmra.mxu0 %v459
        %v523 = vpop.f32.mrf.mxu0
        %v524 = vadd.f32 %v434, %v523
        %525 = vmatmul.f32.gmra.mxu0 %v462
        %v526 = vpop.f32.mrf.mxu0
        %v527 = vadd.f32 %v434, %v526
        %528 = vmatmul.f32.gmra.mxu0 %v465
        %v529 = vpop.f32.mrf.mxu0
        %v530 = vadd.f32 %v434, %v529
        %531 = vmatmul.f32.gmra.mxu0 %v468
        %v532 = vpop.f32.mrf.mxu0
        %v533 = vadd.f32 %v434, %v532
        %534 = vmatmul.f32.gmra.mxu0 %v471
        %v535 = vpop.f32.mrf.mxu0
        %v536 = vadd.f32 %v434, %v535
        %537 = vmatmul.f32.gmra.mxu0 %v474
        %v538 = vpop.f32.mrf.mxu0
        %v539 = vadd.f32 %v434, %v538
        %540 = vmatmul.f32.gmra.mxu0 %v477
        %v541 = vpop.f32.mrf.mxu0
        %v542 = vadd.f32 %v434, %v541
        %543 = vmatmul.f32.gmra.mxu0 %v480
        %v544 = vpop.f32.mrf.mxu0
        %v545 = vadd.f32 %v434, %v544
        %546 = vmatmul.f32.gmra.mxu0 %v483
        %v547 = vpop.f32.mrf.mxu0
        %v548 = vadd.f32 %v434, %v547
        %549 = vdwg.mxu0
        %v551 = vsel %vm436, %v396, 0
        %v554 = vsel %vm436, %v397, 0
        %v557 = vsel %vm436, %v398, 0
        %v560 = vsel %vm436, %v399, 0
        %v563 = vsel %vm436, %v400, 0
        %v566 = vsel %vm436, %v401, 0
        %v569 = vsel %vm436, %v402, 0
        %v572 = vsel %vm436, %v403, 0
        %v575 = vsel %vm436, %v404, 0
        %v578 = vsel %vm436, %v405, 0
        %v581 = vsel %vm436, %v406, 0
        %v584 = vsel %vm436, %v407, 0
        %v587 = vsel %vm436, %v408, 0
        %v590 = vsel %vm436, %v409, 0
        %v593 = vsel %vm436, %v410, 0
        %v596 = vsel %vm436, %v411, 0
        %v599 = vsel %vm436, %v412, 0
        %v602 = vsel %vm436, %v413, 0
        %v605 = vsel %vm436, %v414, 0
        %v608 = vsel %vm436, %v415, 0
        %v611 = vsel %vm436, %v416, 0
        %v614 = vsel %vm436, %v417, 0
        %v617 = vsel %vm436, %v418, 0
        %v620 = vsel %vm436, %v419, 0
        %v623 = vsel %vm436, %v420, 0
        %v626 = vsel %vm436, %v421, 0
        %v629 = vsel %vm436, %v422, 0
        %v632 = vsel %vm436, %v423, 0
        %v635 = vsel %vm436, %v424, 0
        %v638 = vsel %vm436, %v425, 0
        %v641 = vsel %vm436, %v426, 0
        %v644 = vsel %vm436, %v427, 0
        %646 = vmatpush.msra.mxu0 0.0
        %647 = vmatpush.msra.mxu0 0.0
        %648 = vmatpush.msra.mxu0 0.0
        %649 = vmatpush.msra.mxu0 0.0
        %650 = vmatpush.msra.mxu0 0.0
        %651 = vmatpush.msra.mxu0 0.0
        %652 = vmatpush.msra.mxu0 0.0
        %653 = vmatpush.msra.mxu0 0.0
        %654 = vmatpush.msra.mxu0 0.0
        %655 = vmatpush.msra.mxu0 0.0
        %656 = vmatpush.msra.mxu0 0.0
        %657 = vmatpush.msra.mxu0 0.0
        %658 = vmatpush.msra.mxu0 %v431
        %659 = vmatpush.msra.mxu0 %v430
        %660 = vmatpush.msra.mxu0 %v429
        %661 = vmatpush.msra.mxu0 %v428
        %662 = vmatmul.f32.gmra.mxu0 %v551
        %v663 = vpop.f32.mrf.mxu0
        %v664 = vadd.f32 %v434, %v663
        %665 = vmatmul.f32.gmra.mxu0 %v554
        %v666 = vpop.f32.mrf.mxu0
        %v667 = vadd.f32 %v434, %v666
        %668 = vmatmul.f32.gmra.mxu0 %v557
        %v669 = vpop.f32.mrf.mxu0
        %v670 = vadd.f32 %v434, %v669
        %671 = vmatmul.f32.gmra.mxu0 %v560
        %v672 = vpop.f32.mrf.mxu0
        %v673 = vadd.f32 %v434, %v672
        %674 = vmatmul.f32.gmra.mxu0 %v563
        %v675 = vpop.f32.mrf.mxu0
        %v676 = vadd.f32 %v434, %v675
        %677 = vmatmul.f32.gmra.mxu0 %v566
        %v678 = vpop.f32.mrf.mxu0
        %v679 = vadd.f32 %v434, %v678
        %680 = vmatmul.f32.gmra.mxu0 %v569
        %v681 = vpop.f32.mrf.mxu0
        %v682 = vadd.f32 %v434, %v681
        %683 = vmatmul.f32.gmra.mxu0 %v572
        %v684 = vpop.f32.mrf.mxu0
        %v685 = vadd.f32 %v434, %v684
        %686 = vmatmul.f32.gmra.mxu0 %v575
        %v687 = vpop.f32.mrf.mxu0
        %v688 = vadd.f32 %v434, %v687
        %689 = vmatmul.f32.gmra.mxu0 %v578
        %v690 = vpop.f32.mrf.mxu0
        %v691 = vadd.f32 %v434, %v690
        %692 = vmatmul.f32.gmra.mxu0 %v581
        %v693 = vpop.f32.mrf.mxu0
        %v694 = vadd.f32 %v434, %v693
        %695 = vmatmul.f32.gmra.mxu0 %v584
        %v696 = vpop.f32.mrf.mxu0
        %v697 = vadd.f32 %v434, %v696
        %698 = vmatmul.f32.gmra.mxu0 %v587
        %v699 = vpop.f32.mrf.mxu0
        %v700 = vadd.f32 %v434, %v699
        %701 = vmatmul.f32.gmra.mxu0 %v590
        %v702 = vpop.f32.mrf.mxu0
        %v703 = vadd.f32 %v434, %v702
        %704 = vmatmul.f32.gmra.mxu0 %v593
        %v705 = vpop.f32.mrf.mxu0
        %v706 = vadd.f32 %v434, %v705
        %707 = vmatmul.f32.gmra.mxu0 %v596
        %v708 = vpop.f32.mrf.mxu0
        %v709 = vadd.f32 %v434, %v708
        %710 = vmatmul.f32.gmra.mxu0 %v599
        %v711 = vpop.f32.mrf.mxu0
        %v712 = vadd.f32 %v434, %v711
        %713 = vmatmul.f32.gmra.mxu0 %v602
        %v714 = vpop.f32.mrf.mxu0
        %v715 = vadd.f32 %v434, %v714
        %716 = vmatmul.f32.gmra.mxu0 %v605
        %v717 = vpop.f32.mrf.mxu0
        %v718 = vadd.f32 %v434, %v717
        %719 = vmatmul.f32.gmra.mxu0 %v608
        %v720 = vpop.f32.mrf.mxu0
        %v721 = vadd.f32 %v434, %v720
        %722 = vmatmul.f32.gmra.mxu0 %v611
        %v723 = vpop.f32.mrf.mxu0
        %v724 = vadd.f32 %v434, %v723
        %725 = vmatmul.f32.gmra.mxu0 %v614
        %v726 = vpop.f32.mrf.mxu0
        %v727 = vadd.f32 %v434, %v726
        %728 = vmatmul.f32.gmra.mxu0 %v617
        %v729 = vpop.f32.mrf.mxu0
        %v730 = vadd.f32 %v434, %v729
        %731 = vmatmul.f32.gmra.mxu0 %v620
        %v732 = vpop.f32.mrf.mxu0
        %v733 = vadd.f32 %v434, %v732
        %734 = vmatmul.f32.gmra.mxu0 %v623
        %v735 = vpop.f32.mrf.mxu0
        %v736 = vadd.f32 %v434, %v735
        %737 = vmatmul.f32.gmra.mxu0 %v626
        %v738 = vpop.f32.mrf.mxu0
        %v739 = vadd.f32 %v434, %v738
        %740 = vmatmul.f32.gmra.mxu0 %v629
        %v741 = vpop.f32.mrf.mxu0
        %v742 = vadd.f32 %v434, %v741
        %743 = vmatmul.f32.gmra.mxu0 %v632
        %v744 = vpop.f32.mrf.mxu0
        %v745 = vadd.f32 %v434, %v744
        %746 = vmatmul.f32.gmra.mxu0 %v635
        %v747 = vpop.f32.mrf.mxu0
        %v748 = vadd.f32 %v434, %v747
        %749 = vmatmul.f32.gmra.mxu0 %v638
        %v750 = vpop.f32.mrf.mxu0
        %v751 = vadd.f32 %v434, %v750
        %752 = vmatmul.f32.gmra.mxu0 %v641
        %v753 = vpop.f32.mrf.mxu0
        %v754 = vadd.f32 %v434, %v753
        %755 = vmatmul.f32.gmra.mxu0 %v644
        %v756 = vpop.f32.mrf.mxu0
        %v757 = vadd.f32 %v434, %v756
        %758 = vdwg.mxu0
        %v759 = vmul.f32 %v664, %v503
        %v760 = vmul.f32 %v667, %v506
        %v761 = vmul.f32 %v670, %v509
        %v762 = vmul.f32 %v673, %v512
        %v763 = vmul.f32 %v676, %v515
        %v764 = vmul.f32 %v679, %v518
        %v765 = vmul.f32 %v682, %v521
        %v766 = vmul.f32 %v685, %v524
        %v767 = vmul.f32 %v688, %v527
        %v768 = vmul.f32 %v691, %v530
        %v769 = vmul.f32 %v694, %v533
        %v770 = vmul.f32 %v697, %v536
        %v771 = vmul.f32 %v700, %v539
        %v772 = vmul.f32 %v703, %v542
        %v773 = vmul.f32 %v706, %v545
        %v774 = vmul.f32 %v709, %v548
        %v775 = vmul.f32 %v712, %v503
        %v776 = vmul.f32 %v715, %v506
        %v777 = vmul.f32 %v718, %v509
        %v778 = vmul.f32 %v721, %v512
        %v779 = vmul.f32 %v724, %v515
        %v780 = vmul.f32 %v727, %v518
        %v781 = vmul.f32 %v730, %v521
        %v782 = vmul.f32 %v733, %v524
        %v783 = vmul.f32 %v736, %v527
        %v784 = vmul.f32 %v739, %v530
        %v785 = vmul.f32 %v742, %v533
        %v786 = vmul.f32 %v745, %v536
        %v787 = vmul.f32 %v748, %v539
        %v788 = vmul.f32 %v751, %v542
        %v789 = vmul.f32 %v754, %v545
        %v790 = vmul.f32 %v757, %v548
        %vm791 = vcmask 130048
        %v792 = vsel %vm791, %v759, 0.0
        %793 = vadd.xlane.f32.xlu0 %v792
        %v794 = vpop.xlane.xlu0 %793
        %v795 = vsel %vm791, %v760, 0.0
        %796 = vadd.xlane.f32.xlu0 %v795
        %v797 = vpop.xlane.xlu0 %796
        %v798 = vsel %vm791, %v761, 0.0
        %799 = vadd.xlane.f32.xlu0 %v798
        %v800 = vpop.xlane.xlu0 %799
        %v801 = vsel %vm791, %v762, 0.0
        %802 = vadd.xlane.f32.xlu0 %v801
        %v803 = vpop.xlane.xlu0 %802
        %v804 = vsel %vm791, %v763, 0.0
        %805 = vadd.xlane.f32.xlu0 %v804
        %v806 = vpop.xlane.xlu0 %805
        %v807 = vsel %vm791, %v764, 0.0
        %808 = vadd.xlane.f32.xlu0 %v807
        %v809 = vpop.xlane.xlu0 %808
        %v810 = vsel %vm791, %v765, 0.0
        %811 = vadd.xlane.f32.xlu0 %v810
        %v812 = vpop.xlane.xlu0 %811
        %v813 = vsel %vm791, %v766, 0.0
        %814 = vadd.xlane.f32.xlu0 %v813
        %v815 = vpop.xlane.xlu0 %814
        %v816 = vsel %vm791, %v767, 0.0
        %817 = vadd.xlane.f32.xlu0 %v816
        %v818 = vpop.xlane.xlu0 %817
        %v819 = vsel %vm791, %v768, 0.0
        %820 = vadd.xlane.f32.xlu0 %v819
        %v821 = vpop.xlane.xlu0 %820
        %v822 = vsel %vm791, %v769, 0.0
        %823 = vadd.xlane.f32.xlu0 %v822
        %v824 = vpop.xlane.xlu0 %823
        %v825 = vsel %vm791, %v770, 0.0
        %826 = vadd.xlane.f32.xlu0 %v825
        %v827 = vpop.xlane.xlu0 %826
        %v828 = vsel %vm791, %v771, 0.0
        %829 = vadd.xlane.f32.xlu0 %v828
        %v830 = vpop.xlane.xlu0 %829
        %v831 = vsel %vm791, %v772, 0.0
        %832 = vadd.xlane.f32.xlu0 %v831
        %v833 = vpop.xlane.xlu0 %832
        %v834 = vsel %vm791, %v773, 0.0
        %835 = vadd.xlane.f32.xlu0 %v834
        %v836 = vpop.xlane.xlu0 %835
        %v837 = vsel %vm791, %v774, 0.0
        %838 = vadd.xlane.f32.xlu0 %v837
        %v839 = vpop.xlane.xlu0 %838
        %v840 = vsel %vm791, %v775, 0.0
        %841 = vadd.xlane.f32.xlu0 %v840
        %v842 = vpop.xlane.xlu0 %841
        %v843 = vsel %vm791, %v776, 0.0
        %844 = vadd.xlane.f32.xlu0 %v843
        %v845 = vpop.xlane.xlu0 %844
        %v846 = vsel %vm791, %v777, 0.0
        %847 = vadd.xlane.f32.xlu0 %v846
        %v848 = vpop.xlane.xlu0 %847
        %v849 = vsel %vm791, %v778, 0.0
        %850 = vadd.xlane.f32.xlu0 %v849
        %v851 = vpop.xlane.xlu0 %850
        %v852 = vsel %vm791, %v779, 0.0
        %853 = vadd.xlane.f32.xlu0 %v852
        %v854 = vpop.xlane.xlu0 %853
        %v855 = vsel %vm791, %v780, 0.0
        %856 = vadd.xlane.f32.xlu0 %v855
        %v857 = vpop.xlane.xlu0 %856
        %v858 = vsel %vm791, %v781, 0.0
        %859 = vadd.xlane.f32.xlu0 %v858
        %v860 = vpop.xlane.xlu0 %859
        %v861 = vsel %vm791, %v782, 0.0
        %862 = vadd.xlane.f32.xlu0 %v861
        %v863 = vpop.xlane.xlu0 %862
        %v864 = vsel %vm791, %v783, 0.0
        %865 = vadd.xlane.f32.xlu0 %v864
        %v866 = vpop.xlane.xlu0 %865
        %v867 = vsel %vm791, %v784, 0.0
        %868 = vadd.xlane.f32.xlu0 %v867
        %v869 = vpop.xlane.xlu0 %868
        %v870 = vsel %vm791, %v785, 0.0
        %871 = vadd.xlane.f32.xlu0 %v870
        %v872 = vpop.xlane.xlu0 %871
        %v873 = vsel %vm791, %v786, 0.0
        %874 = vadd.xlane.f32.xlu0 %v873
        %v875 = vpop.xlane.xlu0 %874
        %v876 = vsel %vm791, %v787, 0.0
        %877 = vadd.xlane.f32.xlu0 %v876
        %v878 = vpop.xlane.xlu0 %877
        %v879 = vsel %vm791, %v788, 0.0
        %880 = vadd.xlane.f32.xlu0 %v879
        %v881 = vpop.xlane.xlu0 %880
        %v882 = vsel %vm791, %v789, 0.0
        %883 = vadd.xlane.f32.xlu0 %v882
        %v884 = vpop.xlane.xlu0 %883
        %v885 = vsel %vm791, %v790, 0.0
        %886 = vadd.xlane.f32.xlu0 %v885
        %v887 = vpop.xlane.xlu0 %886
        %v888 = vmul.f32 %v664, %v664
        %v889 = vmul.f32 %v667, %v667
        %v890 = vmul.f32 %v670, %v670
        %v891 = vmul.f32 %v673, %v673
        %v892 = vmul.f32 %v676, %v676
        %v893 = vmul.f32 %v679, %v679
        %v894 = vmul.f32 %v682, %v682
        %v895 = vmul.f32 %v685, %v685
        %v896 = vmul.f32 %v688, %v688
        %v897 = vmul.f32 %v691, %v691
        %v898 = vmul.f32 %v694, %v694
        %v899 = vmul.f32 %v697, %v697
        %v900 = vmul.f32 %v700, %v700
        %v901 = vmul.f32 %v703, %v703
        %v902 = vmul.f32 %v706, %v706
        %v903 = vmul.f32 %v709, %v709
        %v904 = vmul.f32 %v712, %v712
        %v905 = vmul.f32 %v715, %v715
        %v906 = vmul.f32 %v718, %v718
        %v907 = vmul.f32 %v721, %v721
        %v908 = vmul.f32 %v724, %v724
        %v909 = vmul.f32 %v727, %v727
        %v910 = vmul.f32 %v730, %v730
        %v911 = vmul.f32 %v733, %v733
        %v912 = vmul.f32 %v736, %v736
        %v913 = vmul.f32 %v739, %v739
        %v914 = vmul.f32 %v742, %v742
        %v915 = vmul.f32 %v745, %v745
        %v916 = vmul.f32 %v748, %v748
        %v917 = vmul.f32 %v751, %v751
        %v918 = vmul.f32 %v754, %v754
        %v919 = vmul.f32 %v757, %v757
        %v920 = vsel %vm791, %v888, 0.0
        %921 = vadd.xlane.f32.xlu0 %v920
        %v922 = vpop.xlane.xlu0 %921
        %v923 = vsel %vm791, %v889, 0.0
        %924 = vadd.xlane.f32.xlu0 %v923
        %v925 = vpop.xlane.xlu0 %924
        %v926 = vsel %vm791, %v890, 0.0
        %927 = vadd.xlane.f32.xlu0 %v926
        %v928 = vpop.xlane.xlu0 %927
        %v929 = vsel %vm791, %v891, 0.0
        %930 = vadd.xlane.f32.xlu0 %v929
        %v931 = vpop.xlane.xlu0 %930
        %v932 = vsel %vm791, %v892, 0.0
        %933 = vadd.xlane.f32.xlu0 %v932
        %v934 = vpop.xlane.xlu0 %933
        %v935 = vsel %vm791, %v893, 0.0
        %936 = vadd.xlane.f32.xlu0 %v935
        %v937 = vpop.xlane.xlu0 %936
        %v938 = vsel %vm791, %v894, 0.0
        %939 = vadd.xlane.f32.xlu0 %v938
        %v940 = vpop.xlane.xlu0 %939
        %v941 = vsel %vm791, %v895, 0.0
        %942 = vadd.xlane.f32.xlu0 %v941
        %v943 = vpop.xlane.xlu0 %942
        %v944 = vsel %vm791, %v896, 0.0
        %945 = vadd.xlane.f32.xlu0 %v944
        %v946 = vpop.xlane.xlu0 %945
        %v947 = vsel %vm791, %v897, 0.0
        %948 = vadd.xlane.f32.xlu0 %v947
        %v949 = vpop.xlane.xlu0 %948
        %v950 = vsel %vm791, %v898, 0.0
        %951 = vadd.xlane.f32.xlu0 %v950
        %v952 = vpop.xlane.xlu0 %951
        %v953 = vsel %vm791, %v899, 0.0
        %954 = vadd.xlane.f32.xlu0 %v953
        %v955 = vpop.xlane.xlu0 %954
        %v956 = vsel %vm791, %v900, 0.0
        %957 = vadd.xlane.f32.xlu0 %v956
        %v958 = vpop.xlane.xlu0 %957
        %v959 = vsel %vm791, %v901, 0.0
        %960 = vadd.xlane.f32.xlu0 %v959
        %v961 = vpop.xlane.xlu0 %960
        %v962 = vsel %vm791, %v902, 0.0
        %963 = vadd.xlane.f32.xlu0 %v962
        %v964 = vpop.xlane.xlu0 %963
        %v965 = vsel %vm791, %v903, 0.0
        %966 = vadd.xlane.f32.xlu0 %v965
        %v967 = vpop.xlane.xlu0 %966
        %v968 = vsel %vm791, %v904, 0.0
        %969 = vadd.xlane.f32.xlu0 %v968
        %v970 = vpop.xlane.xlu0 %969
        %v971 = vsel %vm791, %v905, 0.0
        %972 = vadd.xlane.f32.xlu0 %v971
        %v973 = vpop.xlane.xlu0 %972
        %v974 = vsel %vm791, %v906, 0.0
        %975 = vadd.xlane.f32.xlu0 %v974
        %v976 = vpop.xlane.xlu0 %975
        %v977 = vsel %vm791, %v907, 0.0
        %978 = vadd.xlane.f32.xlu0 %v977
        %v979 = vpop.xlane.xlu0 %978
        %v980 = vsel %vm791, %v908, 0.0
        %981 = vadd.xlane.f32.xlu0 %v980
        %v982 = vpop.xlane.xlu0 %981
        %v983 = vsel %vm791, %v909, 0.0
        %984 = vadd.xlane.f32.xlu0 %v983
        %v985 = vpop.xlane.xlu0 %984
        %v986 = vsel %vm791, %v910, 0.0
        %987 = vadd.xlane.f32.xlu0 %v986
        %v988 = vpop.xlane.xlu0 %987
        %v989 = vsel %vm791, %v911, 0.0
        %990 = vadd.xlane.f32.xlu0 %v989
        %v991 = vpop.xlane.xlu0 %990
        %v992 = vsel %vm791, %v912, 0.0
        %993 = vadd.xlane.f32.xlu0 %v992
        %v994 = vpop.xlane.xlu0 %993
        %v995 = vsel %vm791, %v913, 0.0
        %996 = vadd.xlane.f32.xlu0 %v995
        %v997 = vpop.xlane.xlu0 %996
        %v998 = vsel %vm791, %v914, 0.0
        %999 = vadd.xlane.f32.xlu0 %v998
        %v1000 = vpop.xlane.xlu0 %999
        %v1001 = vsel %vm791, %v915, 0.0
        %1002 = vadd.xlane.f32.xlu0 %v1001
        %v1003 = vpop.xlane.xlu0 %1002
        %v1004 = vsel %vm791, %v916, 0.0
        %1005 = vadd.xlane.f32.xlu0 %v1004
        %v1006 = vpop.xlane.xlu0 %1005
        %v1007 = vsel %vm791, %v917, 0.0
        %1008 = vadd.xlane.f32.xlu0 %v1007
        %v1009 = vpop.xlane.xlu0 %1008
        %v1010 = vsel %vm791, %v918, 0.0
        %1011 = vadd.xlane.f32.xlu0 %v1010
        %v1012 = vpop.xlane.xlu0 %1011
        %v1013 = vsel %vm791, %v919, 0.0
        %1014 = vadd.xlane.f32.xlu0 %v1013
        %v1015 = vpop.xlane.xlu0 %1014
        %v1016 = vrsqrt.pop %v922
        %v1017 = vmul.f32 %v1016, %v922
        %v1018 = vmul.f32 %v1017, %v1016
        %v1019 = vmul.f32 0.5, %v1018
        %v1020 = vsub.f32 1.5, %v1019
        %v1021 = vmul.f32 %v1016, %v1020
        %v1022 = vmul.f32 %v922, %v1021
        %vm1023 = vcmp.eq.f32.partialorder %v922, inf
        %v1024 = vsel %vm1023, %v922, %v1022
        %vm1025 = vcmp.eq.f32.partialorder %v922, 0.0
        %v1026 = vand.u32 %v922, 2147483648
        %v1027 = vsel %vm1025, %v1026, %v1024
        %v1028 = vrsqrt.pop %v925
        %v1029 = vmul.f32 %v1028, %v925
        %v1030 = vmul.f32 %v1029, %v1028
        %v1031 = vmul.f32 0.5, %v1030
        %v1032 = vsub.f32 1.5, %v1031
        %v1033 = vmul.f32 %v1028, %v1032
        %v1034 = vmul.f32 %v925, %v1033
        %vm1035 = vcmp.eq.f32.partialorder %v925, inf
        %v1036 = vsel %vm1035, %v925, %v1034
        %vm1037 = vcmp.eq.f32.partialorder %v925, 0.0
        %v1038 = vand.u32 %v925, 2147483648
        %v1039 = vsel %vm1037, %v1038, %v1036
        %v1040 = vrsqrt.pop %v928
        %v1041 = vmul.f32 %v1040, %v928
        %v1042 = vmul.f32 %v1041, %v1040
        %v1043 = vmul.f32 0.5, %v1042
        %v1044 = vsub.f32 1.5, %v1043
        %v1045 = vmul.f32 %v1040, %v1044
        %v1046 = vmul.f32 %v928, %v1045
        %vm1047 = vcmp.eq.f32.partialorder %v928, inf
        %v1048 = vsel %vm1047, %v928, %v1046
        %vm1049 = vcmp.eq.f32.partialorder %v928, 0.0
        %v1050 = vand.u32 %v928, 2147483648
        %v1051 = vsel %vm1049, %v1050, %v1048
        %v1052 = vrsqrt.pop %v931
        %v1053 = vmul.f32 %v1052, %v931
        %v1054 = vmul.f32 %v1053, %v1052
        %v1055 = vmul.f32 0.5, %v1054
        %v1056 = vsub.f32 1.5, %v1055
        %v1057 = vmul.f32 %v1052, %v1056
        %v1058 = vmul.f32 %v931, %v1057
        %vm1059 = vcmp.eq.f32.partialorder %v931, inf
        %v1060 = vsel %vm1059, %v931, %v1058
        %vm1061 = vcmp.eq.f32.partialorder %v931, 0.0
        %v1062 = vand.u32 %v931, 2147483648
        %v1063 = vsel %vm1061, %v1062, %v1060
        %v1064 = vrsqrt.pop %v934
        %v1065 = vmul.f32 %v1064, %v934
        %v1066 = vmul.f32 %v1065, %v1064
        %v1067 = vmul.f32 0.5, %v1066
        %v1068 = vsub.f32 1.5, %v1067
        %v1069 = vmul.f32 %v1064, %v1068
        %v1070 = vmul.f32 %v934, %v1069
        %vm1071 = vcmp.eq.f32.partialorder %v934, inf
        %v1072 = vsel %vm1071, %v934, %v1070
        %vm1073 = vcmp.eq.f32.partialorder %v934, 0.0
        %v1074 = vand.u32 %v934, 2147483648
        %v1075 = vsel %vm1073, %v1074, %v1072
        %v1076 = vrsqrt.pop %v937
        %v1077 = vmul.f32 %v1076, %v937
        %v1078 = vmul.f32 %v1077, %v1076
        %v1079 = vmul.f32 0.5, %v1078
        %v1080 = vsub.f32 1.5, %v1079
        %v1081 = vmul.f32 %v1076, %v1080
        %v1082 = vmul.f32 %v937, %v1081
        %vm1083 = vcmp.eq.f32.partialorder %v937, inf
        %v1084 = vsel %vm1083, %v937, %v1082
        %vm1085 = vcmp.eq.f32.partialorder %v937, 0.0
        %v1086 = vand.u32 %v937, 2147483648
        %v1087 = vsel %vm1085, %v1086, %v1084
        %v1088 = vrsqrt.pop %v940
        %v1089 = vmul.f32 %v1088, %v940
        %v1090 = vmul.f32 %v1089, %v1088
        %v1091 = vmul.f32 0.5, %v1090
        %v1092 = vsub.f32 1.5, %v1091
        %v1093 = vmul.f32 %v1088, %v1092
        %v1094 = vmul.f32 %v940, %v1093
        %vm1095 = vcmp.eq.f32.partialorder %v940, inf
        %v1096 = vsel %vm1095, %v940, %v1094
        %vm1097 = vcmp.eq.f32.partialorder %v940, 0.0
        %v1098 = vand.u32 %v940, 2147483648
        %v1099 = vsel %vm1097, %v1098, %v1096
        %v1100 = vrsqrt.pop %v943
        %v1101 = vmul.f32 %v1100, %v943
        %v1102 = vmul.f32 %v1101, %v1100
        %v1103 = vmul.f32 0.5, %v1102
        %v1104 = vsub.f32 1.5, %v1103
        %v1105 = vmul.f32 %v1100, %v1104
        %v1106 = vmul.f32 %v943, %v1105
        %vm1107 = vcmp.eq.f32.partialorder %v943, inf
        %v1108 = vsel %vm1107, %v943, %v1106
        %vm1109 = vcmp.eq.f32.partialorder %v943, 0.0
        %v1110 = vand.u32 %v943, 2147483648
        %v1111 = vsel %vm1109, %v1110, %v1108
        %v1112 = vrsqrt.pop %v946
        %v1113 = vmul.f32 %v1112, %v946
        %v1114 = vmul.f32 %v1113, %v1112
        %v1115 = vmul.f32 0.5, %v1114
        %v1116 = vsub.f32 1.5, %v1115
        %v1117 = vmul.f32 %v1112, %v1116
        %v1118 = vmul.f32 %v946, %v1117
        %vm1119 = vcmp.eq.f32.partialorder %v946, inf
        %v1120 = vsel %vm1119, %v946, %v1118
        %vm1121 = vcmp.eq.f32.partialorder %v946, 0.0
        %v1122 = vand.u32 %v946, 2147483648
        %v1123 = vsel %vm1121, %v1122, %v1120
        %v1124 = vrsqrt.pop %v949
        %v1125 = vmul.f32 %v1124, %v949
        %v1126 = vmul.f32 %v1125, %v1124
        %v1127 = vmul.f32 0.5, %v1126
        %v1128 = vsub.f32 1.5, %v1127
        %v1129 = vmul.f32 %v1124, %v1128
        %v1130 = vmul.f32 %v949, %v1129
        %vm1131 = vcmp.eq.f32.partialorder %v949, inf
        %v1132 = vsel %vm1131, %v949, %v1130
        %vm1133 = vcmp.eq.f32.partialorder %v949, 0.0
        %v1134 = vand.u32 %v949, 2147483648
        %v1135 = vsel %vm1133, %v1134, %v1132
        %v1136 = vrsqrt.pop %v952
        %v1137 = vmul.f32 %v1136, %v952
        %v1138 = vmul.f32 %v1137, %v1136
        %v1139 = vmul.f32 0.5, %v1138
        %v1140 = vsub.f32 1.5, %v1139
        %v1141 = vmul.f32 %v1136, %v1140
        %v1142 = vmul.f32 %v952, %v1141
        %vm1143 = vcmp.eq.f32.partialorder %v952, inf
        %v1144 = vsel %vm1143, %v952, %v1142
        %vm1145 = vcmp.eq.f32.partialorder %v952, 0.0
        %v1146 = vand.u32 %v952, 2147483648
        %v1147 = vsel %vm1145, %v1146, %v1144
        %v1148 = vrsqrt.pop %v955
        %v1149 = vmul.f32 %v1148, %v955
        %v1150 = vmul.f32 %v1149, %v1148
        %v1151 = vmul.f32 0.5, %v1150
        %v1152 = vsub.f32 1.5, %v1151
        %v1153 = vmul.f32 %v1148, %v1152
        %v1154 = vmul.f32 %v955, %v1153
        %vm1155 = vcmp.eq.f32.partialorder %v955, inf
        %v1156 = vsel %vm1155, %v955, %v1154
        %vm1157 = vcmp.eq.f32.partialorder %v955, 0.0
        %v1158 = vand.u32 %v955, 2147483648
        %v1159 = vsel %vm1157, %v1158, %v1156
        %v1160 = vrsqrt.pop %v958
        %v1161 = vmul.f32 %v1160, %v958
        %v1162 = vmul.f32 %v1161, %v1160
        %v1163 = vmul.f32 0.5, %v1162
        %v1164 = vsub.f32 1.5, %v1163
        %v1165 = vmul.f32 %v1160, %v1164
        %v1166 = vmul.f32 %v958, %v1165
        %vm1167 = vcmp.eq.f32.partialorder %v958, inf
        %v1168 = vsel %vm1167, %v958, %v1166
        %vm1169 = vcmp.eq.f32.partialorder %v958, 0.0
        %v1170 = vand.u32 %v958, 2147483648
        %v1171 = vsel %vm1169, %v1170, %v1168
        %v1172 = vrsqrt.pop %v961
        %v1173 = vmul.f32 %v1172, %v961
        %v1174 = vmul.f32 %v1173, %v1172
        %v1175 = vmul.f32 0.5, %v1174
        %v1176 = vsub.f32 1.5, %v1175
        %v1177 = vmul.f32 %v1172, %v1176
        %v1178 = vmul.f32 %v961, %v1177
        %vm1179 = vcmp.eq.f32.partialorder %v961, inf
        %v1180 = vsel %vm1179, %v961, %v1178
        %vm1181 = vcmp.eq.f32.partialorder %v961, 0.0
        %v1182 = vand.u32 %v961, 2147483648
        %v1183 = vsel %vm1181, %v1182, %v1180
        %v1184 = vrsqrt.pop %v964
        %v1185 = vmul.f32 %v1184, %v964
        %v1186 = vmul.f32 %v1185, %v1184
        %v1187 = vmul.f32 0.5, %v1186
        %v1188 = vsub.f32 1.5, %v1187
        %v1189 = vmul.f32 %v1184, %v1188
        %v1190 = vmul.f32 %v964, %v1189
        %vm1191 = vcmp.eq.f32.partialorder %v964, inf
        %v1192 = vsel %vm1191, %v964, %v1190
        %vm1193 = vcmp.eq.f32.partialorder %v964, 0.0
        %v1194 = vand.u32 %v964, 2147483648
        %v1195 = vsel %vm1193, %v1194, %v1192
        %v1196 = vrsqrt.pop %v967
        %v1197 = vmul.f32 %v1196, %v967
        %v1198 = vmul.f32 %v1197, %v1196
        %v1199 = vmul.f32 0.5, %v1198
        %v1200 = vsub.f32 1.5, %v1199
        %v1201 = vmul.f32 %v1196, %v1200
        %v1202 = vmul.f32 %v967, %v1201
        %vm1203 = vcmp.eq.f32.partialorder %v967, inf
        %v1204 = vsel %vm1203, %v967, %v1202
        %vm1205 = vcmp.eq.f32.partialorder %v967, 0.0
        %v1206 = vand.u32 %v967, 2147483648
        %v1207 = vsel %vm1205, %v1206, %v1204
        %v1208 = vrsqrt.pop %v970
        %v1209 = vmul.f32 %v1208, %v970
        %v1210 = vmul.f32 %v1209, %v1208
        %v1211 = vmul.f32 0.5, %v1210
        %v1212 = vsub.f32 1.5, %v1211
        %v1213 = vmul.f32 %v1208, %v1212
        %v1214 = vmul.f32 %v970, %v1213
        %vm1215 = vcmp.eq.f32.partialorder %v970, inf
        %v1216 = vsel %vm1215, %v970, %v1214
        %vm1217 = vcmp.eq.f32.partialorder %v970, 0.0
        %v1218 = vand.u32 %v970, 2147483648
        %v1219 = vsel %vm1217, %v1218, %v1216
        %v1220 = vrsqrt.pop %v973
        %v1221 = vmul.f32 %v1220, %v973
        %v1222 = vmul.f32 %v1221, %v1220
        %v1223 = vmul.f32 0.5, %v1222
        %v1224 = vsub.f32 1.5, %v1223
        %v1225 = vmul.f32 %v1220, %v1224
        %v1226 = vmul.f32 %v973, %v1225
        %vm1227 = vcmp.eq.f32.partialorder %v973, inf
        %v1228 = vsel %vm1227, %v973, %v1226
        %vm1229 = vcmp.eq.f32.partialorder %v973, 0.0
        %v1230 = vand.u32 %v973, 2147483648
        %v1231 = vsel %vm1229, %v1230, %v1228
        %v1232 = vrsqrt.pop %v976
        %v1233 = vmul.f32 %v1232, %v976
        %v1234 = vmul.f32 %v1233, %v1232
        %v1235 = vmul.f32 0.5, %v1234
        %v1236 = vsub.f32 1.5, %v1235
        %v1237 = vmul.f32 %v1232, %v1236
        %v1238 = vmul.f32 %v976, %v1237
        %vm1239 = vcmp.eq.f32.partialorder %v976, inf
        %v1240 = vsel %vm1239, %v976, %v1238
        %vm1241 = vcmp.eq.f32.partialorder %v976, 0.0
        %v1242 = vand.u32 %v976, 2147483648
        %v1243 = vsel %vm1241, %v1242, %v1240
        %v1244 = vrsqrt.pop %v979
        %v1245 = vmul.f32 %v1244, %v979
        %v1246 = vmul.f32 %v1245, %v1244
        %v1247 = vmul.f32 0.5, %v1246
        %v1248 = vsub.f32 1.5, %v1247
        %v1249 = vmul.f32 %v1244, %v1248
        %v1250 = vmul.f32 %v979, %v1249
        %vm1251 = vcmp.eq.f32.partialorder %v979, inf
        %v1252 = vsel %vm1251, %v979, %v1250
        %vm1253 = vcmp.eq.f32.partialorder %v979, 0.0
        %v1254 = vand.u32 %v979, 2147483648
        %v1255 = vsel %vm1253, %v1254, %v1252
        %v1256 = vrsqrt.pop %v982
        %v1257 = vmul.f32 %v1256, %v982
        %v1258 = vmul.f32 %v1257, %v1256
        %v1259 = vmul.f32 0.5, %v1258
        %v1260 = vsub.f32 1.5, %v1259
        %v1261 = vmul.f32 %v1256, %v1260
        %v1262 = vmul.f32 %v982, %v1261
        %vm1263 = vcmp.eq.f32.partialorder %v982, inf
        %v1264 = vsel %vm1263, %v982, %v1262
        %vm1265 = vcmp.eq.f32.partialorder %v982, 0.0
        %v1266 = vand.u32 %v982, 2147483648
        %v1267 = vsel %vm1265, %v1266, %v1264
        %v1268 = vrsqrt.pop %v985
        %v1269 = vmul.f32 %v1268, %v985
        %v1270 = vmul.f32 %v1269, %v1268
        %v1271 = vmul.f32 0.5, %v1270
        %v1272 = vsub.f32 1.5, %v1271
        %v1273 = vmul.f32 %v1268, %v1272
        %v1274 = vmul.f32 %v985, %v1273
        %vm1275 = vcmp.eq.f32.partialorder %v985, inf
        %v1276 = vsel %vm1275, %v985, %v1274
        %vm1277 = vcmp.eq.f32.partialorder %v985, 0.0
        %v1278 = vand.u32 %v985, 2147483648
        %v1279 = vsel %vm1277, %v1278, %v1276
        %v1280 = vrsqrt.pop %v988
        %v1281 = vmul.f32 %v1280, %v988
        %v1282 = vmul.f32 %v1281, %v1280
        %v1283 = vmul.f32 0.5, %v1282
        %v1284 = vsub.f32 1.5, %v1283
        %v1285 = vmul.f32 %v1280, %v1284
        %v1286 = vmul.f32 %v988, %v1285
        %vm1287 = vcmp.eq.f32.partialorder %v988, inf
        %v1288 = vsel %vm1287, %v988, %v1286
        %vm1289 = vcmp.eq.f32.partialorder %v988, 0.0
        %v1290 = vand.u32 %v988, 2147483648
        %v1291 = vsel %vm1289, %v1290, %v1288
        %v1292 = vrsqrt.pop %v991
        %v1293 = vmul.f32 %v1292, %v991
        %v1294 = vmul.f32 %v1293, %v1292
        %v1295 = vmul.f32 0.5, %v1294
        %v1296 = vsub.f32 1.5, %v1295
        %v1297 = vmul.f32 %v1292, %v1296
        %v1298 = vmul.f32 %v991, %v1297
        %vm1299 = vcmp.eq.f32.partialorder %v991, inf
        %v1300 = vsel %vm1299, %v991, %v1298
        %vm1301 = vcmp.eq.f32.partialorder %v991, 0.0
        %v1302 = vand.u32 %v991, 2147483648
        %v1303 = vsel %vm1301, %v1302, %v1300
        %v1304 = vrsqrt.pop %v994
        %v1305 = vmul.f32 %v1304, %v994
        %v1306 = vmul.f32 %v1305, %v1304
        %v1307 = vmul.f32 0.5, %v1306
        %v1308 = vsub.f32 1.5, %v1307
        %v1309 = vmul.f32 %v1304, %v1308
        %v1310 = vmul.f32 %v994, %v1309
        %vm1311 = vcmp.eq.f32.partialorder %v994, inf
        %v1312 = vsel %vm1311, %v994, %v1310
        %vm1313 = vcmp.eq.f32.partialorder %v994, 0.0
        %v1314 = vand.u32 %v994, 2147483648
        %v1315 = vsel %vm1313, %v1314, %v1312
        %v1316 = vrsqrt.pop %v997
        %v1317 = vmul.f32 %v1316, %v997
        %v1318 = vmul.f32 %v1317, %v1316
        %v1319 = vmul.f32 0.5, %v1318
        %v1320 = vsub.f32 1.5, %v1319
        %v1321 = vmul.f32 %v1316, %v1320
        %v1322 = vmul.f32 %v997, %v1321
        %vm1323 = vcmp.eq.f32.partialorder %v997, inf
        %v1324 = vsel %vm1323, %v997, %v1322
        %vm1325 = vcmp.eq.f32.partialorder %v997, 0.0
        %v1326 = vand.u32 %v997, 2147483648
        %v1327 = vsel %vm1325, %v1326, %v1324
        %v1328 = vrsqrt.pop %v1000
        %v1329 = vmul.f32 %v1328, %v1000
        %v1330 = vmul.f32 %v1329, %v1328
        %v1331 = vmul.f32 0.5, %v1330
        %v1332 = vsub.f32 1.5, %v1331
        %v1333 = vmul.f32 %v1328, %v1332
        %v1334 = vmul.f32 %v1000, %v1333
        %vm1335 = vcmp.eq.f32.partialorder %v1000, inf
        %v1336 = vsel %vm1335, %v1000, %v1334
        %vm1337 = vcmp.eq.f32.partialorder %v1000, 0.0
        %v1338 = vand.u32 %v1000, 2147483648
        %v1339 = vsel %vm1337, %v1338, %v1336
        %v1340 = vrsqrt.pop %v1003
        %v1341 = vmul.f32 %v1340, %v1003
        %v1342 = vmul.f32 %v1341, %v1340
        %v1343 = vmul.f32 0.5, %v1342
        %v1344 = vsub.f32 1.5, %v1343
        %v1345 = vmul.f32 %v1340, %v1344
        %v1346 = vmul.f32 %v1003, %v1345
        %vm1347 = vcmp.eq.f32.partialorder %v1003, inf
        %v1348 = vsel %vm1347, %v1003, %v1346
        %vm1349 = vcmp.eq.f32.partialorder %v1003, 0.0
        %v1350 = vand.u32 %v1003, 2147483648
        %v1351 = vsel %vm1349, %v1350, %v1348
        %v1352 = vrsqrt.pop %v1006
        %v1353 = vmul.f32 %v1352, %v1006
        %v1354 = vmul.f32 %v1353, %v1352
        %v1355 = vmul.f32 0.5, %v1354
        %v1356 = vsub.f32 1.5, %v1355
        %v1357 = vmul.f32 %v1352, %v1356
        %v1358 = vmul.f32 %v1006, %v1357
        %vm1359 = vcmp.eq.f32.partialorder %v1006, inf
        %v1360 = vsel %vm1359, %v1006, %v1358
        %vm1361 = vcmp.eq.f32.partialorder %v1006, 0.0
        %v1362 = vand.u32 %v1006, 2147483648
        %v1363 = vsel %vm1361, %v1362, %v1360
        %v1364 = vrsqrt.pop %v1009
        %v1365 = vmul.f32 %v1364, %v1009
        %v1366 = vmul.f32 %v1365, %v1364
        %v1367 = vmul.f32 0.5, %v1366
        %v1368 = vsub.f32 1.5, %v1367
        %v1369 = vmul.f32 %v1364, %v1368
        %v1370 = vmul.f32 %v1009, %v1369
        %vm1371 = vcmp.eq.f32.partialorder %v1009, inf
        %v1372 = vsel %vm1371, %v1009, %v1370
        %vm1373 = vcmp.eq.f32.partialorder %v1009, 0.0
        %v1374 = vand.u32 %v1009, 2147483648
        %v1375 = vsel %vm1373, %v1374, %v1372
        %v1376 = vrsqrt.pop %v1012
        %v1377 = vmul.f32 %v1376, %v1012
        %v1378 = vmul.f32 %v1377, %v1376
        %v1379 = vmul.f32 0.5, %v1378
        %v1380 = vsub.f32 1.5, %v1379
        %v1381 = vmul.f32 %v1376, %v1380
        %v1382 = vmul.f32 %v1012, %v1381
        %vm1383 = vcmp.eq.f32.partialorder %v1012, inf
        %v1384 = vsel %vm1383, %v1012, %v1382
        %vm1385 = vcmp.eq.f32.partialorder %v1012, 0.0
        %v1386 = vand.u32 %v1012, 2147483648
        %v1387 = vsel %vm1385, %v1386, %v1384
        %v1388 = vrsqrt.pop %v1015
        %v1389 = vmul.f32 %v1388, %v1015
        %v1390 = vmul.f32 %v1389, %v1388
        %v1391 = vmul.f32 0.5, %v1390
        %v1392 = vsub.f32 1.5, %v1391
        %v1393 = vmul.f32 %v1388, %v1392
        %v1394 = vmul.f32 %v1015, %v1393
        %vm1395 = vcmp.eq.f32.partialorder %v1015, inf
        %v1396 = vsel %vm1395, %v1015, %v1394
        %vm1397 = vcmp.eq.f32.partialorder %v1015, 0.0
        %v1398 = vand.u32 %v1015, 2147483648
        %v1399 = vsel %vm1397, %v1398, %v1396
        %v1400 = vmul.f32 %v503, %v503
        %v1401 = vmul.f32 %v506, %v506
        %v1402 = vmul.f32 %v509, %v509
        %v1403 = vmul.f32 %v512, %v512
        %v1404 = vmul.f32 %v515, %v515
        %v1405 = vmul.f32 %v518, %v518
        %v1406 = vmul.f32 %v521, %v521
        %v1407 = vmul.f32 %v524, %v524
        %v1408 = vmul.f32 %v527, %v527
        %v1409 = vmul.f32 %v530, %v530
        %v1410 = vmul.f32 %v533, %v533
        %v1411 = vmul.f32 %v536, %v536
        %v1412 = vmul.f32 %v539, %v539
        %v1413 = vmul.f32 %v542, %v542
        %v1414 = vmul.f32 %v545, %v545
        %v1415 = vmul.f32 %v548, %v548
        %v1416 = vsel %vm791, %v1400, 0.0
        %1417 = vadd.xlane.f32.xlu0 %v1416
        %v1418 = vpop.xlane.xlu0 %1417
        %v1419 = vsel %vm791, %v1401, 0.0
        %1420 = vadd.xlane.f32.xlu0 %v1419
        %v1421 = vpop.xlane.xlu0 %1420
        %v1422 = vsel %vm791, %v1402, 0.0
        %1423 = vadd.xlane.f32.xlu0 %v1422
        %v1424 = vpop.xlane.xlu0 %1423
        %v1425 = vsel %vm791, %v1403, 0.0
        %1426 = vadd.xlane.f32.xlu0 %v1425
        %v1427 = vpop.xlane.xlu0 %1426
        %v1428 = vsel %vm791, %v1404, 0.0
        %1429 = vadd.xlane.f32.xlu0 %v1428
        %v1430 = vpop.xlane.xlu0 %1429
        %v1431 = vsel %vm791, %v1405, 0.0
        %1432 = vadd.xlane.f32.xlu0 %v1431
        %v1433 = vpop.xlane.xlu0 %1432
        %v1434 = vsel %vm791, %v1406, 0.0
        %1435 = vadd.xlane.f32.xlu0 %v1434
        %v1436 = vpop.xlane.xlu0 %1435
        %v1437 = vsel %vm791, %v1407, 0.0
        %1438 = vadd.xlane.f32.xlu0 %v1437
        %v1439 = vpop.xlane.xlu0 %1438
        %v1440 = vsel %vm791, %v1408, 0.0
        %1441 = vadd.xlane.f32.xlu0 %v1440
        %v1442 = vpop.xlane.xlu0 %1441
        %v1443 = vsel %vm791, %v1409, 0.0
        %1444 = vadd.xlane.f32.xlu0 %v1443
        %v1445 = vpop.xlane.xlu0 %1444
        %v1446 = vsel %vm791, %v1410, 0.0
        %1447 = vadd.xlane.f32.xlu0 %v1446
        %v1448 = vpop.xlane.xlu0 %1447
        %v1449 = vsel %vm791, %v1411, 0.0
        %1450 = vadd.xlane.f32.xlu0 %v1449
        %v1451 = vpop.xlane.xlu0 %1450
        %v1452 = vsel %vm791, %v1412, 0.0
        %1453 = vadd.xlane.f32.xlu0 %v1452
        %v1454 = vpop.xlane.xlu0 %1453
        %v1455 = vsel %vm791, %v1413, 0.0
        %1456 = vadd.xlane.f32.xlu0 %v1455
        %v1457 = vpop.xlane.xlu0 %1456
        %v1458 = vsel %vm791, %v1414, 0.0
        %1459 = vadd.xlane.f32.xlu0 %v1458
        %v1460 = vpop.xlane.xlu0 %1459
        %v1461 = vsel %vm791, %v1415, 0.0
        %1462 = vadd.xlane.f32.xlu0 %v1461
        %v1463 = vpop.xlane.xlu0 %1462
        %v1464 = vrsqrt.pop %v1418
        %v1465 = vmul.f32 %v1464, %v1418
        %v1466 = vmul.f32 %v1465, %v1464
        %v1467 = vmul.f32 0.5, %v1466
        %v1468 = vsub.f32 1.5, %v1467
        %v1469 = vmul.f32 %v1464, %v1468
        %v1470 = vmul.f32 %v1418, %v1469
        %vm1471 = vcmp.eq.f32.partialorder %v1418, inf
        %v1472 = vsel %vm1471, %v1418, %v1470
        %vm1473 = vcmp.eq.f32.partialorder %v1418, 0.0
        %v1474 = vand.u32 %v1418, 2147483648
        %v1475 = vsel %vm1473, %v1474, %v1472
        %v1476 = vrsqrt.pop %v1421
        %v1477 = vmul.f32 %v1476, %v1421
        %v1478 = vmul.f32 %v1477, %v1476
        %v1479 = vmul.f32 0.5, %v1478
        %v1480 = vsub.f32 1.5, %v1479
        %v1481 = vmul.f32 %v1476, %v1480
        %v1482 = vmul.f32 %v1421, %v1481
        %vm1483 = vcmp.eq.f32.partialorder %v1421, inf
        %v1484 = vsel %vm1483, %v1421, %v1482
        %vm1485 = vcmp.eq.f32.partialorder %v1421, 0.0
        %v1486 = vand.u32 %v1421, 2147483648
        %v1487 = vsel %vm1485, %v1486, %v1484
        %v1488 = vrsqrt.pop %v1424
        %v1489 = vmul.f32 %v1488, %v1424
        %v1490 = vmul.f32 %v1489, %v1488
        %v1491 = vmul.f32 0.5, %v1490
        %v1492 = vsub.f32 1.5, %v1491
        %v1493 = vmul.f32 %v1488, %v1492
        %v1494 = vmul.f32 %v1424, %v1493
        %vm1495 = vcmp.eq.f32.partialorder %v1424, inf
        %v1496 = vsel %vm1495, %v1424, %v1494
        %vm1497 = vcmp.eq.f32.partialorder %v1424, 0.0
        %v1498 = vand.u32 %v1424, 2147483648
        %v1499 = vsel %vm1497, %v1498, %v1496
        %v1500 = vrsqrt.pop %v1427
        %v1501 = vmul.f32 %v1500, %v1427
        %v1502 = vmul.f32 %v1501, %v1500
        %v1503 = vmul.f32 0.5, %v1502
        %v1504 = vsub.f32 1.5, %v1503
        %v1505 = vmul.f32 %v1500, %v1504
        %v1506 = vmul.f32 %v1427, %v1505
        %vm1507 = vcmp.eq.f32.partialorder %v1427, inf
        %v1508 = vsel %vm1507, %v1427, %v1506
        %vm1509 = vcmp.eq.f32.partialorder %v1427, 0.0
        %v1510 = vand.u32 %v1427, 2147483648
        %v1511 = vsel %vm1509, %v1510, %v1508
        %v1512 = vrsqrt.pop %v1430
        %v1513 = vmul.f32 %v1512, %v1430
        %v1514 = vmul.f32 %v1513, %v1512
        %v1515 = vmul.f32 0.5, %v1514
        %v1516 = vsub.f32 1.5, %v1515
        %v1517 = vmul.f32 %v1512, %v1516
        %v1518 = vmul.f32 %v1430, %v1517
        %vm1519 = vcmp.eq.f32.partialorder %v1430, inf
        %v1520 = vsel %vm1519, %v1430, %v1518
        %vm1521 = vcmp.eq.f32.partialorder %v1430, 0.0
        %v1522 = vand.u32 %v1430, 2147483648
        %v1523 = vsel %vm1521, %v1522, %v1520
        %v1524 = vrsqrt.pop %v1433
        %v1525 = vmul.f32 %v1524, %v1433
        %v1526 = vmul.f32 %v1525, %v1524
        %v1527 = vmul.f32 0.5, %v1526
        %v1528 = vsub.f32 1.5, %v1527
        %v1529 = vmul.f32 %v1524, %v1528
        %v1530 = vmul.f32 %v1433, %v1529
        %vm1531 = vcmp.eq.f32.partialorder %v1433, inf
        %v1532 = vsel %vm1531, %v1433, %v1530
        %vm1533 = vcmp.eq.f32.partialorder %v1433, 0.0
        %v1534 = vand.u32 %v1433, 2147483648
        %v1535 = vsel %vm1533, %v1534, %v1532
        %v1536 = vrsqrt.pop %v1436
        %v1537 = vmul.f32 %v1536, %v1436
        %v1538 = vmul.f32 %v1537, %v1536
        %v1539 = vmul.f32 0.5, %v1538
        %v1540 = vsub.f32 1.5, %v1539
        %v1541 = vmul.f32 %v1536, %v1540
        %v1542 = vmul.f32 %v1436, %v1541
        %vm1543 = vcmp.eq.f32.partialorder %v1436, inf
        %v1544 = vsel %vm1543, %v1436, %v1542
        %vm1545 = vcmp.eq.f32.partialorder %v1436, 0.0
        %v1546 = vand.u32 %v1436, 2147483648
        %v1547 = vsel %vm1545, %v1546, %v1544
        %v1548 = vrsqrt.pop %v1439
        %v1549 = vmul.f32 %v1548, %v1439
        %v1550 = vmul.f32 %v1549, %v1548
        %v1551 = vmul.f32 0.5, %v1550
        %v1552 = vsub.f32 1.5, %v1551
        %v1553 = vmul.f32 %v1548, %v1552
        %v1554 = vmul.f32 %v1439, %v1553
        %vm1555 = vcmp.eq.f32.partialorder %v1439, inf
        %v1556 = vsel %vm1555, %v1439, %v1554
        %vm1557 = vcmp.eq.f32.partialorder %v1439, 0.0
        %v1558 = vand.u32 %v1439, 2147483648
        %v1559 = vsel %vm1557, %v1558, %v1556
        %v1560 = vrsqrt.pop %v1442
        %v1561 = vmul.f32 %v1560, %v1442
        %v1562 = vmul.f32 %v1561, %v1560
        %v1563 = vmul.f32 0.5, %v1562
        %v1564 = vsub.f32 1.5, %v1563
        %v1565 = vmul.f32 %v1560, %v1564
        %v1566 = vmul.f32 %v1442, %v1565
        %vm1567 = vcmp.eq.f32.partialorder %v1442, inf
        %v1568 = vsel %vm1567, %v1442, %v1566
        %vm1569 = vcmp.eq.f32.partialorder %v1442, 0.0
        %v1570 = vand.u32 %v1442, 2147483648
        %v1571 = vsel %vm1569, %v1570, %v1568
        %v1572 = vrsqrt.pop %v1445
        %v1573 = vmul.f32 %v1572, %v1445
        %v1574 = vmul.f32 %v1573, %v1572
        %v1575 = vmul.f32 0.5, %v1574
        %v1576 = vsub.f32 1.5, %v1575
        %v1577 = vmul.f32 %v1572, %v1576
        %v1578 = vmul.f32 %v1445, %v1577
        %vm1579 = vcmp.eq.f32.partialorder %v1445, inf
        %v1580 = vsel %vm1579, %v1445, %v1578
        %vm1581 = vcmp.eq.f32.partialorder %v1445, 0.0
        %v1582 = vand.u32 %v1445, 2147483648
        %v1583 = vsel %vm1581, %v1582, %v1580
        %v1584 = vrsqrt.pop %v1448
        %v1585 = vmul.f32 %v1584, %v1448
        %v1586 = vmul.f32 %v1585, %v1584
        %v1587 = vmul.f32 0.5, %v1586
        %v1588 = vsub.f32 1.5, %v1587
        %v1589 = vmul.f32 %v1584, %v1588
        %v1590 = vmul.f32 %v1448, %v1589
        %vm1591 = vcmp.eq.f32.partialorder %v1448, inf
        %v1592 = vsel %vm1591, %v1448, %v1590
        %vm1593 = vcmp.eq.f32.partialorder %v1448, 0.0
        %v1594 = vand.u32 %v1448, 2147483648
        %v1595 = vsel %vm1593, %v1594, %v1592
        %v1596 = vrsqrt.pop %v1451
        %v1597 = vmul.f32 %v1596, %v1451
        %v1598 = vmul.f32 %v1597, %v1596
        %v1599 = vmul.f32 0.5, %v1598
        %v1600 = vsub.f32 1.5, %v1599
        %v1601 = vmul.f32 %v1596, %v1600
        %v1602 = vmul.f32 %v1451, %v1601
        %vm1603 = vcmp.eq.f32.partialorder %v1451, inf
        %v1604 = vsel %vm1603, %v1451, %v1602
        %vm1605 = vcmp.eq.f32.partialorder %v1451, 0.0
        %v1606 = vand.u32 %v1451, 2147483648
        %v1607 = vsel %vm1605, %v1606, %v1604
        %v1608 = vrsqrt.pop %v1454
        %v1609 = vmul.f32 %v1608, %v1454
        %v1610 = vmul.f32 %v1609, %v1608
        %v1611 = vmul.f32 0.5, %v1610
        %v1612 = vsub.f32 1.5, %v1611
        %v1613 = vmul.f32 %v1608, %v1612
        %v1614 = vmul.f32 %v1454, %v1613
        %vm1615 = vcmp.eq.f32.partialorder %v1454, inf
        %v1616 = vsel %vm1615, %v1454, %v1614
        %vm1617 = vcmp.eq.f32.partialorder %v1454, 0.0
        %v1618 = vand.u32 %v1454, 2147483648
        %v1619 = vsel %vm1617, %v1618, %v1616
        %v1620 = vrsqrt.pop %v1457
        %v1621 = vmul.f32 %v1620, %v1457
        %v1622 = vmul.f32 %v1621, %v1620
        %v1623 = vmul.f32 0.5, %v1622
        %v1624 = vsub.f32 1.5, %v1623
        %v1625 = vmul.f32 %v1620, %v1624
        %v1626 = vmul.f32 %v1457, %v1625
        %vm1627 = vcmp.eq.f32.partialorder %v1457, inf
        %v1628 = vsel %vm1627, %v1457, %v1626
        %vm1629 = vcmp.eq.f32.partialorder %v1457, 0.0
        %v1630 = vand.u32 %v1457, 2147483648
        %v1631 = vsel %vm1629, %v1630, %v1628
        %v1632 = vrsqrt.pop %v1460
        %v1633 = vmul.f32 %v1632, %v1460
        %v1634 = vmul.f32 %v1633, %v1632
        %v1635 = vmul.f32 0.5, %v1634
        %v1636 = vsub.f32 1.5, %v1635
        %v1637 = vmul.f32 %v1632, %v1636
        %v1638 = vmul.f32 %v1460, %v1637
        %vm1639 = vcmp.eq.f32.partialorder %v1460, inf
        %v1640 = vsel %vm1639, %v1460, %v1638
        %vm1641 = vcmp.eq.f32.partialorder %v1460, 0.0
        %v1642 = vand.u32 %v1460, 2147483648
        %v1643 = vsel %vm1641, %v1642, %v1640
        %v1644 = vrsqrt.pop %v1463
        %v1645 = vmul.f32 %v1644, %v1463
        %v1646 = vmul.f32 %v1645, %v1644
        %v1647 = vmul.f32 0.5, %v1646
        %v1648 = vsub.f32 1.5, %v1647
        %v1649 = vmul.f32 %v1644, %v1648
        %v1650 = vmul.f32 %v1463, %v1649
        %vm1651 = vcmp.eq.f32.partialorder %v1463, inf
        %v1652 = vsel %vm1651, %v1463, %v1650
        %vm1653 = vcmp.eq.f32.partialorder %v1463, 0.0
        %v1654 = vand.u32 %v1463, 2147483648
        %v1655 = vsel %vm1653, %v1654, %v1652
        %v1656 = vadd.f32 %v1027, 1e-10
        %v1657 = vadd.f32 %v1039, 1e-10
        %v1658 = vadd.f32 %v1051, 1e-10
        %v1659 = vadd.f32 %v1063, 1e-10
        %v1660 = vadd.f32 %v1075, 1e-10
        %v1661 = vadd.f32 %v1087, 1e-10
        %v1662 = vadd.f32 %v1099, 1e-10
        %v1663 = vadd.f32 %v1111, 1e-10
        %v1664 = vadd.f32 %v1123, 1e-10
        %v1665 = vadd.f32 %v1135, 1e-10
        %v1666 = vadd.f32 %v1147, 1e-10
        %v1667 = vadd.f32 %v1159, 1e-10
        %v1668 = vadd.f32 %v1171, 1e-10
        %v1669 = vadd.f32 %v1183, 1e-10
        %v1670 = vadd.f32 %v1195, 1e-10
        %v1671 = vadd.f32 %v1207, 1e-10
        %v1672 = vadd.f32 %v1219, 1e-10
        %v1673 = vadd.f32 %v1231, 1e-10
        %v1674 = vadd.f32 %v1243, 1e-10
        %v1675 = vadd.f32 %v1255, 1e-10
        %v1676 = vadd.f32 %v1267, 1e-10
        %v1677 = vadd.f32 %v1279, 1e-10
        %v1678 = vadd.f32 %v1291, 1e-10
        %v1679 = vadd.f32 %v1303, 1e-10
        %v1680 = vadd.f32 %v1315, 1e-10
        %v1681 = vadd.f32 %v1327, 1e-10
        %v1682 = vadd.f32 %v1339, 1e-10
        %v1683 = vadd.f32 %v1351, 1e-10
        %v1684 = vadd.f32 %v1363, 1e-10
        %v1685 = vadd.f32 %v1375, 1e-10
        %v1686 = vadd.f32 %v1387, 1e-10
        %v1687 = vadd.f32 %v1399, 1e-10
        %v1688 = vrcp.pop %v1656
        %v1689 = vrcp.pop %v1657
        %v1690 = vrcp.pop %v1658
        %v1691 = vrcp.pop %v1659
        %v1692 = vrcp.pop %v1660
        %v1693 = vrcp.pop %v1661
        %v1694 = vrcp.pop %v1662
        %v1695 = vrcp.pop %v1663
        %v1696 = vrcp.pop %v1664
        %v1697 = vrcp.pop %v1665
        %v1698 = vrcp.pop %v1666
        %v1699 = vrcp.pop %v1667
        %v1700 = vrcp.pop %v1668
        %v1701 = vrcp.pop %v1669
        %v1702 = vrcp.pop %v1670
        %v1703 = vrcp.pop %v1671
        %v1704 = vrcp.pop %v1672
        %v1705 = vrcp.pop %v1673
        %v1706 = vrcp.pop %v1674
        %v1707 = vrcp.pop %v1675
        %v1708 = vrcp.pop %v1676
        %v1709 = vrcp.pop %v1677
        %v1710 = vrcp.pop %v1678
        %v1711 = vrcp.pop %v1679
        %v1712 = vrcp.pop %v1680
        %v1713 = vrcp.pop %v1681
        %v1714 = vrcp.pop %v1682
        %v1715 = vrcp.pop %v1683
        %v1716 = vrcp.pop %v1684
        %v1717 = vrcp.pop %v1685
        %v1718 = vrcp.pop %v1686
        %v1719 = vrcp.pop %v1687
        %v1720 = vmul.f32 %v794, %v1688
        %v1721 = vmul.f32 %v797, %v1689
        %v1722 = vmul.f32 %v800, %v1690
        %v1723 = vmul.f32 %v803, %v1691
        %v1724 = vmul.f32 %v806, %v1692
        %v1725 = vmul.f32 %v809, %v1693
        %v1726 = vmul.f32 %v812, %v1694
        %v1727 = vmul.f32 %v815, %v1695
        %v1728 = vmul.f32 %v818, %v1696
        %v1729 = vmul.f32 %v821, %v1697
        %v1730 = vmul.f32 %v824, %v1698
        %v1731 = vmul.f32 %v827, %v1699
        %v1732 = vmul.f32 %v830, %v1700
        %v1733 = vmul.f32 %v833, %v1701
        %v1734 = vmul.f32 %v836, %v1702
        %v1735 = vmul.f32 %v839, %v1703
        %v1736 = vmul.f32 %v842, %v1704
        %v1737 = vmul.f32 %v845, %v1705
        %v1738 = vmul.f32 %v848, %v1706
        %v1739 = vmul.f32 %v851, %v1707
        %v1740 = vmul.f32 %v854, %v1708
        %v1741 = vmul.f32 %v857, %v1709
        %v1742 = vmul.f32 %v860, %v1710
        %v1743 = vmul.f32 %v863, %v1711
        %v1744 = vmul.f32 %v866, %v1712
        %v1745 = vmul.f32 %v869, %v1713
        %v1746 = vmul.f32 %v872, %v1714
        %v1747 = vmul.f32 %v875, %v1715
        %v1748 = vmul.f32 %v878, %v1716
        %v1749 = vmul.f32 %v881, %v1717
        %v1750 = vmul.f32 %v884, %v1718
        %v1751 = vmul.f32 %v887, %v1719
        %v1752 = vadd.f32 %v1475, 1e-10
        %v1753 = vadd.f32 %v1487, 1e-10
        %v1754 = vadd.f32 %v1499, 1e-10
        %v1755 = vadd.f32 %v1511, 1e-10
        %v1756 = vadd.f32 %v1523, 1e-10
        %v1757 = vadd.f32 %v1535, 1e-10
        %v1758 = vadd.f32 %v1547, 1e-10
        %v1759 = vadd.f32 %v1559, 1e-10
        %v1760 = vadd.f32 %v1571, 1e-10
        %v1761 = vadd.f32 %v1583, 1e-10
        %v1762 = vadd.f32 %v1595, 1e-10
        %v1763 = vadd.f32 %v1607, 1e-10
        %v1764 = vadd.f32 %v1619, 1e-10
        %v1765 = vadd.f32 %v1631, 1e-10
        %v1766 = vadd.f32 %v1643, 1e-10
        %v1767 = vadd.f32 %v1655, 1e-10
        %v1768 = vrcp.pop %v1752
        %v1769 = vrcp.pop %v1753
        %v1770 = vrcp.pop %v1754
        %v1771 = vrcp.pop %v1755
        %v1772 = vrcp.pop %v1756
        %v1773 = vrcp.pop %v1757
        %v1774 = vrcp.pop %v1758
        %v1775 = vrcp.pop %v1759
        %v1776 = vrcp.pop %v1760
        %v1777 = vrcp.pop %v1761
        %v1778 = vrcp.pop %v1762
        %v1779 = vrcp.pop %v1763
        %v1780 = vrcp.pop %v1764
        %v1781 = vrcp.pop %v1765
        %v1782 = vrcp.pop %v1766
        %v1783 = vrcp.pop %v1767
        %v1784 = vmul.f32 %v1720, %v1768
        %v1785 = vmul.f32 %v1721, %v1769
        %v1786 = vmul.f32 %v1722, %v1770
        %v1787 = vmul.f32 %v1723, %v1771
        %v1788 = vmul.f32 %v1724, %v1772
        %v1789 = vmul.f32 %v1725, %v1773
        %v1790 = vmul.f32 %v1726, %v1774
        %v1791 = vmul.f32 %v1727, %v1775
        %v1792 = vmul.f32 %v1728, %v1776
        %v1793 = vmul.f32 %v1729, %v1777
        %v1794 = vmul.f32 %v1730, %v1778
        %v1795 = vmul.f32 %v1731, %v1779
        %v1796 = vmul.f32 %v1732, %v1780
        %v1797 = vmul.f32 %v1733, %v1781
        %v1798 = vmul.f32 %v1734, %v1782
        %v1799 = vmul.f32 %v1735, %v1783
        %v1800 = vmul.f32 %v1736, %v1768
        %v1801 = vmul.f32 %v1737, %v1769
        %v1802 = vmul.f32 %v1738, %v1770
        %v1803 = vmul.f32 %v1739, %v1771
        %v1804 = vmul.f32 %v1740, %v1772
        %v1805 = vmul.f32 %v1741, %v1773
        %v1806 = vmul.f32 %v1742, %v1774
        %v1807 = vmul.f32 %v1743, %v1775
        %v1808 = vmul.f32 %v1744, %v1776
        %v1809 = vmul.f32 %v1745, %v1777
        %v1810 = vmul.f32 %v1746, %v1778
        %v1811 = vmul.f32 %v1747, %v1779
        %v1812 = vmul.f32 %v1748, %v1780
        %v1813 = vmul.f32 %v1749, %v1781
        %v1814 = vmul.f32 %v1750, %v1782
        %v1815 = vmul.f32 %v1751, %v1783
        %v1816 = vmax.f32 %v1784, %v1800
        %v1817 = vmax.f32 %v1785, %v1801
        %v1818 = vmax.f32 %v1786, %v1802
        %v1819 = vmax.f32 %v1787, %v1803
        %v1820 = vmax.f32 %v1788, %v1804
        %v1821 = vmax.f32 %v1789, %v1805
        %v1822 = vmax.f32 %v1790, %v1806
        %v1823 = vmax.f32 %v1791, %v1807
        %v1824 = vmax.f32 %v1792, %v1808
        %v1825 = vmax.f32 %v1793, %v1809
        %v1826 = vmax.f32 %v1794, %v1810
        %v1827 = vmax.f32 %v1795, %v1811
        %v1828 = vmax.f32 %v1796, %v1812
        %v1829 = vmax.f32 %v1797, %v1813
        %v1830 = vmax.f32 %v1798, %v1814
        %v1831 = vmax.f32 %v1799, %v1815
        %v1832 = vsub.f32 %v1784, %v1816
        %v1833 = vsub.f32 %v1785, %v1817
        %v1834 = vsub.f32 %v1786, %v1818
        %v1835 = vsub.f32 %v1787, %v1819
        %v1836 = vsub.f32 %v1788, %v1820
        %v1837 = vsub.f32 %v1789, %v1821
        %v1838 = vsub.f32 %v1790, %v1822
        %v1839 = vsub.f32 %v1791, %v1823
        %v1840 = vsub.f32 %v1792, %v1824
        %v1841 = vsub.f32 %v1793, %v1825
        %v1842 = vsub.f32 %v1794, %v1826
        %v1843 = vsub.f32 %v1795, %v1827
        %v1844 = vsub.f32 %v1796, %v1828
        %v1845 = vsub.f32 %v1797, %v1829
        %v1846 = vsub.f32 %v1798, %v1830
        %v1847 = vsub.f32 %v1799, %v1831
        %v1848 = vsub.f32 %v1800, %v1816
        %v1849 = vsub.f32 %v1801, %v1817
        %v1850 = vsub.f32 %v1802, %v1818
        %v1851 = vsub.f32 %v1803, %v1819
        %v1852 = vsub.f32 %v1804, %v1820
        %v1853 = vsub.f32 %v1805, %v1821
        %v1854 = vsub.f32 %v1806, %v1822
        %v1855 = vsub.f32 %v1807, %v1823
        %v1856 = vsub.f32 %v1808, %v1824
        %v1857 = vsub.f32 %v1809, %v1825
        %v1858 = vsub.f32 %v1810, %v1826
        %v1859 = vsub.f32 %v1811, %v1827
        %v1860 = vsub.f32 %v1812, %v1828
        %v1861 = vsub.f32 %v1813, %v1829
        %v1862 = vsub.f32 %v1814, %v1830
        %v1863 = vsub.f32 %v1815, %v1831
        %v1864 = vmul.f32 %v1832, 1.442695
        %v1865 = vpow.pop %v1864
        %v1866 = vmul.f32 %v1833, 1.442695
        %v1867 = vpow.pop %v1866
        %v1868 = vmul.f32 %v1834, 1.442695
        %v1869 = vpow.pop %v1868
        %v1870 = vmul.f32 %v1835, 1.442695
        %v1871 = vpow.pop %v1870
        %v1872 = vmul.f32 %v1836, 1.442695
        %v1873 = vpow.pop %v1872
        %v1874 = vmul.f32 %v1837, 1.442695
        %v1875 = vpow.pop %v1874
        %v1876 = vmul.f32 %v1838, 1.442695
        %v1877 = vpow.pop %v1876
        %v1878 = vmul.f32 %v1839, 1.442695
        %v1879 = vpow.pop %v1878
        %v1880 = vmul.f32 %v1840, 1.442695
        %v1881 = vpow.pop %v1880
        %v1882 = vmul.f32 %v1841, 1.442695
        %v1883 = vpow.pop %v1882
        %v1884 = vmul.f32 %v1842, 1.442695
        %v1885 = vpow.pop %v1884
        %v1886 = vmul.f32 %v1843, 1.442695
        %v1887 = vpow.pop %v1886
        %v1888 = vmul.f32 %v1844, 1.442695
        %v1889 = vpow.pop %v1888
        %v1890 = vmul.f32 %v1845, 1.442695
        %v1891 = vpow.pop %v1890
        %v1892 = vmul.f32 %v1846, 1.442695
        %v1893 = vpow.pop %v1892
        %v1894 = vmul.f32 %v1847, 1.442695
        %v1895 = vpow.pop %v1894
        %v1896 = vmul.f32 %v1848, 1.442695
        %v1897 = vpow.pop %v1896
        %v1898 = vmul.f32 %v1849, 1.442695
        %v1899 = vpow.pop %v1898
        %v1900 = vmul.f32 %v1850, 1.442695
        %v1901 = vpow.pop %v1900
        %v1902 = vmul.f32 %v1851, 1.442695
        %v1903 = vpow.pop %v1902
        %v1904 = vmul.f32 %v1852, 1.442695
        %v1905 = vpow.pop %v1904
        %v1906 = vmul.f32 %v1853, 1.442695
        %v1907 = vpow.pop %v1906
        %v1908 = vmul.f32 %v1854, 1.442695
        %v1909 = vpow.pop %v1908
        %v1910 = vmul.f32 %v1855, 1.442695
        %v1911 = vpow.pop %v1910
        %v1912 = vmul.f32 %v1856, 1.442695
        %v1913 = vpow.pop %v1912
        %v1914 = vmul.f32 %v1857, 1.442695
        %v1915 = vpow.pop %v1914
        %v1916 = vmul.f32 %v1858, 1.442695
        %v1917 = vpow.pop %v1916
        %v1918 = vmul.f32 %v1859, 1.442695
        %v1919 = vpow.pop %v1918
        %v1920 = vmul.f32 %v1860, 1.442695
        %v1921 = vpow.pop %v1920
        %v1922 = vmul.f32 %v1861, 1.442695
        %v1923 = vpow.pop %v1922
        %v1924 = vmul.f32 %v1862, 1.442695
        %v1925 = vpow.pop %v1924
        %v1926 = vmul.f32 %v1863, 1.442695
        %v1927 = vpow.pop %v1926
        %v1928 = vadd.f32 %v1865, %v1897
        %v1929 = vadd.f32 %v1867, %v1899
        %v1930 = vadd.f32 %v1869, %v1901
        %v1931 = vadd.f32 %v1871, %v1903
        %v1932 = vadd.f32 %v1873, %v1905
        %v1933 = vadd.f32 %v1875, %v1907
        %v1934 = vadd.f32 %v1877, %v1909
        %v1935 = vadd.f32 %v1879, %v1911
        %v1936 = vadd.f32 %v1881, %v1913
        %v1937 = vadd.f32 %v1883, %v1915
        %v1938 = vadd.f32 %v1885, %v1917
        %v1939 = vadd.f32 %v1887, %v1919
        %v1940 = vadd.f32 %v1889, %v1921
        %v1941 = vadd.f32 %v1891, %v1923
        %v1942 = vadd.f32 %v1893, %v1925
        %v1943 = vadd.f32 %v1895, %v1927
        %v1944 = vrcp.pop %v1928
        %v1945 = vrcp.pop %v1929
        %v1946 = vrcp.pop %v1930
        %v1947 = vrcp.pop %v1931
        %v1948 = vrcp.pop %v1932
        %v1949 = vrcp.pop %v1933
        %v1950 = vrcp.pop %v1934
        %v1951 = vrcp.pop %v1935
        %v1952 = vrcp.pop %v1936
        %v1953 = vrcp.pop %v1937
        %v1954 = vrcp.pop %v1938
        %v1955 = vrcp.pop %v1939
        %v1956 = vrcp.pop %v1940
        %v1957 = vrcp.pop %v1941
        %v1958 = vrcp.pop %v1942
        %v1959 = vrcp.pop %v1943
        %v1960 = vmul.f32 %v1865, %v1944
        %v1961 = vmul.f32 %v1867, %v1945
        %v1962 = vmul.f32 %v1869, %v1946
        %v1963 = vmul.f32 %v1871, %v1947
        %v1964 = vmul.f32 %v1873, %v1948
        %v1965 = vmul.f32 %v1875, %v1949
        %v1966 = vmul.f32 %v1877, %v1950
        %v1967 = vmul.f32 %v1879, %v1951
        %v1968 = vmul.f32 %v1881, %v1952
        %v1969 = vmul.f32 %v1883, %v1953
        %v1970 = vmul.f32 %v1885, %v1954
        %v1971 = vmul.f32 %v1887, %v1955
        %v1972 = vmul.f32 %v1889, %v1956
        %v1973 = vmul.f32 %v1891, %v1957
        %v1974 = vmul.f32 %v1893, %v1958
        %v1975 = vmul.f32 %v1895, %v1959
        %v1976 = vmul.f32 %v1897, %v1944
        %v1977 = vmul.f32 %v1899, %v1945
        %v1978 = vmul.f32 %v1901, %v1946
        %v1979 = vmul.f32 %v1903, %v1947
        %v1980 = vmul.f32 %v1905, %v1948
        %v1981 = vmul.f32 %v1907, %v1949
        %v1982 = vmul.f32 %v1909, %v1950
        %v1983 = vmul.f32 %v1911, %v1951
        %v1984 = vmul.f32 %v1913, %v1952
        %v1985 = vmul.f32 %v1915, %v1953
        %v1986 = vmul.f32 %v1917, %v1954
        %v1987 = vmul.f32 %v1919, %v1955
        %v1988 = vmul.f32 %v1921, %v1956
        %v1989 = vmul.f32 %v1923, %v1957
        %v1990 = vmul.f32 %v1925, %v1958
        %v1991 = vmul.f32 %v1927, %v1959
        %v1992 = vmul.f32 %v1960, %v396
        %v1993 = vmul.f32 %v1961, %v397
        %v1994 = vmul.f32 %v1962, %v398
        %v1995 = vmul.f32 %v1963, %v399
        %v1996 = vmul.f32 %v1964, %v400
        %v1997 = vmul.f32 %v1965, %v401
        %v1998 = vmul.f32 %v1966, %v402
        %v1999 = vmul.f32 %v1967, %v403
        %v2000 = vmul.f32 %v1968, %v404
        %v2001 = vmul.f32 %v1969, %v405
        %v2002 = vmul.f32 %v1970, %v406
        %v2003 = vmul.f32 %v1971, %v407
        %v2004 = vmul.f32 %v1972, %v408
        %v2005 = vmul.f32 %v1973, %v409
        %v2006 = vmul.f32 %v1974, %v410
        %v2007 = vmul.f32 %v1975, %v411
        %v2008 = vmul.f32 %v1976, %v412
        %v2009 = vmul.f32 %v1977, %v413
        %v2010 = vmul.f32 %v1978, %v414
        %v2011 = vmul.f32 %v1979, %v415
        %v2012 = vmul.f32 %v1980, %v416
        %v2013 = vmul.f32 %v1981, %v417
        %v2014 = vmul.f32 %v1982, %v418
        %v2015 = vmul.f32 %v1983, %v419
        %v2016 = vmul.f32 %v1984, %v420
        %v2017 = vmul.f32 %v1985, %v421
        %v2018 = vmul.f32 %v1986, %v422
        %v2019 = vmul.f32 %v1987, %v423
        %v2020 = vmul.f32 %v1988, %v424
        %v2021 = vmul.f32 %v1989, %v425
        %v2022 = vmul.f32 %v1990, %v426
        %v2023 = vmul.f32 %v1991, %v427
        %v2024 = vsel %vm436, %v1992, 0.0
        %v2025 = vsel %vm436, %v2008, 0.0
        %v2026 = vadd.f32 %v2024, %v2025
        %v2027 = vsel %vm436, %v1993, 0.0
        %v2028 = vsel %vm436, %v2009, 0.0
        %v2029 = vadd.f32 %v2027, %v2028
        %v2030 = vsel %vm436, %v1994, 0.0
        %v2031 = vsel %vm436, %v2010, 0.0
        %v2032 = vadd.f32 %v2030, %v2031
        %v2033 = vsel %vm436, %v1995, 0.0
        %v2034 = vsel %vm436, %v2011, 0.0
        %v2035 = vadd.f32 %v2033, %v2034
        %v2036 = vsel %vm436, %v1996, 0.0
        %v2037 = vsel %vm436, %v2012, 0.0
        %v2038 = vadd.f32 %v2036, %v2037
        %v2039 = vsel %vm436, %v1997, 0.0
        %v2040 = vsel %vm436, %v2013, 0.0
        %v2041 = vadd.f32 %v2039, %v2040
        %v2042 = vsel %vm436, %v1998, 0.0
        %v2043 = vsel %vm436, %v2014, 0.0
        %v2044 = vadd.f32 %v2042, %v2043
        %v2045 = vsel %vm436, %v1999, 0.0
        %v2046 = vsel %vm436, %v2015, 0.0
        %v2047 = vadd.f32 %v2045, %v2046
        %v2048 = vsel %vm436, %v2000, 0.0
        %v2049 = vsel %vm436, %v2016, 0.0
        %v2050 = vadd.f32 %v2048, %v2049
        %v2051 = vsel %vm436, %v2001, 0.0
        %v2052 = vsel %vm436, %v2017, 0.0
        %v2053 = vadd.f32 %v2051, %v2052
        %v2054 = vsel %vm436, %v2002, 0.0
        %v2055 = vsel %vm436, %v2018, 0.0
        %v2056 = vadd.f32 %v2054, %v2055
        %v2057 = vsel %vm436, %v2003, 0.0
        %v2058 = vsel %vm436, %v2019, 0.0
        %v2059 = vadd.f32 %v2057, %v2058
        %v2060 = vsel %vm436, %v2004, 0.0
        %v2061 = vsel %vm436, %v2020, 0.0
        %v2062 = vadd.f32 %v2060, %v2061
        %v2063 = vsel %vm436, %v2005, 0.0
        %v2064 = vsel %vm436, %v2021, 0.0
        %v2065 = vadd.f32 %v2063, %v2064
        %v2066 = vsel %vm436, %v2006, 0.0
        %v2067 = vsel %vm436, %v2022, 0.0
        %v2068 = vadd.f32 %v2066, %v2067
        %v2069 = vsel %vm436, %v2007, 0.0
        %v2070 = vsel %vm436, %v2023, 0.0
        %v2071 = vadd.f32 %v2069, %v2070
        %2072 = vst.msk [vmem:[%s371] sm:$0xff] %vm436, %v2026
        %2073 = vst.msk [vmem:[%s371 + $0x8] sm:$0xff] %vm436, %v2029
        %2074 = vst.msk [vmem:[%s371 + $0x10] sm:$0xff] %vm436, %v2032
        %2075 = vst.msk [vmem:[%s371 + $0x18] sm:$0xff] %vm436, %v2035
        %2076 = vst.msk [vmem:[%s371 + $0x20] sm:$0xff] %vm436, %v2038
        %2077 = vst.msk [vmem:[%s371 + $0x28] sm:$0xff] %vm436, %v2041
        %2078 = vst.msk [vmem:[%s371 + $0x30] sm:$0xff] %vm436, %v2044
        %2079 = vst.msk [vmem:[%s371 + $0x38] sm:$0xff] %vm436, %v2047
        %2080 = vst.msk [vmem:[%s371 + $0x40] sm:$0xff] %vm436, %v2050
        %2081 = vst.msk [vmem:[%s371 + $0x48] sm:$0xff] %vm436, %v2053
        %2082 = vst.msk [vmem:[%s371 + $0x50] sm:$0xff] %vm436, %v2056
        %2083 = vst.msk [vmem:[%s371 + $0x58] sm:$0xff] %vm436, %v2059
        %2084 = vst.msk [vmem:[%s371 + $0x60] sm:$0xff] %vm436, %v2062
        %2085 = vst.msk [vmem:[%s371 + $0x68] sm:$0xff] %vm436, %v2065
        %2086 = vst.msk [vmem:[%s371 + $0x70] sm:$0xff] %vm436, %v2068
        %2087 = vst.msk [vmem:[%s371 + $0x78] sm:$0xff] %vm436, %v2071
        %s2088 = sand.u32 %s120, 1
        %s2089 = scalar_lea.sflag [#allocation4], %s2088
        %s2090 = sand.u32 %s120, 1
        %s2091 = smul.addr %s2090, 128
        %s2092 = scalar_lea.vmem [#allocation3], %s2091
        // Predicated region
        $region75: #{fgfa_forward.5} parent=69 // pred_check
          %p2093 = pneg %p130
        $region76: #{fgfa_forward.5} parent=69 // pred_check_branch
          %2095 = sbr.rel (%p2093) target = $region78
        $region77: #{fgfa_forward.5} parent=69 // pred_region
          %s2096 = smul.u32 16, %s18
          %2098 = vsyncadd %s2089, 0
          %s2099 = smul.addr %s2096, 8
          %s2100 = scalar_lea.hbm %s4, %s2099
          %s2101 = sshll.u32 %s2092, 4
          %s2102 = int_to_ptr.vmem [resolvable:$true] %s2101
          %s2103 = sshll.u32 %s2100, 4
          %s2104 = int_to_ptr.hbm [resolvable:$true] %s2103
          %2109 = dma.vmem_to_hbm [thread:$0]  %s2102, 2048, %s2104, %s2089, 128, 128, 8
        $region78: #{fgfa_forward.5} parent=69 // pred_fallthru
          _
      $region70: #{fgfa_forward.5} parent=5 // pred_fallthru
        _
      %p2110 = scmp.le.s32.totalorder 2, %s13
      // Predicated region
      $region79: #{fgfa_forward.5} parent=5 // pred_check
        %p2111 = pneg %p2110
      $region80: #{fgfa_forward.5} parent=5 // pred_check_branch
        %2113 = sbr.rel (%p2111) target = $region82
      $region81: #{fgfa_forward.5} parent=5 // pred_region
        %s2114 = ssub.s32 %s13, 2
        // Predicated region
        $region83: #{fgfa_forward.5} parent=81 // pred_check
          %p2115 = pneg %p136
        $region84: #{fgfa_forward.5} parent=81 // pred_check_branch
          %2117 = sbr.rel (%p2115) target = $region86
        $region85: #{fgfa_forward.5} parent=81 // pred_region
          %s2118 = sand.u32 %s121, 1
          %s2119 = scalar_lea.sflag [#allocation4], %s2118
          %s2120 = sand.u32 %s121, 1
          %s2121 = smul.addr %s2120, 128
          %s2122 = scalar_lea.vmem [#allocation3], %s2121
          %2124 = dma.done %s2119, 2048
        $region86: #{fgfa_forward.5} parent=81 // pred_fallthru
          _
      $region82: #{fgfa_forward.5} parent=5 // pred_fallthru
        _
    $region6: #{fgfa_forward.5} parent=1 // loop_footer
      %s17 = sadd.s32 1, %s13
    $region7: #{fgfa_forward.5} parent=1 // loop_footer_branch
      %12 = sbr.rel target = $region3
    $region8: #{fgfa_forward.5} parent=1 // loop_exit
      _
    %2125 = vsyncpa [#allocation4], 1
    %s2126 = scalar_lea.sflag [#allocation4], 1
    %2127 = vsyncpa %s2126, 1

// kernel: fgfa_forward.4
$region0: #{fgfa_forward.4}
  #allocation0 [shape = 'u32[]', space=smem, size = 0x4, offset = 0x4, fixed_abs, tag = 'smem constant byte address 0x4 - core index']
  #allocation1 [shape = 'u32[72,128]{1,0:T(1,128)}', space=vmem, size = 0x9000, scoped, tag = 'internal scratch']
  %s0 = inlined_call_operand.vmem [shape: f32[3,256,8], index: 0, kind: input, shape index: {}, may-alias: {0,1}]
  %s1 = inlined_call_operand.vmem [shape: f32[3,256,8], index: 1, kind: input, shape index: {}, may-alias: {0,1}]
  %s2 = inlined_call_operand.vmem [shape: f32[2,256,32], index: 2, kind: input, shape index: {}]
  %s3 = inlined_call_operand.vmem [shape: f32[8,128], index: 3, kind: input, shape index: {}]
  %s4 = inlined_call_operand.vmem [shape: f32[8,128], index: 4, kind: input, shape index: {}]
  %s5 = inlined_call_operand.vmem [shape: f32[1,128], index: 5, kind: input, shape index: {}]
  %s6 = inlined_call_operand.vmem [shape: f32[2,256,32], index: 6, kind: output, shape index: {}]
  %s7 = sld [smem:[#allocation0]]
  $region57: #{fgfa_forward.4} parent=0
    _
  %s9 = ssub.s32 1, %s7
  %s10 = scalar_select 0, %s9, %s7
  loop: start=0, step=1, limit=6
  $region2: #{fgfa_forward.4} parent=0 // loop_pre_header
    _
  $region3: #{fgfa_forward.4} parent=0 // loop_header
    %s12 = sphi 0, %s16
    %p13 = scmp.ge.s32.totalorder %s12, 6
    %s19 = sphi 0, %s31
    %s20 = sphi 0, %s27
    %s21 = sphi 0, %s19
    %s22 = sphi 0, %s20
    %s23 = sphi 0, %s21
    %s24 = sphi 0, %s22
    %s34 = sphi 0, %s36
    %s37 = sphi 0, %s34
    %s38 = sphi 0, %s37
    %s54 = sphi 0, %s38
    %s64 = sphi 0, %s66
    %s67 = sphi 0, %s64
    %s68 = sphi 0, %s67
    %s84 = sphi 0, %s68
    %s90 = sphi 0, %s92
    %s93 = sphi 0, %s90
    %s94 = sphi 0, %s93
    %s110 = sphi 0, %s94
    %s114 = sphi 0, %s114
    %s116 = sphi 0, %s114
    %s117 = sphi 0, %s116
    %s131 = sphi 0, %s117
    %s135 = sphi 0, %s135
    %s137 = sphi 0, %s135
    %s138 = sphi 0, %s137
    %s152 = sphi 0, %s138
    %s156 = sphi 0, %s156
    %s158 = sphi 0, %s156
    %s159 = sphi 0, %s158
    %s173 = sphi 0, %s159
    %s181 = sphi 0, %s183
    %s184 = sphi 0, %s181
    %s185 = sphi 0, %s184
    %s201 = sphi 0, %s185
  $region4: #{fgfa_forward.4} parent=0 // loop_header_branch
    %15 = sbr.rel (%p13) target = $region8
  $region5: #{fgfa_forward.4} parent=0 // loop_body
    %s17 = ssub.s32 %s12, 1
    %s18 = ssub.s32 %s12, 2
    %s25 = sadd.s32 1, %s20
    %p26 = scmp.ge.s32.totalorder %s25, 2
    %s27 = scalar_select %p26, 0, %s25
    %s28 = sadd.s32 1, %s19
    %s29 = scalar_select %p26, %s28, %s19
    %p30 = scmp.ge.s32.totalorder %s29, 2
    %s31 = scalar_select %p30, 0, %s29
    %s32 = ssub.s32 %s20, %s27
    %p33 = scmp.eq.s32.totalorder %s32, 0
    %s35 = sadd.s32 %s34, 1
    %s36 = scalar_select %p33, %s34, %s35
    %p39 = pneg %p33
    %p40 = scmp.eq.s32.totalorder %s12, 3
    %p41 = por %p39, %p40
    %p42 = scmp.ne.s32.totalorder %s34, %s37
    %p43 = scmp.eq.s32.totalorder %s12, 0
    %p44 = por %p42, %p43
    %p45 = scmp.ne.s32.totalorder %s34, %s37
    %p46 = scmp.eq.s32.totalorder %s17, 3
    %p47 = por %p45, %p46
    %p48 = scmp.ne.s32.totalorder %s37, %s38
    %p49 = scmp.eq.s32.totalorder %s17, 0
    %p50 = por %p48, %p49
    %p51 = scmp.ne.s32.totalorder %s37, %s38
    %p52 = scmp.eq.s32.totalorder %s18, 3
    %p53 = por %p51, %p52
    %p55 = scmp.ne.s32.totalorder %s38, %s54
    %p56 = scmp.eq.s32.totalorder %s18, 0
    %p57 = por %p55, %p56
    %s58 = sadd.s32 %s19, 1
    %s59 = sadd.s32 %s31, 1
    %s60 = ssub.s32 %s58, %s59
    %s61 = ssub.s32 %s20, %s27
    %s62 = sor.u32 %s60, %s61
    %p63 = scmp.eq.s32.totalorder %s62, 0
    %s65 = sadd.s32 %s64, 1
    %s66 = scalar_select %p63, %s64, %s65
    %p69 = pneg %p63
    %p70 = scmp.eq.s32.totalorder %s12, 3
    %p71 = por %p69, %p70
    %p72 = scmp.ne.s32.totalorder %s64, %s67
    %p73 = scmp.eq.s32.totalorder %s12, 0
    %p74 = por %p72, %p73
    %p75 = scmp.ne.s32.totalorder %s64, %s67
    %p76 = scmp.eq.s32.totalorder %s17, 3
    %p77 = por %p75, %p76
    %p78 = scmp.ne.s32.totalorder %s67, %s68
    %p79 = scmp.eq.s32.totalorder %s17, 0
    %p80 = por %p78, %p79
    %p81 = scmp.ne.s32.totalorder %s67, %s68
    %p82 = scmp.eq.s32.totalorder %s18, 3
    %p83 = por %p81, %p82
    %p85 = scmp.ne.s32.totalorder %s68, %s84
    %p86 = scmp.eq.s32.totalorder %s18, 0
    %p87 = por %p85, %p86
    %s88 = ssub.s32 %s19, %s31
    %p89 = scmp.eq.s32.totalorder %s88, 0
    %s91 = sadd.s32 %s90, 1
    %s92 = scalar_select %p89, %s90, %s91
    %p95 = pneg %p89
    %p96 = scmp.eq.s32.totalorder %s12, 3
    %p97 = por %p95, %p96
    %p98 = scmp.ne.s32.totalorder %s90, %s93
    %p99 = scmp.eq.s32.totalorder %s12, 0
    %p100 = por %p98, %p99
    %p101 = scmp.ne.s32.totalorder %s90, %s93
    %p102 = scmp.eq.s32.totalorder %s17, 3
    %p103 = por %p101, %p102
    %p104 = scmp.ne.s32.totalorder %s93, %s94
    %p105 = scmp.eq.s32.totalorder %s17, 0
    %p106 = por %p104, %p105
    %p107 = scmp.ne.s32.totalorder %s93, %s94
    %p108 = scmp.eq.s32.totalorder %s18, 3
    %p109 = por %p107, %p108
    %p111 = scmp.ne.s32.totalorder %s94, %s110
    %p112 = scmp.eq.s32.totalorder %s18, 0
    %p113 = por %p111, %p112
    %s115 = sadd.s32 %s114, 1
    %p118 = scmp.eq.s32.totalorder %s12, 3
    %p119 = scmp.ne.s32.totalorder %s114, %s116
    %p120 = scmp.eq.s32.totalorder %s12, 0
    %p121 = por %p119, %p120
    %p122 = scmp.ne.s32.totalorder %s114, %s116
    %p123 = scmp.eq.s32.totalorder %s17, 3
    %p124 = por %p122, %p123
    %p125 = scmp.ne.s32.totalorder %s116, %s117
    %p126 = scmp.eq.s32.totalorder %s17, 0
    %p127 = por %p125, %p126
    %p128 = scmp.ne.s32.totalorder %s116, %s117
    %p129 = scmp.eq.s32.totalorder %s18, 3
    %p130 = por %p128, %p129
    %p132 = scmp.ne.s32.totalorder %s117, %s131
    %p133 = scmp.eq.s32.totalorder %s18, 0
    %p134 = por %p132, %p133
    %s136 = sadd.s32 %s135, 1
    %p139 = scmp.eq.s32.totalorder %s12, 3
    %p140 = scmp.ne.s32.totalorder %s135, %s137
    %p141 = scmp.eq.s32.totalorder %s12, 0
    %p142 = por %p140, %p141
    %p143 = scmp.ne.s32.totalorder %s135, %s137
    %p144 = scmp.eq.s32.totalorder %s17, 3
    %p145 = por %p143, %p144
    %p146 = scmp.ne.s32.totalorder %s137, %s138
    %p147 = scmp.eq.s32.totalorder %s17, 0
    %p148 = por %p146, %p147
    %p149 = scmp.ne.s32.totalorder %s137, %s138
    %p150 = scmp.eq.s32.totalorder %s18, 3
    %p151 = por %p149, %p150
    %p153 = scmp.ne.s32.totalorder %s138, %s152
    %p154 = scmp.eq.s32.totalorder %s18, 0
    %p155 = por %p153, %p154
    %s157 = sadd.s32 %s156, 1
    %p160 = scmp.eq.s32.totalorder %s12, 3
    %p161 = scmp.ne.s32.totalorder %s156, %s158
    %p162 = scmp.eq.s32.totalorder %s12, 0
    %p163 = por %p161, %p162
    %p164 = scmp.ne.s32.totalorder %s156, %s158
    %p165 = scmp.eq.s32.totalorder %s17, 3
    %p166 = por %p164, %p165
    %p167 = scmp.ne.s32.totalorder %s158, %s159
    %p168 = scmp.eq.s32.totalorder %s17, 0
    %p169 = por %p167, %p168
    %p170 = scmp.ne.s32.totalorder %s158, %s159
    %p171 = scmp.eq.s32.totalorder %s18, 3
    %p172 = por %p170, %p171
    %p174 = scmp.ne.s32.totalorder %s159, %s173
    %p175 = scmp.eq.s32.totalorder %s18, 0
    %p176 = por %p174, %p175
    %s177 = ssub.s32 %s19, %s31
    %s178 = ssub.s32 %s20, %s27
    %s179 = sor.u32 %s177, %s178
    %p180 = scmp.eq.s32.totalorder %s179, 0
    %s182 = sadd.s32 %s181, 1
    %s183 = scalar_select %p180, %s181, %s182
    %p186 = pneg %p180
    %p187 = scmp.eq.s32.totalorder %s12, 3
    %p188 = por %p186, %p187
    %p189 = scmp.ne.s32.totalorder %s181, %s184
    %p190 = scmp.eq.s32.totalorder %s12, 0
    %p191 = por %p189, %p190
    %p192 = scmp.ne.s32.totalorder %s181, %s184
    %p193 = scmp.eq.s32.totalorder %s17, 3
    %p194 = por %p192, %p193
    %p195 = scmp.ne.s32.totalorder %s184, %s185
    %p196 = scmp.eq.s32.totalorder %s17, 0
    %p197 = por %p195, %p196
    %p198 = scmp.ne.s32.totalorder %s184, %s185
    %p199 = scmp.eq.s32.totalorder %s18, 3
    %p200 = por %p198, %p199
    %p202 = scmp.ne.s32.totalorder %s185, %s201
    %p203 = scmp.eq.s32.totalorder %s18, 0
    %p204 = por %p202, %p203
    %p205 = scmp.le.s32.totalorder 1, %s12
    %p206 = scmp.lt.s32.totalorder %s12, 5
    %p207 = pnand %p205, %p206
    %p208 = pneg %p207
    // Predicated region
    $region9: #{fgfa_forward.4} parent=5 // pred_check
      _
    $region10: #{fgfa_forward.4} parent=5 // pred_check_branch
      %210 = sbr.rel (%p207) target = $region12
    $region11: #{fgfa_forward.4} parent=5 // pred_region
      %s211 = ssub.s32 %s12, 1
      // Predicated region
      $region13: #{fgfa_forward.4} parent=11 // pred_check
        %p212 = pneg %p127
      $region14: #{fgfa_forward.4} parent=11 // pred_check_branch
        %214 = sbr.rel (%p212) target = $region16
      $region15: #{fgfa_forward.4} parent=11 // pred_region
        _
      $region16: #{fgfa_forward.4} parent=11 // pred_fallthru
        _
      // Predicated region
      $region17: #{fgfa_forward.4} parent=11 // pred_check
        %p215 = pneg %p148
      $region18: #{fgfa_forward.4} parent=11 // pred_check_branch
        %217 = sbr.rel (%p215) target = $region20
      $region19: #{fgfa_forward.4} parent=11 // pred_region
        _
      $region20: #{fgfa_forward.4} parent=11 // pred_fallthru
        _
      // Predicated region
      $region21: #{fgfa_forward.4} parent=11 // pred_check
        %p218 = pneg %p169
      $region22: #{fgfa_forward.4} parent=11 // pred_check_branch
        %220 = sbr.rel (%p218) target = $region24
      $region23: #{fgfa_forward.4} parent=11 // pred_region
        _
      $region24: #{fgfa_forward.4} parent=11 // pred_fallthru
        _
    $region12: #{fgfa_forward.4} parent=5 // pred_fallthru
      _
    %p221 = scmp.lt.s32.totalorder %s12, 4
    // Predicated region
    $region25: #{fgfa_forward.4} parent=5 // pred_check
      %p222 = pneg %p221
    $region26: #{fgfa_forward.4} parent=5 // pred_check_branch
      %224 = sbr.rel (%p222) target = $region28
    $region27: #{fgfa_forward.4} parent=5 // pred_region
      // Predicated region
      $region29: #{fgfa_forward.4} parent=27 // pred_check
        %p225 = pneg %p44
      $region30: #{fgfa_forward.4} parent=27 // pred_check_branch
        %227 = sbr.rel (%p225) target = $region32
      $region31: #{fgfa_forward.4} parent=27 // pred_region
        %s228 = smul.u32 16, %s20
        %p229 = scmp.lt.s32.totalorder %s228, 31
        %s230 = scalar_select %p229, %s228, 31
        %s231 = smul.addr %s230, 8
        %s232 = scalar_lea.vmem %s0, %s231
        %s233 = smul.u32 16, %s20
      $region32: #{fgfa_forward.4} parent=27 // pred_fallthru
        _
      // Predicated region
      $region33: #{fgfa_forward.4} parent=27 // pred_check
        %p234 = pneg %p74
      $region34: #{fgfa_forward.4} parent=27 // pred_check_branch
        %236 = sbr.rel (%p234) target = $region36
      $region35: #{fgfa_forward.4} parent=27 // pred_region
        %s237 = sadd.s32 %s19, 1
        %s238 = smul.u32 16, %s20
        %p239 = scmp.lt.s32.totalorder %s237, 2
        %s240 = scalar_select %p239, %s237, 2
        %p241 = scmp.lt.s32.totalorder %s238, 31
        %s242 = scalar_select %p241, %s238, 31
        %s243 = smul.addr %s240, 32
        %s244 = sadd.s32 %s242, %s243
        %s245 = smul.addr %s244, 8
        %s246 = scalar_lea.vmem %s1, %s245
        %s247 = sadd.s32 %s19, 1
        %s248 = smul.u32 16, %s20
      $region36: #{fgfa_forward.4} parent=27 // pred_fallthru
        _
      // Predicated region
      $region37: #{fgfa_forward.4} parent=27 // pred_check
        %p249 = pneg %p100
      $region38: #{fgfa_forward.4} parent=27 // pred_check_branch
        %251 = sbr.rel (%p249) target = $region40
      $region39: #{fgfa_forward.4} parent=27 // pred_region
        %p252 = scmp.lt.s32.totalorder %s19, 1
        %s253 = scalar_select %p252, %s19, 1
        %s254 = smul.addr %s253, 32
        %s255 = smul.addr %s254, 8
        %s256 = scalar_lea.vmem %s2, %s255
      $region40: #{fgfa_forward.4} parent=27 // pred_fallthru
        _
    $region28: #{fgfa_forward.4} parent=5 // pred_fallthru
      _
    %p257 = scmp.le.s32.totalorder 1, %s12
    %p258 = scmp.lt.s32.totalorder %s12, 5
    %p259 = pnand %p257, %p258
    %p260 = pneg %p259
    // Predicated region
    $region41: #{fgfa_forward.4} parent=5 // pred_check
      _
    $region42: #{fgfa_forward.4} parent=5 // pred_check_branch
      %262 = sbr.rel (%p259) target = $region44
    $region43: #{fgfa_forward.4} parent=5 // pred_region
      %s263 = ssub.s32 %s12, 1
      %s264 = smul.u32 16, %s22
      %p265 = scmp.lt.s32.totalorder %s264, 31
      %s266 = scalar_select %p265, %s264, 31
      %s267 = smul.addr %s266, 8
      %s268 = scalar_lea.vmem %s0, %s267
      %p269 = pneg %p50
      %p270 = pneg %p47
      %s271 = sadd.s32 %s21, 1
      %s272 = smul.u32 16, %s22
      %p273 = scmp.lt.s32.totalorder %s271, 2
      %s274 = scalar_select %p273, %s271, 2
      %p275 = scmp.lt.s32.totalorder %s272, 31
      %s276 = scalar_select %p275, %s272, 31
      %s277 = smul.addr %s274, 32
      %s278 = sadd.s32 %s276, %s277
      %s279 = smul.addr %s278, 8
      %s280 = scalar_lea.vmem %s1, %s279
      %p281 = pneg %p80
      %p282 = pneg %p77
      %p283 = scmp.lt.s32.totalorder %s21, 1
      %s284 = scalar_select %p283, %s21, 1
      %s285 = smul.addr %s284, 32
      %s286 = smul.addr %s285, 8
      %s287 = scalar_lea.vmem %s2, %s286
      %p288 = pneg %p106
      %p289 = pneg %p103
      %p290 = pneg %p127
      %p291 = pneg %p124
      %p292 = pneg %p148
      %p293 = pneg %p145
      %p294 = pneg %p169
      %p295 = pneg %p166
      %p296 = pneg %p197
      %p297 = pneg %p194
      %s298 = smul.u32 16, %s22
      %p299 = scmp.lt.s32.totalorder %s21, 1
      %s300 = scalar_select %p299, %s21, 1
      %p301 = scmp.lt.s32.totalorder %s298, 31
      %s302 = scalar_select %p301, %s298, 31
      %s303 = smul.addr %s300, 32
      %s304 = sadd.s32 %s302, %s303
      %s305 = smul.addr %s304, 8
      %s306 = scalar_lea.vmem %s6, %s305
      %s307 = smul.u32 16, %s22
      %p308 = scmp.lt.s32.totalorder %s307, 31
      %s309 = scalar_select %p308, %s307, 31
      %s310 = smul.addr %s309, 8
      %s311 = scalar_lea.vmem %s0, %s310
      %s312 = smul.u32 16, %s22
      %s313 = sadd.s32 %s21, 1
      %s314 = smul.u32 16, %s22
      %p315 = scmp.lt.s32.totalorder %s313, 2
      %s316 = scalar_select %p315, %s313, 2
      %p317 = scmp.lt.s32.totalorder %s314, 31
      %s318 = scalar_select %p317, %s314, 31
      %s319 = smul.addr %s316, 32
      %s320 = sadd.s32 %s318, %s319
      %s321 = smul.addr %s320, 8
      %s322 = scalar_lea.vmem %s1, %s321
      %s323 = sadd.s32 %s21, 1
      %s324 = smul.u32 16, %s22
      %p325 = scmp.lt.s32.totalorder %s21, 1
      %s326 = scalar_select %p325, %s21, 1
      %s327 = smul.addr %s326, 32
      %s328 = smul.addr %s327, 8
      %s329 = scalar_lea.vmem %s2, %s328
      %s330 = smul.u32 16, %s22
      %p331 = scmp.lt.s32.totalorder %s21, 1
      %s332 = scalar_select %p331, %s21, 1
      %p333 = scmp.lt.s32.totalorder %s330, 31
      %s334 = scalar_select %p333, %s330, 31
      %s335 = smul.addr %s332, 32
      %s336 = sadd.s32 %s334, %s335
      %s337 = smul.addr %s336, 8
      %s338 = scalar_lea.vmem %s6, %s337
      %s339 = smul.u32 16, %s22
      %v340 = vld [vmem:[%s311] sm:$0xff]
      %v341 = vld [vmem:[%s311 + $0x8] sm:$0xff]
      %v342 = vld [vmem:[%s311 + $0x10] sm:$0xff]
      %v343 = vld [vmem:[%s311 + $0x18] sm:$0xff]
      %v344 = vld [vmem:[%s311 + $0x20] sm:$0xff]
      %v345 = vld [vmem:[%s311 + $0x28] sm:$0xff]
      %v346 = vld [vmem:[%s311 + $0x30] sm:$0xff]
      %v347 = vld [vmem:[%s311 + $0x38] sm:$0xff]
      %v348 = vld [vmem:[%s311 + $0x40] sm:$0xff]
      %v349 = vld [vmem:[%s311 + $0x48] sm:$0xff]
      %v350 = vld [vmem:[%s311 + $0x50] sm:$0xff]
      %v351 = vld [vmem:[%s311 + $0x58] sm:$0xff]
      %v352 = vld [vmem:[%s311 + $0x60] sm:$0xff]
      %v353 = vld [vmem:[%s311 + $0x68] sm:$0xff]
      %v354 = vld [vmem:[%s311 + $0x70] sm:$0xff]
      %v355 = vld [vmem:[%s311 + $0x78] sm:$0xff]
      %v356 = vld [vmem:[%s3] sm:$0xff]
      %v357 = vld [vmem:[%s322] sm:$0xff]
      %v358 = vld [vmem:[%s322 + $0x8] sm:$0xff]
      %v359 = vld [vmem:[%s322 + $0x10] sm:$0xff]
      %v360 = vld [vmem:[%s322 + $0x18] sm:$0xff]
      %v361 = vld [vmem:[%s322 + $0x20] sm:$0xff]
      %v362 = vld [vmem:[%s322 + $0x28] sm:$0xff]
      %v363 = vld [vmem:[%s322 + $0x30] sm:$0xff]
      %v364 = vld [vmem:[%s322 + $0x38] sm:$0xff]
      %v365 = vld [vmem:[%s322 + $0x40] sm:$0xff]
      %v366 = vld [vmem:[%s322 + $0x48] sm:$0xff]
      %v367 = vld [vmem:[%s322 + $0x50] sm:$0xff]
      %v368 = vld [vmem:[%s322 + $0x58] sm:$0xff]
      %v369 = vld [vmem:[%s322 + $0x60] sm:$0xff]
      %v370 = vld [vmem:[%s322 + $0x68] sm:$0xff]
      %v371 = vld [vmem:[%s322 + $0x70] sm:$0xff]
      %v372 = vld [vmem:[%s322 + $0x78] sm:$0xff]
      %v373 = vld [vmem:[%s4] sm:$0xff]
      %vm374 = vcmask 64512
      %v376 = vsel %vm374, %v357, 0
      %v379 = vsel %vm374, %v358, 0
      %v382 = vsel %vm374, %v359, 0
      %v385 = vsel %vm374, %v360, 0
      %v388 = vsel %vm374, %v361, 0
      %v391 = vsel %vm374, %v362, 0
      %v394 = vsel %vm374, %v363, 0
      %v397 = vsel %vm374, %v364, 0
      %v400 = vsel %vm374, %v365, 0
      %v403 = vsel %vm374, %v366, 0
      %v406 = vsel %vm374, %v367, 0
      %v409 = vsel %vm374, %v368, 0
      %v412 = vsel %vm374, %v369, 0
      %v415 = vsel %vm374, %v370, 0
      %v418 = vsel %vm374, %v371, 0
      %v421 = vsel %vm374, %v372, 0
      %423 = vmatpush.msra.mxu0 0.0
      %424 = vmatpush.msra.mxu0 0.0
      %425 = vmatpush.msra.mxu0 0.0
      %426 = vmatpush.msra.mxu0 0.0
      %427 = vmatpush.msra.mxu0 0.0
      %428 = vmatpush.msra.mxu0 0.0
      %429 = vmatpush.msra.mxu0 0.0
      %430 = vmatpush.msra.mxu0 0.0
      %431 = vmatpush.msra.mxu0 0.0
      %432 = vmatpush.msra.mxu0 0.0
      %433 = vmatpush.msra.mxu0 0.0
      %434 = vmatpush.msra.mxu0 0.0
      %435 = vmatpush.msra.mxu0 0.0
      %436 = vmatpush.msra.mxu0 0.0
      %437 = vmatpush.msra.mxu0 0.0
      %438 = vmatpush.msra.mxu0 %v373
      %439 = vmatmul.f32.gmra.mxu0 %v376
      %v440 = vpop.f32.mrf.mxu0
      %v441 = vadd.f32 0.0, %v440
      %442 = vmatmul.f32.gmra.mxu0 %v379
      %v443 = vpop.f32.mrf.mxu0
      %v444 = vadd.f32 0.0, %v443
      %445 = vmatmul.f32.gmra.mxu0 %v382
      %v446 = vpop.f32.mrf.mxu0
      %v447 = vadd.f32 0.0, %v446
      %448 = vmatmul.f32.gmra.mxu0 %v385
      %v449 = vpop.f32.mrf.mxu0
      %v450 = vadd.f32 0.0, %v449
      %451 = vmatmul.f32.gmra.mxu0 %v388
      %v452 = vpop.f32.mrf.mxu0
      %v453 = vadd.f32 0.0, %v452
      %454 = vmatmul.f32.gmra.mxu0 %v391
      %v455 = vpop.f32.mrf.mxu0
      %v456 = vadd.f32 0.0, %v455
      %457 = vmatmul.f32.gmra.mxu0 %v394
      %v458 = vpop.f32.mrf.mxu0
      %v459 = vadd.f32 0.0, %v458
      %460 = vmatmul.f32.gmra.mxu0 %v397
      %v461 = vpop.f32.mrf.mxu0
      %v462 = vadd.f32 0.0, %v461
      %463 = vmatmul.f32.gmra.mxu0 %v400
      %v464 = vpop.f32.mrf.mxu0
      %v465 = vadd.f32 0.0, %v464
      %466 = vmatmul.f32.gmra.mxu0 %v403
      %v467 = vpop.f32.mrf.mxu0
      %v468 = vadd.f32 0.0, %v467
      %469 = vmatmul.f32.gmra.mxu0 %v406
      %v470 = vpop.f32.mrf.mxu0
      %v471 = vadd.f32 0.0, %v470
      %472 = vmatmul.f32.gmra.mxu0 %v409
      %v473 = vpop.f32.mrf.mxu0
      %v474 = vadd.f32 0.0, %v473
      %475 = vmatmul.f32.gmra.mxu0 %v412
      %v476 = vpop.f32.mrf.mxu0
      %v477 = vadd.f32 0.0, %v476
      %478 = vmatmul.f32.gmra.mxu0 %v415
      %v479 = vpop.f32.mrf.mxu0
      %v480 = vadd.f32 0.0, %v479
      %481 = vmatmul.f32.gmra.mxu0 %v418
      %v482 = vpop.f32.mrf.mxu0
      %v483 = vadd.f32 0.0, %v482
      %484 = vmatmul.f32.gmra.mxu0 %v421
      %v485 = vpop.f32.mrf.mxu0
      %v486 = vadd.f32 0.0, %v485
      %487 = vdwg.mxu0
      %v489 = vsel %vm374, %v340, 0
      %v492 = vsel %vm374, %v341, 0
      %v495 = vsel %vm374, %v342, 0
      %v498 = vsel %vm374, %v343, 0
      %v501 = vsel %vm374, %v344, 0
      %v504 = vsel %vm374, %v345, 0
      %v507 = vsel %vm374, %v346, 0
      %v510 = vsel %vm374, %v347, 0
      %v513 = vsel %vm374, %v348, 0
      %v516 = vsel %vm374, %v349, 0
      %v519 = vsel %vm374, %v350, 0
      %v522 = vsel %vm374, %v351, 0
      %v525 = vsel %vm374, %v352, 0
      %v528 = vsel %vm374, %v353, 0
      %v531 = vsel %vm374, %v354, 0
      %v534 = vsel %vm374, %v355, 0
      %536 = vmatpush.msra.mxu0 0.0
      %537 = vmatpush.msra.mxu0 0.0
      %538 = vmatpush.msra.mxu0 0.0
      %539 = vmatpush.msra.mxu0 0.0
      %540 = vmatpush.msra.mxu0 0.0
      %541 = vmatpush.msra.mxu0 0.0
      %542 = vmatpush.msra.mxu0 0.0
      %543 = vmatpush.msra.mxu0 0.0
      %544 = vmatpush.msra.mxu0 0.0
      %545 = vmatpush.msra.mxu0 0.0
      %546 = vmatpush.msra.mxu0 0.0
      %547 = vmatpush.msra.mxu0 0.0
      %548 = vmatpush.msra.mxu0 0.0
      %549 = vmatpush.msra.mxu0 0.0
      %550 = vmatpush.msra.mxu0 0.0
      %551 = vmatpush.msra.mxu0 %v356
      %552 = vmatmul.f32.gmra.mxu0 %v489
      %v553 = vpop.f32.mrf.mxu0
      %v554 = vadd.f32 %v441, %v553
      %555 = vmatmul.f32.gmra.mxu0 %v492
      %v556 = vpop.f32.mrf.mxu0
      %v557 = vadd.f32 %v444, %v556
      %558 = vmatmul.f32.gmra.mxu0 %v495
      %v559 = vpop.f32.mrf.mxu0
      %v560 = vadd.f32 %v447, %v559
      %561 = vmatmul.f32.gmra.mxu0 %v498
      %v562 = vpop.f32.mrf.mxu0
      %v563 = vadd.f32 %v450, %v562
      %564 = vmatmul.f32.gmra.mxu0 %v501
      %v565 = vpop.f32.mrf.mxu0
      %v566 = vadd.f32 %v453, %v565
      %567 = vmatmul.f32.gmra.mxu0 %v504
      %v568 = vpop.f32.mrf.mxu0
      %v569 = vadd.f32 %v456, %v568
      %570 = vmatmul.f32.gmra.mxu0 %v507
      %v571 = vpop.f32.mrf.mxu0
      %v572 = vadd.f32 %v459, %v571
      %573 = vmatmul.f32.gmra.mxu0 %v510
      %v574 = vpop.f32.mrf.mxu0
      %v575 = vadd.f32 %v462, %v574
      %576 = vmatmul.f32.gmra.mxu0 %v513
      %v577 = vpop.f32.mrf.mxu0
      %v578 = vadd.f32 %v465, %v577
      %579 = vmatmul.f32.gmra.mxu0 %v516
      %v580 = vpop.f32.mrf.mxu0
      %v581 = vadd.f32 %v468, %v580
      %582 = vmatmul.f32.gmra.mxu0 %v519
      %v583 = vpop.f32.mrf.mxu0
      %v584 = vadd.f32 %v471, %v583
      %585 = vmatmul.f32.gmra.mxu0 %v522
      %v586 = vpop.f32.mrf.mxu0
      %v587 = vadd.f32 %v474, %v586
      %588 = vmatmul.f32.gmra.mxu0 %v525
      %v589 = vpop.f32.mrf.mxu0
      %v590 = vadd.f32 %v477, %v589
      %591 = vmatmul.f32.gmra.mxu0 %v528
      %v592 = vpop.f32.mrf.mxu0
      %v593 = vadd.f32 %v480, %v592
      %594 = vmatmul.f32.gmra.mxu0 %v531
      %v595 = vpop.f32.mrf.mxu0
      %v596 = vadd.f32 %v483, %v595
      %597 = vmatmul.f32.gmra.mxu0 %v534
      %v598 = vpop.f32.mrf.mxu0
      %v599 = vadd.f32 %v486, %v598
      %600 = vdwg.mxu0
      %v601 = vld [vmem:[%s5] sm:$0x1]
      %v603 = vperm.slane %v601, 0
      %v605 = vadd.f32 %v554, %v603
      %v606 = vadd.f32 %v557, %v603
      %v607 = vadd.f32 %v560, %v603
      %v608 = vadd.f32 %v563, %v603
      %v609 = vadd.f32 %v566, %v603
      %v610 = vadd.f32 %v569, %v603
      %v611 = vadd.f32 %v572, %v603
      %v612 = vadd.f32 %v575, %v603
      %v613 = vadd.f32 %v578, %v603
      %v614 = vadd.f32 %v581, %v603
      %v615 = vadd.f32 %v584, %v603
      %v616 = vadd.f32 %v587, %v603
      %v617 = vadd.f32 %v590, %v603
      %v618 = vadd.f32 %v593, %v603
      %v619 = vadd.f32 %v596, %v603
      %v620 = vadd.f32 %v599, %v603
      %v621 = vlaneseq
      %v622 = vshrl.u32 %v621, 7
      %v623 = vadd.s32 %v622, 8
      %v624 = vadd.s32 %v622, 16
      %v625 = vadd.s32 %v622, 24
      %v626 = vadd.s32 %v622, 32
      %v627 = vadd.s32 %v622, 40
      %v628 = vadd.s32 %v622, 48
      %v629 = vadd.s32 %v622, 56
      %v630 = vadd.s32 %v622, 64
      %v631 = vadd.s32 %v622, 72
      %v632 = vadd.s32 %v622, 80
      %v633 = vadd.s32 %v622, 88
      %v634 = vadd.s32 %v622, 96
      %v635 = vadd.s32 %v622, 104
      %v636 = vadd.s32 %v622, 112
      %v637 = vadd.s32 %v622, 120
      %s638 = smul.u32 %s22, 128
      %v639 = vstv %s638
      %v640 = vadd.s32 %v622, %v639
      %v641 = vadd.s32 %v623, %v639
      %v642 = vadd.s32 %v624, %v639
      %v643 = vadd.s32 %v625, %v639
      %v644 = vadd.s32 %v626, %v639
      %v645 = vadd.s32 %v627, %v639
      %v646 = vadd.s32 %v628, %v639
      %v647 = vadd.s32 %v629, %v639
      %v648 = vadd.s32 %v630, %v639
      %v649 = vadd.s32 %v631, %v639
      %v650 = vadd.s32 %v632, %v639
      %v651 = vadd.s32 %v633, %v639
      %v652 = vadd.s32 %v634, %v639
      %v653 = vadd.s32 %v635, %v639
      %v654 = vadd.s32 %v636, %v639
      %v655 = vadd.s32 %v637, %v639
      %v656 = vcvt.s32.f32 %v640
      %v657 = vcvt.s32.f32 %v641
      %v658 = vcvt.s32.f32 %v642
      %v659 = vcvt.s32.f32 %v643
      %v660 = vcvt.s32.f32 %v644
      %v661 = vcvt.s32.f32 %v645
      %v662 = vcvt.s32.f32 %v646
      %v663 = vcvt.s32.f32 %v647
      %v664 = vcvt.s32.f32 %v648
      %v665 = vcvt.s32.f32 %v649
      %v666 = vcvt.s32.f32 %v650
      %v667 = vcvt.s32.f32 %v651
      %v668 = vcvt.s32.f32 %v652
      %v669 = vcvt.s32.f32 %v653
      %v670 = vcvt.s32.f32 %v654
      %v671 = vcvt.s32.f32 %v655
      %v672 = vrcp.pop 16.0
      %v673 = vmul.f32 16.0, %v672
      %v674 = vsub.f32 1.0, %v673
      %v675 = vmul.f32 %v672, %v674
      %v676 = vadd.f32 %v672, %v675
      %vm677 = vweird.f32 %v672
      %v678 = vsel %vm677, %v672, %v676
      %v679 = vmul.f32 %v656, %v678
      %v680 = vmul.f32 %v657, %v678
      %v681 = vmul.f32 %v658, %v678
      %v682 = vmul.f32 %v659, %v678
      %v683 = vmul.f32 %v660, %v678
      %v684 = vmul.f32 %v661, %v678
      %v685 = vmul.f32 %v662, %v678
      %v686 = vmul.f32 %v663, %v678
      %v687 = vmul.f32 %v664, %v678
      %v688 = vmul.f32 %v665, %v678
      %v689 = vmul.f32 %v666, %v678
      %v690 = vmul.f32 %v667, %v678
      %v691 = vmul.f32 %v668, %v678
      %v692 = vmul.f32 %v669, %v678
      %v693 = vmul.f32 %v670, %v678
      %v694 = vmul.f32 %v671, %v678
      %v695 = vfloor.f32 %v679
      %v696 = vfloor.f32 %v680
      %v697 = vfloor.f32 %v681
      %v698 = vfloor.f32 %v682
      %v699 = vfloor.f32 %v683
      %v700 = vfloor.f32 %v684
      %v701 = vfloor.f32 %v685
      %v702 = vfloor.f32 %v686
      %v703 = vfloor.f32 %v687
      %v704 = vfloor.f32 %v688
      %v705 = vfloor.f32 %v689
      %v706 = vfloor.f32 %v690
      %v707 = vfloor.f32 %v691
      %v708 = vfloor.f32 %v692
      %v709 = vfloor.f32 %v693
      %v710 = vfloor.f32 %v694
      %v711 = vmul.f32 %v695, 16.0
      %v712 = vmul.f32 %v696, 16.0
      %v713 = vmul.f32 %v697, 16.0
      %v714 = vmul.f32 %v698, 16.0
      %v715 = vmul.f32 %v699, 16.0
      %v716 = vmul.f32 %v700, 16.0
      %v717 = vmul.f32 %v701, 16.0
      %v718 = vmul.f32 %v702, 16.0
      %v719 = vmul.f32 %v703, 16.0
      %v720 = vmul.f32 %v704, 16.0
      %v721 = vmul.f32 %v705, 16.0
      %v722 = vmul.f32 %v706, 16.0
      %v723 = vmul.f32 %v707, 16.0
      %v724 = vmul.f32 %v708, 16.0
      %v725 = vmul.f32 %v709, 16.0
      %v726 = vmul.f32 %v710, 16.0
      %v727 = vsub.f32 %v656, %v711
      %v728 = vsub.f32 %v657, %v712
      %v729 = vsub.f32 %v658, %v713
      %v730 = vsub.f32 %v659, %v714
      %v731 = vsub.f32 %v660, %v715
      %v732 = vsub.f32 %v661, %v716
      %v733 = vsub.f32 %v662, %v717
      %v734 = vsub.f32 %v663, %v718
      %v735 = vsub.f32 %v664, %v719
      %v736 = vsub.f32 %v665, %v720
      %v737 = vsub.f32 %v666, %v721
      %v738 = vsub.f32 %v667, %v722
      %v739 = vsub.f32 %v668, %v723
      %v740 = vsub.f32 %v669, %v724
      %v741 = vsub.f32 %v670, %v725
      %v742 = vsub.f32 %v671, %v726
      %v743 = vadd.f32 %v605, %v727
      %v744 = vadd.f32 %v606, %v728
      %v745 = vadd.f32 %v607, %v729
      %v746 = vadd.f32 %v608, %v730
      %v747 = vadd.f32 %v609, %v731
      %v748 = vadd.f32 %v610, %v732
      %v749 = vadd.f32 %v611, %v733
      %v750 = vadd.f32 %v612, %v734
      %v751 = vadd.f32 %v613, %v735
      %v752 = vadd.f32 %v614, %v736
      %v753 = vadd.f32 %v615, %v737
      %v754 = vadd.f32 %v616, %v738
      %v755 = vadd.f32 %v617, %v739
      %v756 = vadd.f32 %v618, %v740
      %v757 = vadd.f32 %v619, %v741
      %v758 = vadd.f32 %v620, %v742
      %v759 = vrcp.pop 7.5
      %v760 = vmul.f32 7.5, %v759
      %v761 = vsub.f32 1.0, %v760
      %v762 = vmul.f32 %v759, %v761
      %v763 = vadd.f32 %v759, %v762
      %vm764 = vweird.f32 %v759
      %v765 = vsel %vm764, %v759, %v763
      %v766 = vmul.f32 %v743, %v765
      %v767 = vmul.f32 %v744, %v765
      %v768 = vmul.f32 %v745, %v765
      %v769 = vmul.f32 %v746, %v765
      %v770 = vmul.f32 %v747, %v765
      %v771 = vmul.f32 %v748, %v765
      %v772 = vmul.f32 %v749, %v765
      %v773 = vmul.f32 %v750, %v765
      %v774 = vmul.f32 %v751, %v765
      %v775 = vmul.f32 %v752, %v765
      %v776 = vmul.f32 %v753, %v765
      %v777 = vmul.f32 %v754, %v765
      %v778 = vmul.f32 %v755, %v765
      %v779 = vmul.f32 %v756, %v765
      %v780 = vmul.f32 %v757, %v765
      %v781 = vmul.f32 %v758, %v765
      %v782 = vsub.f32 %v766, 1.0
      %v783 = vsub.f32 %v767, 1.0
      %v784 = vsub.f32 %v768, 1.0
      %v785 = vsub.f32 %v769, 1.0
      %v786 = vsub.f32 %v770, 1.0
      %v787 = vsub.f32 %v771, 1.0
      %v788 = vsub.f32 %v772, 1.0
      %v789 = vsub.f32 %v773, 1.0
      %v790 = vsub.f32 %v774, 1.0
      %v791 = vsub.f32 %v775, 1.0
      %v792 = vsub.f32 %v776, 1.0
      %v793 = vsub.f32 %v777, 1.0
      %v794 = vsub.f32 %v778, 1.0
      %v795 = vsub.f32 %v779, 1.0
      %v796 = vsub.f32 %v780, 1.0
      %v797 = vsub.f32 %v781, 1.0
      %v798 = vadd.f32 %v605, %v695
      %v799 = vadd.f32 %v606, %v696
      %v800 = vadd.f32 %v607, %v697
      %v801 = vadd.f32 %v608, %v698
      %v802 = vadd.f32 %v609, %v699
      %v803 = vadd.f32 %v610, %v700
      %v804 = vadd.f32 %v611, %v701
      %v805 = vadd.f32 %v612, %v702
      %v806 = vadd.f32 %v613, %v703
      %v807 = vadd.f32 %v614, %v704
      %v808 = vadd.f32 %v615, %v705
      %v809 = vadd.f32 %v616, %v706
      %v810 = vadd.f32 %v617, %v707
      %v811 = vadd.f32 %v618, %v708
      %v812 = vadd.f32 %v619, %v709
      %v813 = vadd.f32 %v620, %v710
      %v814 = vmul.f32 %v798, %v765
      %v815 = vmul.f32 %v799, %v765
      %v816 = vmul.f32 %v800, %v765
      %v817 = vmul.f32 %v801, %v765
      %v818 = vmul.f32 %v802, %v765
      %v819 = vmul.f32 %v803, %v765
      %v820 = vmul.f32 %v804, %v765
      %v821 = vmul.f32 %v805, %v765
      %v822 = vmul.f32 %v806, %v765
      %v823 = vmul.f32 %v807, %v765
      %v824 = vmul.f32 %v808, %v765
      %v825 = vmul.f32 %v809, %v765
      %v826 = vmul.f32 %v810, %v765
      %v827 = vmul.f32 %v811, %v765
      %v828 = vmul.f32 %v812, %v765
      %v829 = vmul.f32 %v813, %v765
      %v830 = vsub.f32 %v814, 1.0
      %v831 = vsub.f32 %v815, 1.0
      %v832 = vsub.f32 %v816, 1.0
      %v833 = vsub.f32 %v817, 1.0
      %v834 = vsub.f32 %v818, 1.0
      %v835 = vsub.f32 %v819, 1.0
      %v836 = vsub.f32 %v820, 1.0
      %v837 = vsub.f32 %v821, 1.0
      %v838 = vsub.f32 %v822, 1.0
      %v839 = vsub.f32 %v823, 1.0
      %v840 = vsub.f32 %v824, 1.0
      %v841 = vsub.f32 %v825, 1.0
      %v842 = vsub.f32 %v826, 1.0
      %v843 = vsub.f32 %v827, 1.0
      %v844 = vsub.f32 %v828, 1.0
      %v845 = vsub.f32 %v829, 1.0
      %v846 = vadd.f32 %v782, 1.0
      %v847 = vadd.f32 %v783, 1.0
      %v848 = vadd.f32 %v784, 1.0
      %v849 = vadd.f32 %v785, 1.0
      %v850 = vadd.f32 %v786, 1.0
      %v851 = vadd.f32 %v787, 1.0
      %v852 = vadd.f32 %v788, 1.0
      %v853 = vadd.f32 %v789, 1.0
      %v854 = vadd.f32 %v790, 1.0
      %v855 = vadd.f32 %v791, 1.0
      %v856 = vadd.f32 %v792, 1.0
      %v857 = vadd.f32 %v793, 1.0
      %v858 = vadd.f32 %v794, 1.0
      %v859 = vadd.f32 %v795, 1.0
      %v860 = vadd.f32 %v796, 1.0
      %v861 = vadd.f32 %v797, 1.0
      %v862 = vmul.f32 %v846, 16.0
      %v863 = vmul.f32 %v847, 16.0
      %v864 = vmul.f32 %v848, 16.0
      %v865 = vmul.f32 %v849, 16.0
      %v866 = vmul.f32 %v850, 16.0
      %v867 = vmul.f32 %v851, 16.0
      %v868 = vmul.f32 %v852, 16.0
      %v869 = vmul.f32 %v853, 16.0
      %v870 = vmul.f32 %v854, 16.0
      %v871 = vmul.f32 %v855, 16.0
      %v872 = vmul.f32 %v856, 16.0
      %v873 = vmul.f32 %v857, 16.0
      %v874 = vmul.f32 %v858, 16.0
      %v875 = vmul.f32 %v859, 16.0
      %v876 = vmul.f32 %v860, 16.0
      %v877 = vmul.f32 %v861, 16.0
      %v878 = vsub.f32 %v862, 1.0
      %v879 = vsub.f32 %v863, 1.0
      %v880 = vsub.f32 %v864, 1.0
      %v881 = vsub.f32 %v865, 1.0
      %v882 = vsub.f32 %v866, 1.0
      %v883 = vsub.f32 %v867, 1.0
      %v884 = vsub.f32 %v868, 1.0
      %v885 = vsub.f32 %v869, 1.0
      %v886 = vsub.f32 %v870, 1.0
      %v887 = vsub.f32 %v871, 1.0
      %v888 = vsub.f32 %v872, 1.0
      %v889 = vsub.f32 %v873, 1.0
      %v890 = vsub.f32 %v874, 1.0
      %v891 = vsub.f32 %v875, 1.0
      %v892 = vsub.f32 %v876, 1.0
      %v893 = vsub.f32 %v877, 1.0
      %v894 = vmul.f32 %v878, 0.5
      %v895 = vmul.f32 %v879, 0.5
      %v896 = vmul.f32 %v880, 0.5
      %v897 = vmul.f32 %v881, 0.5
      %v898 = vmul.f32 %v882, 0.5
      %v899 = vmul.f32 %v883, 0.5
      %v900 = vmul.f32 %v884, 0.5
      %v901 = vmul.f32 %v885, 0.5
      %v902 = vmul.f32 %v886, 0.5
      %v903 = vmul.f32 %v887, 0.5
      %v904 = vmul.f32 %v888, 0.5
      %v905 = vmul.f32 %v889, 0.5
      %v906 = vmul.f32 %v890, 0.5
      %v907 = vmul.f32 %v891, 0.5
      %v908 = vmul.f32 %v892, 0.5
      %v909 = vmul.f32 %v893, 0.5
      %v910 = vmax.f32 %v894, 0.0
      %v911 = vmax.f32 %v895, 0.0
      %v912 = vmax.f32 %v896, 0.0
      %v913 = vmax.f32 %v897, 0.0
      %v914 = vmax.f32 %v898, 0.0
      %v915 = vmax.f32 %v899, 0.0
      %v916 = vmax.f32 %v900, 0.0
      %v917 = vmax.f32 %v901, 0.0
      %v918 = vmax.f32 %v902, 0.0
      %v919 = vmax.f32 %v903, 0.0
      %v920 = vmax.f32 %v904, 0.0
      %v921 = vmax.f32 %v905, 0.0
      %v922 = vmax.f32 %v906, 0.0
      %v923 = vmax.f32 %v907, 0.0
      %v924 = vmax.f32 %v908, 0.0
      %v925 = vmax.f32 %v909, 0.0
      %v926 = vmin.f32 %v910, 15.0
      %v927 = vmin.f32 %v911, 15.0
      %v928 = vmin.f32 %v912, 15.0
      %v929 = vmin.f32 %v913, 15.0
      %v930 = vmin.f32 %v914, 15.0
      %v931 = vmin.f32 %v915, 15.0
      %v932 = vmin.f32 %v916, 15.0
      %v933 = vmin.f32 %v917, 15.0
      %v934 = vmin.f32 %v918, 15.0
      %v935 = vmin.f32 %v919, 15.0
      %v936 = vmin.f32 %v920, 15.0
      %v937 = vmin.f32 %v921, 15.0
      %v938 = vmin.f32 %v922, 15.0
      %v939 = vmin.f32 %v923, 15.0
      %v940 = vmin.f32 %v924, 15.0
      %v941 = vmin.f32 %v925, 15.0
      %v942 = vadd.f32 %v830, 1.0
      %v943 = vadd.f32 %v831, 1.0
      %v944 = vadd.f32 %v832, 1.0
      %v945 = vadd.f32 %v833, 1.0
      %v946 = vadd.f32 %v834, 1.0
      %v947 = vadd.f32 %v835, 1.0
      %v948 = vadd.f32 %v836, 1.0
      %v949 = vadd.f32 %v837, 1.0
      %v950 = vadd.f32 %v838, 1.0
      %v951 = vadd.f32 %v839, 1.0
      %v952 = vadd.f32 %v840, 1.0
      %v953 = vadd.f32 %v841, 1.0
      %v954 = vadd.f32 %v842, 1.0
      %v955 = vadd.f32 %v843, 1.0
      %v956 = vadd.f32 %v844, 1.0
      %v957 = vadd.f32 %v845, 1.0
      %v958 = vmul.f32 %v942, 16.0
      %v959 = vmul.f32 %v943, 16.0
      %v960 = vmul.f32 %v944, 16.0
      %v961 = vmul.f32 %v945, 16.0
      %v962 = vmul.f32 %v946, 16.0
      %v963 = vmul.f32 %v947, 16.0
      %v964 = vmul.f32 %v948, 16.0
      %v965 = vmul.f32 %v949, 16.0
      %v966 = vmul.f32 %v950, 16.0
      %v967 = vmul.f32 %v951, 16.0
      %v968 = vmul.f32 %v952, 16.0
      %v969 = vmul.f32 %v953, 16.0
      %v970 = vmul.f32 %v954, 16.0
      %v971 = vmul.f32 %v955, 16.0
      %v972 = vmul.f32 %v956, 16.0
      %v973 = vmul.f32 %v957, 16.0
      %v974 = vsub.f32 %v958, 1.0
      %v975 = vsub.f32 %v959, 1.0
      %v976 = vsub.f32 %v960, 1.0
      %v977 = vsub.f32 %v961, 1.0
      %v978 = vsub.f32 %v962, 1.0
      %v979 = vsub.f32 %v963, 1.0
      %v980 = vsub.f32 %v964, 1.0
      %v981 = vsub.f32 %v965, 1.0
      %v982 = vsub.f32 %v966, 1.0
      %v983 = vsub.f32 %v967, 1.0
      %v984 = vsub.f32 %v968, 1.0
      %v985 = vsub.f32 %v969, 1.0
      %v986 = vsub.f32 %v970, 1.0
      %v987 = vsub.f32 %v971, 1.0
      %v988 = vsub.f32 %v972, 1.0
      %v989 = vsub.f32 %v973, 1.0
      %v990 = vmul.f32 %v974, 0.5
      %v991 = vmul.f32 %v975, 0.5
      %v992 = vmul.f32 %v976, 0.5
      %v993 = vmul.f32 %v977, 0.5
      %v994 = vmul.f32 %v978, 0.5
      %v995 = vmul.f32 %v979, 0.5
      %v996 = vmul.f32 %v980, 0.5
      %v997 = vmul.f32 %v981, 0.5
      %v998 = vmul.f32 %v982, 0.5
      %v999 = vmul.f32 %v983, 0.5
      %v1000 = vmul.f32 %v984, 0.5
      %v1001 = vmul.f32 %v985, 0.5
      %v1002 = vmul.f32 %v986, 0.5
      %v1003 = vmul.f32 %v987, 0.5
      %v1004 = vmul.f32 %v988, 0.5
      %v1005 = vmul.f32 %v989, 0.5
      %v1006 = vmax.f32 %v990, 0.0
      %v1007 = vmax.f32 %v991, 0.0
      %v1008 = vmax.f32 %v992, 0.0
      %v1009 = vmax.f32 %v993, 0.0
      %v1010 = vmax.f32 %v994, 0.0
      %v1011 = vmax.f32 %v995, 0.0
      %v1012 = vmax.f32 %v996, 0.0
      %v1013 = vmax.f32 %v997, 0.0
      %v1014 = vmax.f32 %v998, 0.0
      %v1015 = vmax.f32 %v999, 0.0
      %v1016 = vmax.f32 %v1000, 0.0
      %v1017 = vmax.f32 %v1001, 0.0
      %v1018 = vmax.f32 %v1002, 0.0
      %v1019 = vmax.f32 %v1003, 0.0
      %v1020 = vmax.f32 %v1004, 0.0
      %v1021 = vmax.f32 %v1005, 0.0
      %v1022 = vmin.f32 %v1006, 15.0
      %v1023 = vmin.f32 %v1007, 15.0
      %v1024 = vmin.f32 %v1008, 15.0
      %v1025 = vmin.f32 %v1009, 15.0
      %v1026 = vmin.f32 %v1010, 15.0
      %v1027 = vmin.f32 %v1011, 15.0
      %v1028 = vmin.f32 %v1012, 15.0
      %v1029 = vmin.f32 %v1013, 15.0
      %v1030 = vmin.f32 %v1014, 15.0
      %v1031 = vmin.f32 %v1015, 15.0
      %v1032 = vmin.f32 %v1016, 15.0
      %v1033 = vmin.f32 %v1017, 15.0
      %v1034 = vmin.f32 %v1018, 15.0
      %v1035 = vmin.f32 %v1019, 15.0
      %v1036 = vmin.f32 %v1020, 15.0
      %v1037 = vmin.f32 %v1021, 15.0
      %v1038 = vfloor.f32 %v926
      %v1039 = vfloor.f32 %v927
      %v1040 = vfloor.f32 %v928
      %v1041 = vfloor.f32 %v929
      %v1042 = vfloor.f32 %v930
      %v1043 = vfloor.f32 %v931
      %v1044 = vfloor.f32 %v932
      %v1045 = vfloor.f32 %v933
      %v1046 = vfloor.f32 %v934
      %v1047 = vfloor.f32 %v935
      %v1048 = vfloor.f32 %v936
      %v1049 = vfloor.f32 %v937
      %v1050 = vfloor.f32 %v938
      %v1051 = vfloor.f32 %v939
      %v1052 = vfloor.f32 %v940
      %v1053 = vfloor.f32 %v941
      %v1054 = vfloor.f32 %v1022
      %v1055 = vfloor.f32 %v1023
      %v1056 = vfloor.f32 %v1024
      %v1057 = vfloor.f32 %v1025
      %v1058 = vfloor.f32 %v1026
      %v1059 = vfloor.f32 %v1027
      %v1060 = vfloor.f32 %v1028
      %v1061 = vfloor.f32 %v1029
      %v1062 = vfloor.f32 %v1030
      %v1063 = vfloor.f32 %v1031
      %v1064 = vfloor.f32 %v1032
      %v1065 = vfloor.f32 %v1033
      %v1066 = vfloor.f32 %v1034
      %v1067 = vfloor.f32 %v1035
      %v1068 = vfloor.f32 %v1036
      %v1069 = vfloor.f32 %v1037
      %v1070 = vsub.f32 %v926, %v1038
      %v1071 = vsub.f32 %v927, %v1039
      %v1072 = vsub.f32 %v928, %v1040
      %v1073 = vsub.f32 %v929, %v1041
      %v1074 = vsub.f32 %v930, %v1042
      %v1075 = vsub.f32 %v931, %v1043
      %v1076 = vsub.f32 %v932, %v1044
      %v1077 = vsub.f32 %v933, %v1045
      %v1078 = vsub.f32 %v934, %v1046
      %v1079 = vsub.f32 %v935, %v1047
      %v1080 = vsub.f32 %v936, %v1048
      %v1081 = vsub.f32 %v937, %v1049
      %v1082 = vsub.f32 %v938, %v1050
      %v1083 = vsub.f32 %v939, %v1051
      %v1084 = vsub.f32 %v940, %v1052
      %v1085 = vsub.f32 %v941, %v1053
      %v1086 = vsub.f32 1.0, %v1070
      %v1087 = vsub.f32 1.0, %v1071
      %v1088 = vsub.f32 1.0, %v1072
      %v1089 = vsub.f32 1.0, %v1073
      %v1090 = vsub.f32 1.0, %v1074
      %v1091 = vsub.f32 1.0, %v1075
      %v1092 = vsub.f32 1.0, %v1076
      %v1093 = vsub.f32 1.0, %v1077
      %v1094 = vsub.f32 1.0, %v1078
      %v1095 = vsub.f32 1.0, %v1079
      %v1096 = vsub.f32 1.0, %v1080
      %v1097 = vsub.f32 1.0, %v1081
      %v1098 = vsub.f32 1.0, %v1082
      %v1099 = vsub.f32 1.0, %v1083
      %v1100 = vsub.f32 1.0, %v1084
      %v1101 = vsub.f32 1.0, %v1085
      %v1102 = vsub.f32 %v1022, %v1054
      %v1103 = vsub.f32 %v1023, %v1055
      %v1104 = vsub.f32 %v1024, %v1056
      %v1105 = vsub.f32 %v1025, %v1057
      %v1106 = vsub.f32 %v1026, %v1058
      %v1107 = vsub.f32 %v1027, %v1059
      %v1108 = vsub.f32 %v1028, %v1060
      %v1109 = vsub.f32 %v1029, %v1061
      %v1110 = vsub.f32 %v1030, %v1062
      %v1111 = vsub.f32 %v1031, %v1063
      %v1112 = vsub.f32 %v1032, %v1064
      %v1113 = vsub.f32 %v1033, %v1065
      %v1114 = vsub.f32 %v1034, %v1066
      %v1115 = vsub.f32 %v1035, %v1067
      %v1116 = vsub.f32 %v1036, %v1068
      %v1117 = vsub.f32 %v1037, %v1069
      %v1118 = vsub.f32 1.0, %v1102
      %v1119 = vsub.f32 1.0, %v1103
      %v1120 = vsub.f32 1.0, %v1104
      %v1121 = vsub.f32 1.0, %v1105
      %v1122 = vsub.f32 1.0, %v1106
      %v1123 = vsub.f32 1.0, %v1107
      %v1124 = vsub.f32 1.0, %v1108
      %v1125 = vsub.f32 1.0, %v1109
      %v1126 = vsub.f32 1.0, %v1110
      %v1127 = vsub.f32 1.0, %v1111
      %v1128 = vsub.f32 1.0, %v1112
      %v1129 = vsub.f32 1.0, %v1113
      %v1130 = vsub.f32 1.0, %v1114
      %v1131 = vsub.f32 1.0, %v1115
      %v1132 = vsub.f32 1.0, %v1116
      %v1133 = vsub.f32 1.0, %v1117
      %v1134 = vcvt.f32.s32.to.zero.pseudo %v1054
      %v1135 = vcvt.f32.s32.to.zero.pseudo %v1055
      %v1136 = vcvt.f32.s32.to.zero.pseudo %v1056
      %v1137 = vcvt.f32.s32.to.zero.pseudo %v1057
      %v1138 = vcvt.f32.s32.to.zero.pseudo %v1058
      %v1139 = vcvt.f32.s32.to.zero.pseudo %v1059
      %v1140 = vcvt.f32.s32.to.zero.pseudo %v1060
      %v1141 = vcvt.f32.s32.to.zero.pseudo %v1061
      %v1142 = vcvt.f32.s32.to.zero.pseudo %v1062
      %v1143 = vcvt.f32.s32.to.zero.pseudo %v1063
      %v1144 = vcvt.f32.s32.to.zero.pseudo %v1064
      %v1145 = vcvt.f32.s32.to.zero.pseudo %v1065
      %v1146 = vcvt.f32.s32.to.zero.pseudo %v1066
      %v1147 = vcvt.f32.s32.to.zero.pseudo %v1067
      %v1148 = vcvt.f32.s32.to.zero.pseudo %v1068
      %v1149 = vcvt.f32.s32.to.zero.pseudo %v1069
      %v1150 = vmul.u32 %v1134, 16
      %v1151 = vmul.u32 %v1135, 16
      %v1152 = vmul.u32 %v1136, 16
      %v1153 = vmul.u32 %v1137, 16
      %v1154 = vmul.u32 %v1138, 16
      %v1155 = vmul.u32 %v1139, 16
      %v1156 = vmul.u32 %v1140, 16
      %v1157 = vmul.u32 %v1141, 16
      %v1158 = vmul.u32 %v1142, 16
      %v1159 = vmul.u32 %v1143, 16
      %v1160 = vmul.u32 %v1144, 16
      %v1161 = vmul.u32 %v1145, 16
      %v1162 = vmul.u32 %v1146, 16
      %v1163 = vmul.u32 %v1147, 16
      %v1164 = vmul.u32 %v1148, 16
      %v1165 = vmul.u32 %v1149, 16
      %v1166 = vcvt.f32.s32.to.zero.pseudo %v1038
      %v1167 = vcvt.f32.s32.to.zero.pseudo %v1039
      %v1168 = vcvt.f32.s32.to.zero.pseudo %v1040
      %v1169 = vcvt.f32.s32.to.zero.pseudo %v1041
      %v1170 = vcvt.f32.s32.to.zero.pseudo %v1042
      %v1171 = vcvt.f32.s32.to.zero.pseudo %v1043
      %v1172 = vcvt.f32.s32.to.zero.pseudo %v1044
      %v1173 = vcvt.f32.s32.to.zero.pseudo %v1045
      %v1174 = vcvt.f32.s32.to.zero.pseudo %v1046
      %v1175 = vcvt.f32.s32.to.zero.pseudo %v1047
      %v1176 = vcvt.f32.s32.to.zero.pseudo %v1048
      %v1177 = vcvt.f32.s32.to.zero.pseudo %v1049
      %v1178 = vcvt.f32.s32.to.zero.pseudo %v1050
      %v1179 = vcvt.f32.s32.to.zero.pseudo %v1051
      %v1180 = vcvt.f32.s32.to.zero.pseudo %v1052
      %v1181 = vcvt.f32.s32.to.zero.pseudo %v1053
      %1182 = vrot.lane.b32.xlu0 %v1166, 1
      %v1183 = vpop.permute.xlu0 %1182
      %1184 = vrot.lane.b32.xlu0 %v1167, 1
      %v1185 = vpop.permute.xlu0 %1184
      %1186 = vrot.lane.b32.xlu0 %v1168, 1
      %v1187 = vpop.permute.xlu0 %1186
      %1188 = vrot.lane.b32.xlu0 %v1169, 1
      %v1189 = vpop.permute.xlu0 %1188
      %1190 = vrot.lane.b32.xlu0 %v1170, 1
      %v1191 = vpop.permute.xlu0 %1190
      %1192 = vrot.lane.b32.xlu0 %v1171, 1
      %v1193 = vpop.permute.xlu0 %1192
      %1194 = vrot.lane.b32.xlu0 %v1172, 1
      %v1195 = vpop.permute.xlu0 %1194
      %1196 = vrot.lane.b32.xlu0 %v1173, 1
      %v1197 = vpop.permute.xlu0 %1196
      %1198 = vrot.lane.b32.xlu0 %v1174, 1
      %v1199 = vpop.permute.xlu0 %1198
      %1200 = vrot.lane.b32.xlu0 %v1175, 1
      %v1201 = vpop.permute.xlu0 %1200
      %1202 = vrot.lane.b32.xlu0 %v1176, 1
      %v1203 = vpop.permute.xlu0 %1202
      %1204 = vrot.lane.b32.xlu0 %v1177, 1
      %v1205 = vpop.permute.xlu0 %1204
      %1206 = vrot.lane.b32.xlu0 %v1178, 1
      %v1207 = vpop.permute.xlu0 %1206
      %1208 = vrot.lane.b32.xlu0 %v1179, 1
      %v1209 = vpop.permute.xlu0 %1208
      %1210 = vrot.lane.b32.xlu0 %v1180, 1
      %v1211 = vpop.permute.xlu0 %1210
      %1212 = vrot.lane.b32.xlu0 %v1181, 1
      %v1213 = vpop.permute.xlu0 %1212
      %v1214 = vadd.s32 %v1150, %v1183
      %v1215 = vadd.s32 %v1151, %v1185
      %v1216 = vadd.s32 %v1152, %v1187
      %v1217 = vadd.s32 %v1153, %v1189
      %v1218 = vadd.s32 %v1154, %v1191
      %v1219 = vadd.s32 %v1155, %v1193
      %v1220 = vadd.s32 %v1156, %v1195
      %v1221 = vadd.s32 %v1157, %v1197
      %v1222 = vadd.s32 %v1158, %v1199
      %v1223 = vadd.s32 %v1159, %v1201
      %v1224 = vadd.s32 %v1160, %v1203
      %v1225 = vadd.s32 %v1161, %v1205
      %v1226 = vadd.s32 %v1162, %v1207
      %v1227 = vadd.s32 %v1163, %v1209
      %v1228 = vadd.s32 %v1164, %v1211
      %v1229 = vadd.s32 %v1165, %v1213
      %v1230 = vlaneseq
      %v1231 = vand.u32 %v1230, 127
      %v1232 = vadd.s32 %v1231, 128
      %1233 = vset.pattern.permute.xlu0 1
      %1234 = vperm.xlu0 %1233, %v1214
      %v1235 = vpop.permute.xlu0 %1234
      %1236 = vset.pattern.permute.xlu0 1
      %1237 = vperm.xlu0 %1236, %v1215
      %v1238 = vpop.permute.xlu0 %1237
      %1239 = vset.pattern.permute.xlu0 1
      %1240 = vperm.xlu0 %1239, %v1216
      %v1241 = vpop.permute.xlu0 %1240
      %1242 = vset.pattern.permute.xlu0 1
      %1243 = vperm.xlu0 %1242, %v1217
      %v1244 = vpop.permute.xlu0 %1243
      %1245 = vset.pattern.permute.xlu0 1
      %1246 = vperm.xlu0 %1245, %v1218
      %v1247 = vpop.permute.xlu0 %1246
      %1248 = vset.pattern.permute.xlu0 1
      %1249 = vperm.xlu0 %1248, %v1219
      %v1250 = vpop.permute.xlu0 %1249
      %1251 = vset.pattern.permute.xlu0 1
      %1252 = vperm.xlu0 %1251, %v1220
      %v1253 = vpop.permute.xlu0 %1252
      %1254 = vset.pattern.permute.xlu0 1
      %1255 = vperm.xlu0 %1254, %v1221
      %v1256 = vpop.permute.xlu0 %1255
      %1257 = vset.pattern.permute.xlu0 1
      %1258 = vperm.xlu0 %1257, %v1222
      %v1259 = vpop.permute.xlu0 %1258
      %1260 = vset.pattern.permute.xlu0 1
      %1261 = vperm.xlu0 %1260, %v1223
      %v1262 = vpop.permute.xlu0 %1261
      %1263 = vset.pattern.permute.xlu0 1
      %1264 = vperm.xlu0 %1263, %v1224
      %v1265 = vpop.permute.xlu0 %1264
      %1266 = vset.pattern.permute.xlu0 1
      %1267 = vperm.xlu0 %1266, %v1225
      %v1268 = vpop.permute.xlu0 %1267
      %1269 = vset.pattern.permute.xlu0 1
      %1270 = vperm.xlu0 %1269, %v1226
      %v1271 = vpop.permute.xlu0 %1270
      %1272 = vset.pattern.permute.xlu0 1
      %1273 = vperm.xlu0 %1272, %v1227
      %v1274 = vpop.permute.xlu0 %1273
      %1275 = vset.pattern.permute.xlu0 1
      %1276 = vperm.xlu0 %1275, %v1228
      %v1277 = vpop.permute.xlu0 %1276
      %1278 = vset.pattern.permute.xlu0 1
      %1279 = vperm.xlu0 %1278, %v1229
      %v1280 = vpop.permute.xlu0 %1279
      %v1281 = vsub.s32 %v1231, %v1235
      %v1282 = vsub.s32 %v1232, %v1235
      %v1283 = vsub.s32 %v1231, %v1238
      %v1284 = vsub.s32 %v1232, %v1238
      %v1285 = vsub.s32 %v1231, %v1241
      %v1286 = vsub.s32 %v1232, %v1241
      %v1287 = vsub.s32 %v1231, %v1244
      %v1288 = vsub.s32 %v1232, %v1244
      %v1289 = vsub.s32 %v1231, %v1247
      %v1290 = vsub.s32 %v1232, %v1247
      %v1291 = vsub.s32 %v1231, %v1250
      %v1292 = vsub.s32 %v1232, %v1250
      %v1293 = vsub.s32 %v1231, %v1253
      %v1294 = vsub.s32 %v1232, %v1253
      %v1295 = vsub.s32 %v1231, %v1256
      %v1296 = vsub.s32 %v1232, %v1256
      %v1297 = vsub.s32 %v1231, %v1259
      %v1298 = vsub.s32 %v1232, %v1259
      %v1299 = vsub.s32 %v1231, %v1262
      %v1300 = vsub.s32 %v1232, %v1262
      %v1301 = vsub.s32 %v1231, %v1265
      %v1302 = vsub.s32 %v1232, %v1265
      %v1303 = vsub.s32 %v1231, %v1268
      %v1304 = vsub.s32 %v1232, %v1268
      %v1305 = vsub.s32 %v1231, %v1271
      %v1306 = vsub.s32 %v1232, %v1271
      %v1307 = vsub.s32 %v1231, %v1274
      %v1308 = vsub.s32 %v1232, %v1274
      %v1309 = vsub.s32 %v1231, %v1277
      %v1310 = vsub.s32 %v1232, %v1277
      %v1311 = vsub.s32 %v1231, %v1280
      %v1312 = vsub.s32 %v1232, %v1280
      %vm1313 = vcmp.eq.s32.totalorder %v1281, 0
      %vm1314 = vcmp.eq.s32.totalorder %v1282, 0
      %vm1315 = vcmp.eq.s32.totalorder %v1283, 0
      %vm1316 = vcmp.eq.s32.totalorder %v1284, 0
      %vm1317 = vcmp.eq.s32.totalorder %v1285, 0
      %vm1318 = vcmp.eq.s32.totalorder %v1286, 0
      %vm1319 = vcmp.eq.s32.totalorder %v1287, 0
      %vm1320 = vcmp.eq.s32.totalorder %v1288, 0
      %vm1321 = vcmp.eq.s32.totalorder %v1289, 0
      %vm1322 = vcmp.eq.s32.totalorder %v1290, 0
      %vm1323 = vcmp.eq.s32.totalorder %v1291, 0
      %vm1324 = vcmp.eq.s32.totalorder %v1292, 0
      %vm1325 = vcmp.eq.s32.totalorder %v1293, 0
      %vm1326 = vcmp.eq.s32.totalorder %v1294, 0
      %vm1327 = vcmp.eq.s32.totalorder %v1295, 0
      %vm1328 = vcmp.eq.s32.totalorder %v1296, 0
      %vm1329 = vcmp.eq.s32.totalorder %v1297, 0
      %vm1330 = vcmp.eq.s32.totalorder %v1298, 0
      %vm1331 = vcmp.eq.s32.totalorder %v1299, 0
      %vm1332 = vcmp.eq.s32.totalorder %v1300, 0
      %vm1333 = vcmp.eq.s32.totalorder %v1301, 0
      %vm1334 = vcmp.eq.s32.totalorder %v1302, 0
      %vm1335 = vcmp.eq.s32.totalorder %v1303, 0
      %vm1336 = vcmp.eq.s32.totalorder %v1304, 0
      %vm1337 = vcmp.eq.s32.totalorder %v1305, 0
      %vm1338 = vcmp.eq.s32.totalorder %v1306, 0
      %vm1339 = vcmp.eq.s32.totalorder %v1307, 0
      %vm1340 = vcmp.eq.s32.totalorder %v1308, 0
      %vm1341 = vcmp.eq.s32.totalorder %v1309, 0
      %vm1342 = vcmp.eq.s32.totalorder %v1310, 0
      %vm1343 = vcmp.eq.s32.totalorder %v1311, 0
      %vm1344 = vcmp.eq.s32.totalorder %v1312, 0
      %1361 = vrot.lane.b32.xlu0 %v1086, 1
      %v1362 = vpop.permute.xlu0 %1361
      %1363 = vrot.lane.b32.xlu0 %v1087, 1
      %v1364 = vpop.permute.xlu0 %1363
      %1365 = vrot.lane.b32.xlu0 %v1088, 1
      %v1366 = vpop.permute.xlu0 %1365
      %1367 = vrot.lane.b32.xlu0 %v1089, 1
      %v1368 = vpop.permute.xlu0 %1367
      %1369 = vrot.lane.b32.xlu0 %v1090, 1
      %v1370 = vpop.permute.xlu0 %1369
      %1371 = vrot.lane.b32.xlu0 %v1091, 1
      %v1372 = vpop.permute.xlu0 %1371
      %1373 = vrot.lane.b32.xlu0 %v1092, 1
      %v1374 = vpop.permute.xlu0 %1373
      %1375 = vrot.lane.b32.xlu0 %v1093, 1
      %v1376 = vpop.permute.xlu0 %1375
      %1377 = vrot.lane.b32.xlu0 %v1094, 1
      %v1378 = vpop.permute.xlu0 %1377
      %1379 = vrot.lane.b32.xlu0 %v1095, 1
      %v1380 = vpop.permute.xlu0 %1379
      %1381 = vrot.lane.b32.xlu0 %v1096, 1
      %v1382 = vpop.permute.xlu0 %1381
      %1383 = vrot.lane.b32.xlu0 %v1097, 1
      %v1384 = vpop.permute.xlu0 %1383
      %1385 = vrot.lane.b32.xlu0 %v1098, 1
      %v1386 = vpop.permute.xlu0 %1385
      %1387 = vrot.lane.b32.xlu0 %v1099, 1
      %v1388 = vpop.permute.xlu0 %1387
      %1389 = vrot.lane.b32.xlu0 %v1100, 1
      %v1390 = vpop.permute.xlu0 %1389
      %1391 = vrot.lane.b32.xlu0 %v1101, 1
      %v1392 = vpop.permute.xlu0 %1391
      %v1409 = vmul.f32 %v1118, %v1362
      %v1410 = vmul.f32 %v1119, %v1364
      %v1411 = vmul.f32 %v1120, %v1366
      %v1412 = vmul.f32 %v1121, %v1368
      %v1413 = vmul.f32 %v1122, %v1370
      %v1414 = vmul.f32 %v1123, %v1372
      %v1415 = vmul.f32 %v1124, %v1374
      %v1416 = vmul.f32 %v1125, %v1376
      %v1417 = vmul.f32 %v1126, %v1378
      %v1418 = vmul.f32 %v1127, %v1380
      %v1419 = vmul.f32 %v1128, %v1382
      %v1420 = vmul.f32 %v1129, %v1384
      %v1421 = vmul.f32 %v1130, %v1386
      %v1422 = vmul.f32 %v1131, %v1388
      %v1423 = vmul.f32 %v1132, %v1390
      %v1424 = vmul.f32 %v1133, %v1392
      %vm1425 = vcmp.eq.s32.totalorder %v1281, 1
      %vm1426 = vcmp.eq.s32.totalorder %v1282, 1
      %vm1427 = vcmp.eq.s32.totalorder %v1283, 1
      %vm1428 = vcmp.eq.s32.totalorder %v1284, 1
      %vm1429 = vcmp.eq.s32.totalorder %v1285, 1
      %vm1430 = vcmp.eq.s32.totalorder %v1286, 1
      %vm1431 = vcmp.eq.s32.totalorder %v1287, 1
      %vm1432 = vcmp.eq.s32.totalorder %v1288, 1
      %vm1433 = vcmp.eq.s32.totalorder %v1289, 1
      %vm1434 = vcmp.eq.s32.totalorder %v1290, 1
      %vm1435 = vcmp.eq.s32.totalorder %v1291, 1
      %vm1436 = vcmp.eq.s32.totalorder %v1292, 1
      %vm1437 = vcmp.eq.s32.totalorder %v1293, 1
      %vm1438 = vcmp.eq.s32.totalorder %v1294, 1
      %vm1439 = vcmp.eq.s32.totalorder %v1295, 1
      %vm1440 = vcmp.eq.s32.totalorder %v1296, 1
      %vm1441 = vcmp.eq.s32.totalorder %v1297, 1
      %vm1442 = vcmp.eq.s32.totalorder %v1298, 1
      %vm1443 = vcmp.eq.s32.totalorder %v1299, 1
      %vm1444 = vcmp.eq.s32.totalorder %v1300, 1
      %vm1445 = vcmp.eq.s32.totalorder %v1301, 1
      %vm1446 = vcmp.eq.s32.totalorder %v1302, 1
      %vm1447 = vcmp.eq.s32.totalorder %v1303, 1
      %vm1448 = vcmp.eq.s32.totalorder %v1304, 1
      %vm1449 = vcmp.eq.s32.totalorder %v1305, 1
      %vm1450 = vcmp.eq.s32.totalorder %v1306, 1
      %vm1451 = vcmp.eq.s32.totalorder %v1307, 1
      %vm1452 = vcmp.eq.s32.totalorder %v1308, 1
      %vm1453 = vcmp.eq.s32.totalorder %v1309, 1
      %vm1454 = vcmp.eq.s32.totalorder %v1310, 1
      %vm1455 = vcmp.eq.s32.totalorder %v1311, 1
      %vm1456 = vcmp.eq.s32.totalorder %v1312, 1
      %1473 = vrot.lane.b32.xlu0 %v1070, 1
      %v1474 = vpop.permute.xlu0 %1473
      %1475 = vrot.lane.b32.xlu0 %v1071, 1
      %v1476 = vpop.permute.xlu0 %1475
      %1477 = vrot.lane.b32.xlu0 %v1072, 1
      %v1478 = vpop.permute.xlu0 %1477
      %1479 = vrot.lane.b32.xlu0 %v1073, 1
      %v1480 = vpop.permute.xlu0 %1479
      %1481 = vrot.lane.b32.xlu0 %v1074, 1
      %v1482 = vpop.permute.xlu0 %1481
      %1483 = vrot.lane.b32.xlu0 %v1075, 1
      %v1484 = vpop.permute.xlu0 %1483
      %1485 = vrot.lane.b32.xlu0 %v1076, 1
      %v1486 = vpop.permute.xlu0 %1485
      %1487 = vrot.lane.b32.xlu0 %v1077, 1
      %v1488 = vpop.permute.xlu0 %1487
      %1489 = vrot.lane.b32.xlu0 %v1078, 1
      %v1490 = vpop.permute.xlu0 %1489
      %1491 = vrot.lane.b32.xlu0 %v1079, 1
      %v1492 = vpop.permute.xlu0 %1491
      %1493 = vrot.lane.b32.xlu0 %v1080, 1
      %v1494 = vpop.permute.xlu0 %1493
      %1495 = vrot.lane.b32.xlu0 %v1081, 1
      %v1496 = vpop.permute.xlu0 %1495
      %1497 = vrot.lane.b32.xlu0 %v1082, 1
      %v1498 = vpop.permute.xlu0 %1497
      %1499 = vrot.lane.b32.xlu0 %v1083, 1
      %v1500 = vpop.permute.xlu0 %1499
      %1501 = vrot.lane.b32.xlu0 %v1084, 1
      %v1502 = vpop.permute.xlu0 %1501
      %1503 = vrot.lane.b32.xlu0 %v1085, 1
      %v1504 = vpop.permute.xlu0 %1503
      %v1521 = vmul.f32 %v1118, %v1474
      %v1522 = vmul.f32 %v1119, %v1476
      %v1523 = vmul.f32 %v1120, %v1478
      %v1524 = vmul.f32 %v1121, %v1480
      %v1525 = vmul.f32 %v1122, %v1482
      %v1526 = vmul.f32 %v1123, %v1484
      %v1527 = vmul.f32 %v1124, %v1486
      %v1528 = vmul.f32 %v1125, %v1488
      %v1529 = vmul.f32 %v1126, %v1490
      %v1530 = vmul.f32 %v1127, %v1492
      %v1531 = vmul.f32 %v1128, %v1494
      %v1532 = vmul.f32 %v1129, %v1496
      %v1533 = vmul.f32 %v1130, %v1498
      %v1534 = vmul.f32 %v1131, %v1500
      %v1535 = vmul.f32 %v1132, %v1502
      %v1536 = vmul.f32 %v1133, %v1504
      %vm1537 = vcmp.eq.s32.totalorder %v1281, 16
      %vm1538 = vcmp.eq.s32.totalorder %v1282, 16
      %vm1539 = vcmp.eq.s32.totalorder %v1283, 16
      %vm1540 = vcmp.eq.s32.totalorder %v1284, 16
      %vm1541 = vcmp.eq.s32.totalorder %v1285, 16
      %vm1542 = vcmp.eq.s32.totalorder %v1286, 16
      %vm1543 = vcmp.eq.s32.totalorder %v1287, 16
      %vm1544 = vcmp.eq.s32.totalorder %v1288, 16
      %vm1545 = vcmp.eq.s32.totalorder %v1289, 16
      %vm1546 = vcmp.eq.s32.totalorder %v1290, 16
      %vm1547 = vcmp.eq.s32.totalorder %v1291, 16
      %vm1548 = vcmp.eq.s32.totalorder %v1292, 16
      %vm1549 = vcmp.eq.s32.totalorder %v1293, 16
      %vm1550 = vcmp.eq.s32.totalorder %v1294, 16
      %vm1551 = vcmp.eq.s32.totalorder %v1295, 16
      %vm1552 = vcmp.eq.s32.totalorder %v1296, 16
      %vm1553 = vcmp.eq.s32.totalorder %v1297, 16
      %vm1554 = vcmp.eq.s32.totalorder %v1298, 16
      %vm1555 = vcmp.eq.s32.totalorder %v1299, 16
      %vm1556 = vcmp.eq.s32.totalorder %v1300, 16
      %vm1557 = vcmp.eq.s32.totalorder %v1301, 16
      %vm1558 = vcmp.eq.s32.totalorder %v1302, 16
      %vm1559 = vcmp.eq.s32.totalorder %v1303, 16
      %vm1560 = vcmp.eq.s32.totalorder %v1304, 16
      %vm1561 = vcmp.eq.s32.totalorder %v1305, 16
      %vm1562 = vcmp.eq.s32.totalorder %v1306, 16
      %vm1563 = vcmp.eq.s32.totalorder %v1307, 16
      %vm1564 = vcmp.eq.s32.totalorder %v1308, 16
      %vm1565 = vcmp.eq.s32.totalorder %v1309, 16
      %vm1566 = vcmp.eq.s32.totalorder %v1310, 16
      %vm1567 = vcmp.eq.s32.totalorder %v1311, 16
      %vm1568 = vcmp.eq.s32.totalorder %v1312, 16
      %v1569 = vmul.f32 %v1102, %v1362
      %v1570 = vmul.f32 %v1103, %v1364
      %v1571 = vmul.f32 %v1104, %v1366
      %v1572 = vmul.f32 %v1105, %v1368
      %v1573 = vmul.f32 %v1106, %v1370
      %v1574 = vmul.f32 %v1107, %v1372
      %v1575 = vmul.f32 %v1108, %v1374
      %v1576 = vmul.f32 %v1109, %v1376
      %v1577 = vmul.f32 %v1110, %v1378
      %v1578 = vmul.f32 %v1111, %v1380
      %v1579 = vmul.f32 %v1112, %v1382
      %v1580 = vmul.f32 %v1113, %v1384
      %v1581 = vmul.f32 %v1114, %v1386
      %v1582 = vmul.f32 %v1115, %v1388
      %v1583 = vmul.f32 %v1116, %v1390
      %v1584 = vmul.f32 %v1117, %v1392
      %vm1585 = vcmp.eq.s32.totalorder %v1281, 17
      %vm1586 = vcmp.eq.s32.totalorder %v1282, 17
      %vm1587 = vcmp.eq.s32.totalorder %v1283, 17
      %vm1588 = vcmp.eq.s32.totalorder %v1284, 17
      %vm1589 = vcmp.eq.s32.totalorder %v1285, 17
      %vm1590 = vcmp.eq.s32.totalorder %v1286, 17
      %vm1591 = vcmp.eq.s32.totalorder %v1287, 17
      %vm1592 = vcmp.eq.s32.totalorder %v1288, 17
      %vm1593 = vcmp.eq.s32.totalorder %v1289, 17
      %vm1594 = vcmp.eq.s32.totalorder %v1290, 17
      %vm1595 = vcmp.eq.s32.totalorder %v1291, 17
      %vm1596 = vcmp.eq.s32.totalorder %v1292, 17
      %vm1597 = vcmp.eq.s32.totalorder %v1293, 17
      %vm1598 = vcmp.eq.s32.totalorder %v1294, 17
      %vm1599 = vcmp.eq.s32.totalorder %v1295, 17
      %vm1600 = vcmp.eq.s32.totalorder %v1296, 17
      %vm1601 = vcmp.eq.s32.totalorder %v1297, 17
      %vm1602 = vcmp.eq.s32.totalorder %v1298, 17
      %vm1603 = vcmp.eq.s32.totalorder %v1299, 17
      %vm1604 = vcmp.eq.s32.totalorder %v1300, 17
      %vm1605 = vcmp.eq.s32.totalorder %v1301, 17
      %vm1606 = vcmp.eq.s32.totalorder %v1302, 17
      %vm1607 = vcmp.eq.s32.totalorder %v1303, 17
      %vm1608 = vcmp.eq.s32.totalorder %v1304, 17
      %vm1609 = vcmp.eq.s32.totalorder %v1305, 17
      %vm1610 = vcmp.eq.s32.totalorder %v1306, 17
      %vm1611 = vcmp.eq.s32.totalorder %v1307, 17
      %vm1612 = vcmp.eq.s32.totalorder %v1308, 17
      %vm1613 = vcmp.eq.s32.totalorder %v1309, 17
      %vm1614 = vcmp.eq.s32.totalorder %v1310, 17
      %vm1615 = vcmp.eq.s32.totalorder %v1311, 17
      %vm1616 = vcmp.eq.s32.totalorder %v1312, 17
      %v1617 = vmul.f32 %v1102, %v1474
      %v1618 = vmul.f32 %v1103, %v1476
      %v1619 = vmul.f32 %v1104, %v1478
      %v1620 = vmul.f32 %v1105, %v1480
      %v1621 = vmul.f32 %v1106, %v1482
      %v1622 = vmul.f32 %v1107, %v1484
      %v1623 = vmul.f32 %v1108, %v1486
      %v1624 = vmul.f32 %v1109, %v1488
      %v1625 = vmul.f32 %v1110, %v1490
      %v1626 = vmul.f32 %v1111, %v1492
      %v1627 = vmul.f32 %v1112, %v1494
      %v1628 = vmul.f32 %v1113, %v1496
      %v1629 = vmul.f32 %v1114, %v1498
      %v1630 = vmul.f32 %v1115, %v1500
      %v1631 = vmul.f32 %v1116, %v1502
      %v1632 = vmul.f32 %v1117, %v1504
      %1634 = vset.pattern.permute.xlu0 1
      %1635 = vperm.xlu0 %1634, %v1617
      %v1636 = vpop.permute.xlu0 %1635
      %1639 = vset.pattern.permute.xlu0 1
      %1640 = vperm.xlu0 %1639, %v1618
      %v1641 = vpop.permute.xlu0 %1640
      %1644 = vset.pattern.permute.xlu0 1
      %1645 = vperm.xlu0 %1644, %v1619
      %v1646 = vpop.permute.xlu0 %1645
      %1649 = vset.pattern.permute.xlu0 1
      %1650 = vperm.xlu0 %1649, %v1620
      %v1651 = vpop.permute.xlu0 %1650
      %1654 = vset.pattern.permute.xlu0 1
      %1655 = vperm.xlu0 %1654, %v1621
      %v1656 = vpop.permute.xlu0 %1655
      %1659 = vset.pattern.permute.xlu0 1
      %1660 = vperm.xlu0 %1659, %v1622
      %v1661 = vpop.permute.xlu0 %1660
      %1664 = vset.pattern.permute.xlu0 1
      %1665 = vperm.xlu0 %1664, %v1623
      %v1666 = vpop.permute.xlu0 %1665
      %1669 = vset.pattern.permute.xlu0 1
      %1670 = vperm.xlu0 %1669, %v1624
      %v1671 = vpop.permute.xlu0 %1670
      %1674 = vset.pattern.permute.xlu0 1
      %1675 = vperm.xlu0 %1674, %v1625
      %v1676 = vpop.permute.xlu0 %1675
      %1679 = vset.pattern.permute.xlu0 1
      %1680 = vperm.xlu0 %1679, %v1626
      %v1681 = vpop.permute.xlu0 %1680
      %1684 = vset.pattern.permute.xlu0 1
      %1685 = vperm.xlu0 %1684, %v1627
      %v1686 = vpop.permute.xlu0 %1685
      %1689 = vset.pattern.permute.xlu0 1
      %1690 = vperm.xlu0 %1689, %v1628
      %v1691 = vpop.permute.xlu0 %1690
      %1694 = vset.pattern.permute.xlu0 1
      %1695 = vperm.xlu0 %1694, %v1629
      %v1696 = vpop.permute.xlu0 %1695
      %1699 = vset.pattern.permute.xlu0 1
      %1700 = vperm.xlu0 %1699, %v1630
      %v1701 = vpop.permute.xlu0 %1700
      %1704 = vset.pattern.permute.xlu0 1
      %1705 = vperm.xlu0 %1704, %v1631
      %v1706 = vpop.permute.xlu0 %1705
      %1709 = vset.pattern.permute.xlu0 1
      %1710 = vperm.xlu0 %1709, %v1632
      %v1711 = vpop.permute.xlu0 %1710
      %v1713 = vsel %vm1585, %v1636, 0.0
      %v1714 = vsel %vm1586, %v1636, 0.0
      %v1715 = vsel %vm1587, %v1641, 0.0
      %v1716 = vsel %vm1588, %v1641, 0.0
      %v1717 = vsel %vm1589, %v1646, 0.0
      %v1718 = vsel %vm1590, %v1646, 0.0
      %v1719 = vsel %vm1591, %v1651, 0.0
      %v1720 = vsel %vm1592, %v1651, 0.0
      %v1721 = vsel %vm1593, %v1656, 0.0
      %v1722 = vsel %vm1594, %v1656, 0.0
      %v1723 = vsel %vm1595, %v1661, 0.0
      %v1724 = vsel %vm1596, %v1661, 0.0
      %v1725 = vsel %vm1597, %v1666, 0.0
      %v1726 = vsel %vm1598, %v1666, 0.0
      %v1727 = vsel %vm1599, %v1671, 0.0
      %v1728 = vsel %vm1600, %v1671, 0.0
      %v1729 = vsel %vm1601, %v1676, 0.0
      %v1730 = vsel %vm1602, %v1676, 0.0
      %v1731 = vsel %vm1603, %v1681, 0.0
      %v1732 = vsel %vm1604, %v1681, 0.0
      %v1733 = vsel %vm1605, %v1686, 0.0
      %v1734 = vsel %vm1606, %v1686, 0.0
      %v1735 = vsel %vm1607, %v1691, 0.0
      %v1736 = vsel %vm1608, %v1691, 0.0
      %v1737 = vsel %vm1609, %v1696, 0.0
      %v1738 = vsel %vm1610, %v1696, 0.0
      %v1739 = vsel %vm1611, %v1701, 0.0
      %v1740 = vsel %vm1612, %v1701, 0.0
      %v1741 = vsel %vm1613, %v1706, 0.0
      %v1742 = vsel %vm1614, %v1706, 0.0
      %v1743 = vsel %vm1615, %v1711, 0.0
      %v1744 = vsel %vm1616, %v1711, 0.0
      %1746 = vset.pattern.permute.xlu0 1
      %1747 = vperm.xlu0 %1746, %v1569
      %v1748 = vpop.permute.xlu0 %1747
      %1751 = vset.pattern.permute.xlu0 1
      %1752 = vperm.xlu0 %1751, %v1570
      %v1753 = vpop.permute.xlu0 %1752
      %1756 = vset.pattern.permute.xlu0 1
      %1757 = vperm.xlu0 %1756, %v1571
      %v1758 = vpop.permute.xlu0 %1757
      %1761 = vset.pattern.permute.xlu0 1
      %1762 = vperm.xlu0 %1761, %v1572
      %v1763 = vpop.permute.xlu0 %1762
      %1766 = vset.pattern.permute.xlu0 1
      %1767 = vperm.xlu0 %1766, %v1573
      %v1768 = vpop.permute.xlu0 %1767
      %1771 = vset.pattern.permute.xlu0 1
      %1772 = vperm.xlu0 %1771, %v1574
      %v1773 = vpop.permute.xlu0 %1772
      %1776 = vset.pattern.permute.xlu0 1
      %1777 = vperm.xlu0 %1776, %v1575
      %v1778 = vpop.permute.xlu0 %1777
      %1781 = vset.pattern.permute.xlu0 1
      %1782 = vperm.xlu0 %1781, %v1576
      %v1783 = vpop.permute.xlu0 %1782
      %1786 = vset.pattern.permute.xlu0 1
      %1787 = vperm.xlu0 %1786, %v1577
      %v1788 = vpop.permute.xlu0 %1787
      %1791 = vset.pattern.permute.xlu0 1
      %1792 = vperm.xlu0 %1791, %v1578
      %v1793 = vpop.permute.xlu0 %1792
      %1796 = vset.pattern.permute.xlu0 1
      %1797 = vperm.xlu0 %1796, %v1579
      %v1798 = vpop.permute.xlu0 %1797
      %1801 = vset.pattern.permute.xlu0 1
      %1802 = vperm.xlu0 %1801, %v1580
      %v1803 = vpop.permute.xlu0 %1802
      %1806 = vset.pattern.permute.xlu0 1
      %1807 = vperm.xlu0 %1806, %v1581
      %v1808 = vpop.permute.xlu0 %1807
      %1811 = vset.pattern.permute.xlu0 1
      %1812 = vperm.xlu0 %1811, %v1582
      %v1813 = vpop.permute.xlu0 %1812
      %1816 = vset.pattern.permute.xlu0 1
      %1817 = vperm.xlu0 %1816, %v1583
      %v1818 = vpop.permute.xlu0 %1817
      %1821 = vset.pattern.permute.xlu0 1
      %1822 = vperm.xlu0 %1821, %v1584
      %v1823 = vpop.permute.xlu0 %1822
      %v1825 = vsel %vm1537, %v1748, %v1713
      %v1826 = vsel %vm1538, %v1748, %v1714
      %v1827 = vsel %vm1539, %v1753, %v1715
      %v1828 = vsel %vm1540, %v1753, %v1716
      %v1829 = vsel %vm1541, %v1758, %v1717
      %v1830 = vsel %vm1542, %v1758, %v1718
      %v1831 = vsel %vm1543, %v1763, %v1719
      %v1832 = vsel %vm1544, %v1763, %v1720
      %v1833 = vsel %vm1545, %v1768, %v1721
      %v1834 = vsel %vm1546, %v1768, %v1722
      %v1835 = vsel %vm1547, %v1773, %v1723
      %v1836 = vsel %vm1548, %v1773, %v1724
      %v1837 = vsel %vm1549, %v1778, %v1725
      %v1838 = vsel %vm1550, %v1778, %v1726
      %v1839 = vsel %vm1551, %v1783, %v1727
      %v1840 = vsel %vm1552, %v1783, %v1728
      %v1841 = vsel %vm1553, %v1788, %v1729
      %v1842 = vsel %vm1554, %v1788, %v1730
      %v1843 = vsel %vm1555, %v1793, %v1731
      %v1844 = vsel %vm1556, %v1793, %v1732
      %v1845 = vsel %vm1557, %v1798, %v1733
      %v1846 = vsel %vm1558, %v1798, %v1734
      %v1847 = vsel %vm1559, %v1803, %v1735
      %v1848 = vsel %vm1560, %v1803, %v1736
      %v1849 = vsel %vm1561, %v1808, %v1737
      %v1850 = vsel %vm1562, %v1808, %v1738
      %v1851 = vsel %vm1563, %v1813, %v1739
      %v1852 = vsel %vm1564, %v1813, %v1740
      %v1853 = vsel %vm1565, %v1818, %v1741
      %v1854 = vsel %vm1566, %v1818, %v1742
      %v1855 = vsel %vm1567, %v1823, %v1743
      %v1856 = vsel %vm1568, %v1823, %v1744
      %1858 = vset.pattern.permute.xlu0 1
      %1859 = vperm.xlu0 %1858, %v1521
      %v1860 = vpop.permute.xlu0 %1859
      %1863 = vset.pattern.permute.xlu0 1
      %1864 = vperm.xlu0 %1863, %v1522
      %v1865 = vpop.permute.xlu0 %1864
      %1868 = vset.pattern.permute.xlu0 1
      %1869 = vperm.xlu0 %1868, %v1523
      %v1870 = vpop.permute.xlu0 %1869
      %1873 = vset.pattern.permute.xlu0 1
      %1874 = vperm.xlu0 %1873, %v1524
      %v1875 = vpop.permute.xlu0 %1874
      %1878 = vset.pattern.permute.xlu0 1
      %1879 = vperm.xlu0 %1878, %v1525
      %v1880 = vpop.permute.xlu0 %1879
      %1883 = vset.pattern.permute.xlu0 1
      %1884 = vperm.xlu0 %1883, %v1526
      %v1885 = vpop.permute.xlu0 %1884
      %1888 = vset.pattern.permute.xlu0 1
      %1889 = vperm.xlu0 %1888, %v1527
      %v1890 = vpop.permute.xlu0 %1889
      %1893 = vset.pattern.permute.xlu0 1
      %1894 = vperm.xlu0 %1893, %v1528
      %v1895 = vpop.permute.xlu0 %1894
      %1898 = vset.pattern.permute.xlu0 1
      %1899 = vperm.xlu0 %1898, %v1529
      %v1900 = vpop.permute.xlu0 %1899
      %1903 = vset.pattern.permute.xlu0 1
      %1904 = vperm.xlu0 %1903, %v1530
      %v1905 = vpop.permute.xlu0 %1904
      %1908 = vset.pattern.permute.xlu0 1
      %1909 = vperm.xlu0 %1908, %v1531
      %v1910 = vpop.permute.xlu0 %1909
      %1913 = vset.pattern.permute.xlu0 1
      %1914 = vperm.xlu0 %1913, %v1532
      %v1915 = vpop.permute.xlu0 %1914
      %1918 = vset.pattern.permute.xlu0 1
      %1919 = vperm.xlu0 %1918, %v1533
      %v1920 = vpop.permute.xlu0 %1919
      %1923 = vset.pattern.permute.xlu0 1
      %1924 = vperm.xlu0 %1923, %v1534
      %v1925 = vpop.permute.xlu0 %1924
      %1928 = vset.pattern.permute.xlu0 1
      %1929 = vperm.xlu0 %1928, %v1535
      %v1930 = vpop.permute.xlu0 %1929
      %1933 = vset.pattern.permute.xlu0 1
      %1934 = vperm.xlu0 %1933, %v1536
      %v1935 = vpop.permute.xlu0 %1934
      %v1937 = vsel %vm1425, %v1860, %v1825
      %v1938 = vsel %vm1426, %v1860, %v1826
      %v1939 = vsel %vm1427, %v1865, %v1827
      %v1940 = vsel %vm1428, %v1865, %v1828
      %v1941 = vsel %vm1429, %v1870, %v1829
      %v1942 = vsel %vm1430, %v1870, %v1830
      %v1943 = vsel %vm1431, %v1875, %v1831
      %v1944 = vsel %vm1432, %v1875, %v1832
      %v1945 = vsel %vm1433, %v1880, %v1833
      %v1946 = vsel %vm1434, %v1880, %v1834
      %v1947 = vsel %vm1435, %v1885, %v1835
      %v1948 = vsel %vm1436, %v1885, %v1836
      %v1949 = vsel %vm1437, %v1890, %v1837
      %v1950 = vsel %vm1438, %v1890, %v1838
      %v1951 = vsel %vm1439, %v1895, %v1839
      %v1952 = vsel %vm1440, %v1895, %v1840
      %v1953 = vsel %vm1441, %v1900, %v1841
      %v1954 = vsel %vm1442, %v1900, %v1842
      %v1955 = vsel %vm1443, %v1905, %v1843
      %v1956 = vsel %vm1444, %v1905, %v1844
      %v1957 = vsel %vm1445, %v1910, %v1845
      %v1958 = vsel %vm1446, %v1910, %v1846
      %v1959 = vsel %vm1447, %v1915, %v1847
      %v1960 = vsel %vm1448, %v1915, %v1848
      %v1961 = vsel %vm1449, %v1920, %v1849
      %v1962 = vsel %vm1450, %v1920, %v1850
      %v1963 = vsel %vm1451, %v1925, %v1851
      %v1964 = vsel %vm1452, %v1925, %v1852
      %v1965 = vsel %vm1453, %v1930, %v1853
      %v1966 = vsel %vm1454, %v1930, %v1854
      %v1967 = vsel %vm1455, %v1935, %v1855
      %v1968 = vsel %vm1456, %v1935, %v1856
      %1970 = vset.pattern.permute.xlu0 1
      %1971 = vperm.xlu0 %1970, %v1409
      %v1972 = vpop.permute.xlu0 %1971
      %1975 = vset.pattern.permute.xlu0 1
      %1976 = vperm.xlu0 %1975, %v1410
      %v1977 = vpop.permute.xlu0 %1976
      %1980 = vset.pattern.permute.xlu0 1
      %1981 = vperm.xlu0 %1980, %v1411
      %v1982 = vpop.permute.xlu0 %1981
      %1985 = vset.pattern.permute.xlu0 1
      %1986 = vperm.xlu0 %1985, %v1412
      %v1987 = vpop.permute.xlu0 %1986
      %1990 = vset.pattern.permute.xlu0 1
      %1991 = vperm.xlu0 %1990, %v1413
      %v1992 = vpop.permute.xlu0 %1991
      %1995 = vset.pattern.permute.xlu0 1
      %1996 = vperm.xlu0 %1995, %v1414
      %v1997 = vpop.permute.xlu0 %1996
      %2000 = vset.pattern.permute.xlu0 1
      %2001 = vperm.xlu0 %2000, %v1415
      %v2002 = vpop.permute.xlu0 %2001
      %2005 = vset.pattern.permute.xlu0 1
      %2006 = vperm.xlu0 %2005, %v1416
      %v2007 = vpop.permute.xlu0 %2006
      %2010 = vset.pattern.permute.xlu0 1
      %2011 = vperm.xlu0 %2010, %v1417
      %v2012 = vpop.permute.xlu0 %2011
      %2015 = vset.pattern.permute.xlu0 1
      %2016 = vperm.xlu0 %2015, %v1418
      %v2017 = vpop.permute.xlu0 %2016
      %2020 = vset.pattern.permute.xlu0 1
      %2021 = vperm.xlu0 %2020, %v1419
      %v2022 = vpop.permute.xlu0 %2021
      %2025 = vset.pattern.permute.xlu0 1
      %2026 = vperm.xlu0 %2025, %v1420
      %v2027 = vpop.permute.xlu0 %2026
      %2030 = vset.pattern.permute.xlu0 1
      %2031 = vperm.xlu0 %2030, %v1421
      %v2032 = vpop.permute.xlu0 %2031
      %2035 = vset.pattern.permute.xlu0 1
      %2036 = vperm.xlu0 %2035, %v1422
      %v2037 = vpop.permute.xlu0 %2036
      %2040 = vset.pattern.permute.xlu0 1
      %2041 = vperm.xlu0 %2040, %v1423
      %v2042 = vpop.permute.xlu0 %2041
      %2045 = vset.pattern.permute.xlu0 1
      %2046 = vperm.xlu0 %2045, %v1424
      %v2047 = vpop.permute.xlu0 %2046
      %v2049 = vsel %vm1313, %v1972, %v1937
      %v2050 = vsel %vm1314, %v1972, %v1938
      %v2051 = vsel %vm1315, %v1977, %v1939
      %v2052 = vsel %vm1316, %v1977, %v1940
      %v2053 = vsel %vm1317, %v1982, %v1941
      %v2054 = vsel %vm1318, %v1982, %v1942
      %v2055 = vsel %vm1319, %v1987, %v1943
      %v2056 = vsel %vm1320, %v1987, %v1944
      %v2057 = vsel %vm1321, %v1992, %v1945
      %v2058 = vsel %vm1322, %v1992, %v1946
      %v2059 = vsel %vm1323, %v1997, %v1947
      %v2060 = vsel %vm1324, %v1997, %v1948
      %v2061 = vsel %vm1325, %v2002, %v1949
      %v2062 = vsel %vm1326, %v2002, %v1950
      %v2063 = vsel %vm1327, %v2007, %v1951
      %v2064 = vsel %vm1328, %v2007, %v1952
      %v2065 = vsel %vm1329, %v2012, %v1953
      %v2066 = vsel %vm1330, %v2012, %v1954
      %v2067 = vsel %vm1331, %v2017, %v1955
      %v2068 = vsel %vm1332, %v2017, %v1956
      %v2069 = vsel %vm1333, %v2022, %v1957
      %v2070 = vsel %vm1334, %v2022, %v1958
      %v2071 = vsel %vm1335, %v2027, %v1959
      %v2072 = vsel %vm1336, %v2027, %v1960
      %v2073 = vsel %vm1337, %v2032, %v1961
      %v2074 = vsel %vm1338, %v2032, %v1962
      %v2075 = vsel %vm1339, %v2037, %v1963
      %v2076 = vsel %vm1340, %v2037, %v1964
      %v2077 = vsel %vm1341, %v2042, %v1965
      %v2078 = vsel %vm1342, %v2042, %v1966
      %v2079 = vsel %vm1343, %v2047, %v1967
      %v2080 = vsel %vm1344, %v2047, %v1968
      %v2081 = vpack.c.bf16 %v2051, %v2049
      %v2082 = vpack.c.bf16 %v2052, %v2050
      %v2083 = vpack.c.bf16 %v2055, %v2053
      %v2084 = vpack.c.bf16 %v2056, %v2054
      %v2085 = vpack.c.bf16 %v2059, %v2057
      %v2086 = vpack.c.bf16 %v2060, %v2058
      %v2087 = vpack.c.bf16 %v2063, %v2061
      %v2088 = vpack.c.bf16 %v2064, %v2062
      %v2089 = vpack.c.bf16 %v2067, %v2065
      %v2090 = vpack.c.bf16 %v2068, %v2066
      %v2091 = vpack.c.bf16 %v2071, %v2069
      %v2092 = vpack.c.bf16 %v2072, %v2070
      %v2093 = vpack.c.bf16 %v2075, %v2073
      %v2094 = vpack.c.bf16 %v2076, %v2074
      %v2095 = vpack.c.bf16 %v2079, %v2077
      %v2096 = vpack.c.bf16 %v2080, %v2078
      %v2097 = vld [vmem:[%s329] sm:$0xff]
      %v2098 = vld [vmem:[%s329 + $0x8] sm:$0xff]
      %v2099 = vld [vmem:[%s329 + $0x10] sm:$0xff]
      %v2100 = vld [vmem:[%s329 + $0x18] sm:$0xff]
      %v2101 = vld [vmem:[%s329 + $0x20] sm:$0xff]
      %v2102 = vld [vmem:[%s329 + $0x28] sm:$0xff]
      %v2103 = vld [vmem:[%s329 + $0x30] sm:$0xff]
      %v2104 = vld [vmem:[%s329 + $0x38] sm:$0xff]
      %v2105 = vld [vmem:[%s329 + $0x40] sm:$0xff]
      %v2106 = vld [vmem:[%s329 + $0x48] sm:$0xff]
      %v2107 = vld [vmem:[%s329 + $0x50] sm:$0xff]
      %v2108 = vld [vmem:[%s329 + $0x58] sm:$0xff]
      %v2109 = vld [vmem:[%s329 + $0x60] sm:$0xff]
      %v2110 = vld [vmem:[%s329 + $0x68] sm:$0xff]
      %v2111 = vld [vmem:[%s329 + $0x70] sm:$0xff]
      %v2112 = vld [vmem:[%s329 + $0x78] sm:$0xff]
      %v2113 = vld [vmem:[%s329 + $0x80] sm:$0xff]
      %v2114 = vld [vmem:[%s329 + $0x88] sm:$0xff]
      %v2115 = vld [vmem:[%s329 + $0x90] sm:$0xff]
      %v2116 = vld [vmem:[%s329 + $0x98] sm:$0xff]
      %v2117 = vld [vmem:[%s329 + $0xa0] sm:$0xff]
      %v2118 = vld [vmem:[%s329 + $0xa8] sm:$0xff]
      %v2119 = vld [vmem:[%s329 + $0xb0] sm:$0xff]
      %v2120 = vld [vmem:[%s329 + $0xb8] sm:$0xff]
      %v2121 = vld [vmem:[%s329 + $0xc0] sm:$0xff]
      %v2122 = vld [vmem:[%s329 + $0xc8] sm:$0xff]
      %v2123 = vld [vmem:[%s329 + $0xd0] sm:$0xff]
      %v2124 = vld [vmem:[%s329 + $0xd8] sm:$0xff]
      %v2125 = vld [vmem:[%s329 + $0xe0] sm:$0xff]
      %v2126 = vld [vmem:[%s329 + $0xe8] sm:$0xff]
      %v2127 = vld [vmem:[%s329 + $0xf0] sm:$0xff]
      %v2128 = vld [vmem:[%s329 + $0xf8] sm:$0xff]
      %v2129 = vpack.c.bf16 %v2098, %v2097
      %v2130 = vpack.c.bf16 %v2100, %v2099
      %v2131 = vpack.c.bf16 %v2102, %v2101
      %v2132 = vpack.c.bf16 %v2104, %v2103
      %v2133 = vpack.c.bf16 %v2106, %v2105
      %v2134 = vpack.c.bf16 %v2108, %v2107
      %v2135 = vpack.c.bf16 %v2110, %v2109
      %v2136 = vpack.c.bf16 %v2112, %v2111
      %v2137 = vpack.c.bf16 %v2114, %v2113
      %v2138 = vpack.c.bf16 %v2116, %v2115
      %v2139 = vpack.c.bf16 %v2118, %v2117
      %v2140 = vpack.c.bf16 %v2120, %v2119
      %v2141 = vpack.c.bf16 %v2122, %v2121
      %v2142 = vpack.c.bf16 %v2124, %v2123
      %v2143 = vpack.c.bf16 %v2126, %v2125
      %v2144 = vpack.c.bf16 %v2128, %v2127
      %2145 = vmatpush.bf16.msra.mxu0 %v2136
      %2146 = vmatpush.bf16.msra.mxu0 %v2135
      %2147 = vmatpush.bf16.msra.mxu0 %v2134
      %2148 = vmatpush.bf16.msra.mxu0 %v2133
      %2149 = vmatpush.bf16.msra.mxu0 %v2132
      %2150 = vmatpush.bf16.msra.mxu0 %v2131
      %2151 = vmatpush.bf16.msra.mxu0 %v2130
      %2152 = vmatpush.bf16.msra.mxu0 %v2129
      %2153 = vmatmul.bf16.gmra.mxu0 %v2081
      %v2154 = vpop.f32.mrf.mxu0
      %v2155 = vadd.f32 0.0, %v2154
      %v2156 = vpop.f32.mrf.mxu0
      %v2157 = vadd.f32 0.0, %v2156
      %2158 = vmatmul.bf16.gmra.mxu0 %v2083
      %v2159 = vpop.f32.mrf.mxu0
      %v2160 = vadd.f32 0.0, %v2159
      %v2161 = vpop.f32.mrf.mxu0
      %v2162 = vadd.f32 0.0, %v2161
      %2163 = vmatmul.bf16.gmra.mxu0 %v2085
      %v2164 = vpop.f32.mrf.mxu0
      %v2165 = vadd.f32 0.0, %v2164
      %v2166 = vpop.f32.mrf.mxu0
      %v2167 = vadd.f32 0.0, %v2166
      %2168 = vmatmul.bf16.gmra.mxu0 %v2087
      %v2169 = vpop.f32.mrf.mxu0
      %v2170 = vadd.f32 0.0, %v2169
      %v2171 = vpop.f32.mrf.mxu0
      %v2172 = vadd.f32 0.0, %v2171
      %2173 = vmatmul.bf16.gmra.mxu0 %v2089
      %v2174 = vpop.f32.mrf.mxu0
      %v2175 = vadd.f32 0.0, %v2174
      %v2176 = vpop.f32.mrf.mxu0
      %v2177 = vadd.f32 0.0, %v2176
      %2178 = vmatmul.bf16.gmra.mxu0 %v2091
      %v2179 = vpop.f32.mrf.mxu0
      %v2180 = vadd.f32 0.0, %v2179
      %v2181 = vpop.f32.mrf.mxu0
      %v2182 = vadd.f32 0.0, %v2181
      %2183 = vmatmul.bf16.gmra.mxu0 %v2093
      %v2184 = vpop.f32.mrf.mxu0
      %v2185 = vadd.f32 0.0, %v2184
      %v2186 = vpop.f32.mrf.mxu0
      %v2187 = vadd.f32 0.0, %v2186
      %2188 = vmatmul.bf16.gmra.mxu0 %v2095
      %v2189 = vpop.f32.mrf.mxu0
      %v2190 = vadd.f32 0.0, %v2189
      %v2191 = vpop.f32.mrf.mxu0
      %v2192 = vadd.f32 0.0, %v2191
      %2193 = vdwg.mxu0
      %2194 = vmatpush.bf16.msra.mxu0 %v2144
      %2195 = vmatpush.bf16.msra.mxu0 %v2143
      %2196 = vmatpush.bf16.msra.mxu0 %v2142
      %2197 = vmatpush.bf16.msra.mxu0 %v2141
      %2198 = vmatpush.bf16.msra.mxu0 %v2140
      %2199 = vmatpush.bf16.msra.mxu0 %v2139
      %2200 = vmatpush.bf16.msra.mxu0 %v2138
      %2201 = vmatpush.bf16.msra.mxu0 %v2137
      %2202 = vmatmul.bf16.gmra.mxu0 %v2082
      %v2203 = vpop.f32.mrf.mxu0
      %v2204 = vadd.f32 %v2155, %v2203
      %v2205 = vpop.f32.mrf.mxu0
      %v2206 = vadd.f32 %v2157, %v2205
      %2207 = vmatmul.bf16.gmra.mxu0 %v2084
      %v2208 = vpop.f32.mrf.mxu0
      %v2209 = vadd.f32 %v2160, %v2208
      %v2210 = vpop.f32.mrf.mxu0
      %v2211 = vadd.f32 %v2162, %v2210
      %2212 = vmatmul.bf16.gmra.mxu0 %v2086
      %v2213 = vpop.f32.mrf.mxu0
      %v2214 = vadd.f32 %v2165, %v2213
      %v2215 = vpop.f32.mrf.mxu0
      %v2216 = vadd.f32 %v2167, %v2215
      %2217 = vmatmul.bf16.gmra.mxu0 %v2088
      %v2218 = vpop.f32.mrf.mxu0
      %v2219 = vadd.f32 %v2170, %v2218
      %v2220 = vpop.f32.mrf.mxu0
      %v2221 = vadd.f32 %v2172, %v2220
      %2222 = vmatmul.bf16.gmra.mxu0 %v2090
      %v2223 = vpop.f32.mrf.mxu0
      %v2224 = vadd.f32 %v2175, %v2223
      %v2225 = vpop.f32.mrf.mxu0
      %v2226 = vadd.f32 %v2177, %v2225
      %2227 = vmatmul.bf16.gmra.mxu0 %v2092
      %v2228 = vpop.f32.mrf.mxu0
      %v2229 = vadd.f32 %v2180, %v2228
      %v2230 = vpop.f32.mrf.mxu0
      %v2231 = vadd.f32 %v2182, %v2230
      %2232 = vmatmul.bf16.gmra.mxu0 %v2094
      %v2233 = vpop.f32.mrf.mxu0
      %v2234 = vadd.f32 %v2185, %v2233
      %v2235 = vpop.f32.mrf.mxu0
      %v2236 = vadd.f32 %v2187, %v2235
      %2237 = vmatmul.bf16.gmra.mxu0 %v2096
      %v2238 = vpop.f32.mrf.mxu0
      %v2239 = vadd.f32 %v2190, %v2238
      %v2240 = vpop.f32.mrf.mxu0
      %v2241 = vadd.f32 %v2192, %v2240
      %2242 = vdwg.mxu0
      %vm2243 = vcmask 261120
      %2244 = vst.msk [vmem:[%s338] sm:$0xff] %vm2243, %v2204
      %2245 = vst.msk [vmem:[%s338 + $0x8] sm:$0xff] %vm2243, %v2206
      %2246 = vst.msk [vmem:[%s338 + $0x10] sm:$0xff] %vm2243, %v2209
      %2247 = vst.msk [vmem:[%s338 + $0x18] sm:$0xff] %vm2243, %v2211
      %2248 = vst.msk [vmem:[%s338 + $0x20] sm:$0xff] %vm2243, %v2214
      %2249 = vst.msk [vmem:[%s338 + $0x28] sm:$0xff] %vm2243, %v2216
      %2250 = vst.msk [vmem:[%s338 + $0x30] sm:$0xff] %vm2243, %v2219
      %2251 = vst.msk [vmem:[%s338 + $0x38] sm:$0xff] %vm2243, %v2221
      %2252 = vst.msk [vmem:[%s338 + $0x40] sm:$0xff] %vm2243, %v2224
      %2253 = vst.msk [vmem:[%s338 + $0x48] sm:$0xff] %vm2243, %v2226
      %2254 = vst.msk [vmem:[%s338 + $0x50] sm:$0xff] %vm2243, %v2229
      %2255 = vst.msk [vmem:[%s338 + $0x58] sm:$0xff] %vm2243, %v2231
      %2256 = vst.msk [vmem:[%s338 + $0x60] sm:$0xff] %vm2243, %v2234
      %2257 = vst.msk [vmem:[%s338 + $0x68] sm:$0xff] %vm2243, %v2236
      %2258 = vst.msk [vmem:[%s338 + $0x70] sm:$0xff] %vm2243, %v2239
      %2259 = vst.msk [vmem:[%s338 + $0x78] sm:$0xff] %vm2243, %v2241
      %s2260 = smul.u32 16, %s22
      %p2261 = scmp.lt.s32.totalorder %s21, 1
      %s2262 = scalar_select %p2261, %s21, 1
      %p2263 = scmp.lt.s32.totalorder %s2260, 31
      %s2264 = scalar_select %p2263, %s2260, 31
      %s2265 = smul.addr %s2262, 32
      %s2266 = sadd.s32 %s2264, %s2265
      %s2267 = smul.addr %s2266, 8
      %s2268 = scalar_lea.vmem %s6, %s2267
      // Predicated region
      $region45: #{fgfa_forward.4} parent=43 // pred_check
        %p2269 = pneg %p194
      $region46: #{fgfa_forward.4} parent=43 // pred_check_branch
        %2271 = sbr.rel (%p2269) target = $region48
      $region47: #{fgfa_forward.4} parent=43 // pred_region
        %s2272 = smul.u32 16, %s22
      $region48: #{fgfa_forward.4} parent=43 // pred_fallthru
        _
    $region44: #{fgfa_forward.4} parent=5 // pred_fallthru
      _
    %p2273 = scmp.le.s32.totalorder 2, %s12
    // Predicated region
    $region49: #{fgfa_forward.4} parent=5 // pred_check
      %p2274 = pneg %p2273
    $region50: #{fgfa_forward.4} parent=5 // pred_check_branch
      %2276 = sbr.rel (%p2274) target = $region52
    $region51: #{fgfa_forward.4} parent=5 // pred_region
      %s2277 = ssub.s32 %s12, 2
      // Predicated region
      $region53: #{fgfa_forward.4} parent=51 // pred_check
        %p2278 = pneg %p200
      $region54: #{fgfa_forward.4} parent=51 // pred_check_branch
        %2280 = sbr.rel (%p2278) target = $region56
      $region55: #{fgfa_forward.4} parent=51 // pred_region
        %s2281 = smul.u32 16, %s24
        %p2282 = scmp.lt.s32.totalorder %s23, 1
        %s2283 = scalar_select %p2282, %s23, 1
        %p2284 = scmp.lt.s32.totalorder %s2281, 31
        %s2285 = scalar_select %p2284, %s2281, 31
        %s2286 = smul.addr %s2283, 32
        %s2287 = sadd.s32 %s2285, %s2286
        %s2288 = smul.addr %s2287, 8
        %s2289 = scalar_lea.vmem %s6, %s2288
      $region56: #{fgfa_forward.4} parent=51 // pred_fallthru
        _
    $region52: #{fgfa_forward.4} parent=5 // pred_fallthru
      _
  $region6: #{fgfa_forward.4} parent=0 // loop_footer
    %s16 = sadd.s32 1, %s12
  $region7: #{fgfa_forward.4} parent=0 // loop_footer_branch
    %11 = sbr.rel target = $region3
  $region8: #{fgfa_forward.4} parent=0 // loop_exit
    _

</llo_original>
